<compile_context>
chip_gen: v5e
topology: v5e:2x2
jax: 0.10.0
libtpu: 0.0.40
codegen_flags: <defaults>
</compile_context>

<pallas_src>
import functools

import numpy as np
import jax
import jax.numpy as jnp
from jax.experimental import pallas as pl
from jax.experimental.pallas import tpu as pltpu


# ----------------------------------------------------------------------------
# Constant 0/1 embedding matrices (host-built, folded into the program):
#   e_up : (H0*W0, NBUF)  nearest-2x upsample + zero-pad + row-major flatten
#   e_sk : (H*W,   NBUF)  zero-pad + row-major flatten (skip connection)
#   s_out: (N,     H*W)   drop wrap/pad columns -> compact NCHW-flat output
# Padded-flat layout: position (1+r)*Wp + (1+c) of an NBUF=(H+2)*(W+2)+2 buffer
# holds pixel (r, c); a 3x3 conv tap (kh, kw) is then the contiguous lane slice
# starting at kh*Wp + kw.
# ----------------------------------------------------------------------------
def _embed_matrices(H0, W0):
    H, W = 2 * H0, 2 * W0
    Hp, Wp = H + 2, W + 2
    NBUF = Hp * Wp + 2
    N = H * Wp
    rr, cc = np.meshgrid(np.arange(H), np.arange(W), indexing="ij")
    dst = (rr + 1) * Wp + (cc + 1)                       # padded-flat position

    e_up = np.zeros((H0 * W0, NBUF), np.float32)
    e_up[(rr // 2) * W0 + (cc // 2), dst] = 1.0          # nearest 2x replicate

    e_sk = np.zeros((H * W, NBUF), np.float32)
    e_sk[rr * W + cc, dst] = 1.0

    s_out = np.zeros((N, H * W), np.float32)
    s_out[rr * Wp + cc, rr * W + cc] = 1.0               # wrap cols -> dropped

    cast = lambda a: jnp.asarray(a, jnp.bfloat16)        # 0/1 exact in bf16
    return cast(e_up), cast(e_sk), cast(s_out)


# ----------------------------------------------------------------------------
# Fused Pallas kernel: upsample-embed + 3 x (3x3 conv + folded BN + ReLU)
#                      + channel concat + crop, all in VMEM.
# ----------------------------------------------------------------------------
def _fused_decoder_kernel(x_ref, xsk_ref, eup_ref, esk_ref, sout_ref,
                          wup_ref, wc1_ref, wc2_ref, sh_ref,
                          o_ref, buf_ref, *, H, W, out_ch):
    Wp = W + 2
    N = H * Wp
    npad = Wp + 1
    nbuf = buf_ref.shape[1]

    lane = jax.lax.broadcasted_iota(jnp.int32, (1, N), 1)
    valid = (lane % Wp) < W          # real pixels (not wrap/pad columns)

    def conv3x3(x_pad, w_ref, shift):
        # x_pad: (cin, NBUF) bf16 padded-flat; w_ref: (out_ch, 9*cin) bf16
        # (BN scale already folded into w).  9 accumulating small matmuls,
        # f32 accumulation; no (9*cin, N) im2col materialization.
        cin = x_pad.shape[0]
        w = w_ref[...]
        acc = None
        for t in range(9):
            kh, kw = t // 3, t % 3
            tap = x_pad[:, kh * Wp + kw: kh * Wp + kw + N]        # (cin, N)
            d = jnp.dot(w[:, t * cin:(t + 1) * cin], tap,
                        preferred_element_type=jnp.float32)
            acc = d if acc is None else acc + d
        return jnp.maximum(acc + shift, 0.0)                      # f32 (out_ch, N)

    # Fused nearest-2x-upsample + zero-pad + flatten: one lane-dense matmul.
    xup_pad = jnp.dot(x_ref[0], eup_ref[...],
                      preferred_element_type=jnp.float32).astype(jnp.bfloat16)

    # Skip branch straight into the persistent padded-flat scratch rows
    # [out_ch:]; its zero borders fall out of the embed matmul directly.
    buf_ref[out_ch:, :] = jnp.dot(
        xsk_ref[0], esk_ref[...],
        preferred_element_type=jnp.float32).astype(jnp.bfloat16)
    # Rows [:out_ch] only need their borders zeroed; interior is rewritten.
    buf_ref[:out_ch, :] = jnp.zeros((out_ch, nbuf), jnp.bfloat16)

    # Stage 1: "up" Conv3x3 + folded BN + ReLU.
    x1 = conv3x3(xup_pad, wup_ref, sh_ref[0])
    buf_ref[:out_ch, npad:npad + N] = jnp.where(valid, x1, 0.0).astype(jnp.bfloat16)

    # Stage 2: first conv of "up_conv" on cat([x1, x_skip], channel axis).
    y = conv3x3(buf_ref[...], wc1_ref, sh_ref[1])
    buf_ref[:out_ch, npad:npad + N] = jnp.where(valid, y, 0.0).astype(jnp.bfloat16)

    # Stage 3: second conv of "up_conv".
    y = conv3x3(buf_ref[:out_ch, :], wc2_ref, sh_ref[2])

    # Drop wrap/pad columns and emit the compact (out_ch, H*W) layout
    # (lane-dense, 128-aligned).  The wrapper only needs a free reshape.
    o_ref[0] = jnp.dot(y.astype(jnp.bfloat16), sout_ref[...],
                       preferred_element_type=jnp.float32).astype(o_ref.dtype)


# ----------------------------------------------------------------------------
# Forward pass (matches decoder_block.forward semantics, NCHW in / NCHW out)
# ----------------------------------------------------------------------------
def decoder_block_forward(params, x_nchw, x_skip_nchw):
    B, in_ch, H0, W0 = x_nchw.shape
    out_ch = params["c2"]["w"].shape[0]
    skip_ch = x_skip_nchw.shape[1]
    assert in_ch == out_ch + skip_ch, "cat([x1, x_skip]) must have in_ch channels"
    H, W = 2 * H0, 2 * W0
    Hp, Wp = H + 2, W + 2
    NBUF = Hp * Wp + 2
    N = H * Wp
    HW = H * W

    # Wrapper does only free reshapes + a bf16 cast; upsample / pad / crop all
    # live inside the kernel.
    x_flat = x_nchw.reshape(B, in_ch, H0 * W0).astype(jnp.bfloat16)
    xsk_flat = x_skip_nchw.reshape(B, skip_ch, HW).astype(jnp.bfloat16)
    e_up, e_sk, s_out = _embed_matrices(H0, W0)

    shifts = jnp.stack([params["up"]["shift"], params["c1"]["shift"],
                        params["c2"]["shift"]]).reshape(3, out_ch, 1)

    kernel = functools.partial(_fused_decoder_kernel, H=H, W=W, out_ch=out_ch)
    out = pl.pallas_call(
        kernel,
        out_shape=jax.ShapeDtypeStruct((B, out_ch, HW), jnp.float32),
        grid=(B,),
        in_specs=[
            pl.BlockSpec((1, in_ch, H0 * W0), lambda i: (i, 0, 0)),
            pl.BlockSpec((1, skip_ch, HW), lambda i: (i, 0, 0)),
            pl.BlockSpec((H0 * W0, NBUF), lambda i: (0, 0)),
            pl.BlockSpec((HW, NBUF), lambda i: (0, 0)),
            pl.BlockSpec((N, HW), lambda i: (0, 0)),
            pl.BlockSpec((out_ch, 9 * in_ch), lambda i: (0, 0)),
            pl.BlockSpec((out_ch, 9 * in_ch), lambda i: (0, 0)),
            pl.BlockSpec((out_ch, 9 * out_ch), lambda i: (0, 0)),
            pl.BlockSpec((3, out_ch, 1), lambda i: (0, 0, 0)),
        ],
        out_specs=pl.BlockSpec((1, out_ch, HW), lambda i: (i, 0, 0)),
        scratch_shapes=[pltpu.VMEM((in_ch, NBUF), jnp.bfloat16)],
        compiler_params=pltpu.CompilerParams(
            dimension_semantics=("parallel",),       # v7x: one batch elem / TC
            vmem_limit_bytes=32 * 1024 * 1024),
    )(x_flat, xsk_flat, e_up, e_sk, s_out,
      params["up"]["w"], params["c1"]["w"], params["c2"]["w"], shifts)

    return out.reshape(B, out_ch, H, W)      # free reshape; nothing to crop


# ----------------------------------------------------------------------------
# Parameter construction (deterministic, shapes follow the PyTorch __init__)
# ----------------------------------------------------------------------------
def _make_conv_bn_params(key, cin, cout):
    kw_, kb_, kg_, kbe_, km_, kv_ = jax.random.split(key, 6)
    # PyTorch conv weight layout is (Cout, Cin, 3, 3).
    w_oihw = 0.1 * jax.random.normal(kw_, (cout, cin, 3, 3), jnp.float32)
    b = 0.1 * jax.random.normal(kb_, (cout,), jnp.float32)
    gamma = 1.0 + 0.1 * jax.random.normal(kg_, (cout,), jnp.float32)
    beta = 0.1 * jax.random.normal(kbe_, (cout,), jnp.float32)
    run_mean = 0.1 * jax.random.normal(km_, (cout,), jnp.float32)
    run_var = 1.0 + 0.1 * jax.random.uniform(kv_, (cout,), jnp.float32)
    eps = 1e-5
    scale = gamma / jnp.sqrt(run_var + eps)          # BN eval-mode fold
    shift = (b - run_mean) * scale + beta            # conv bias folded in
    # Fold BN scale into the conv weights (exact in eval mode), cast to bf16.
    w_folded = (w_oihw * scale[:, None, None, None]).astype(jnp.bfloat16)
    # im2col order for the in-kernel matmuls: (cout, kh, kw, cin) -> (cout, 9*cin)
    w_mat = jnp.transpose(w_folded, (0, 2, 3, 1)).reshape(cout, 9 * cin)
    return dict(w=w_mat, w_oihw=w_folded, shift=shift)


def make_decoder_block_params(key, in_ch, out_ch):
    k1, k2, k3 = jax.random.split(key, 3)
    return dict(
        up=_make_conv_bn_params(k1, in_ch, out_ch),      # up: Conv(in->out)
        c1=_make_conv_bn_params(k2, in_ch, out_ch),      # up_conv conv1
        c2=_make_conv_bn_params(k3, out_ch, out_ch),     # up_conv conv2
    )


# ----------------------------------------------------------------------------
# Pure-XLA reference with the SAME mixed-precision boundaries as the kernel
# (bf16 weights/activations, f32 accumulation) for the numerical check.
# ----------------------------------------------------------------------------
def _ref_stage(x, p):
    y = jax.lax.conv_general_dilated(
        x, p["w_oihw"].astype(jnp.float32), window_strides=(1, 1),
        padding="SAME", dimension_numbers=("NCHW", "OIHW", "NCHW"))
    y = jnp.maximum(y + p["shift"][None, :, None, None], 0.0)
    return y.astype(jnp.bfloat16).astype(jnp.float32)    # bf16 activation hand-off


def _reference_forward(params, x, x_skip):
    xb = x.astype(jnp.bfloat16).astype(jnp.float32)
    sb = x_skip.astype(jnp.bfloat16).astype(jnp.float32)
    x_up = jnp.repeat(jnp.repeat(xb, 2, axis=2), 2, axis=3)
    x1 = _ref_stage(x_up, params["up"])
    x2 = jnp.concatenate([x1, sb], axis=1)
    y = _ref_stage(x2, params["c1"])
    return _ref_stage(y, params["c2"])


if __name__ == "__main__":
    # decoder_block(in_ch=8, out_ch=4): x_skip carries in_ch - out_ch = 4
    # channels so cat((x1, x_skip), dim=1) has in_ch channels (U-Net style).
    B, in_ch, out_ch, H0, W0 = 2, 8, 4, 8, 8

    key = jax.random.PRNGKey(0)
    kp, kx, ks = jax.random.split(key, 3)
    params = make_decoder_block_params(kp, in_ch, out_ch)

    x = jax.random.normal(kx, (B, in_ch, H0, W0), jnp.float32)            # NCHW
    x_skip = jax.random.normal(ks, (B, in_ch - out_ch, 2 * H0, 2 * W0),
                               jnp.float32)                               # NCHW

    fwd = jax.jit(decoder_block_forward)
    out = jax.block_until_ready(fwd(params, x, x_skip))
    assert out.shape == (B, out_ch, 2 * H0, 2 * W0), out.shape

    # Numerical check vs an XLA reference using identical bf16 boundaries.
    ref = jax.block_until_ready(_reference_forward(params, x, x_skip))
    max_err = float(jnp.max(jnp.abs(out - ref)))
    assert max_err < 5e-2, f"max abs error vs reference: {max_err}"
    print("KERNEL_OK")
</pallas_src>

<mosaic_0001>
module attributes {stable_mosaic.version = 11 : i64} {
  func.func @_fused_decoder_kernel(%arg0: i32, %arg1: memref<1x8x64xbf16, #tpu.memory_space<vmem>>, %arg2: memref<1x4x256xbf16, #tpu.memory_space<vmem>>, %arg3: memref<64x326xbf16, #tpu.memory_space<vmem>>, %arg4: memref<256x326xbf16, #tpu.memory_space<vmem>>, %arg5: memref<288x256xbf16, #tpu.memory_space<vmem>>, %arg6: memref<4x72xbf16, #tpu.memory_space<vmem>>, %arg7: memref<4x72xbf16, #tpu.memory_space<vmem>>, %arg8: memref<4x36xbf16, #tpu.memory_space<vmem>>, %arg9: memref<3x4x1xf32, #tpu.memory_space<vmem>>, %arg10: memref<1x4x256xf32, #tpu.memory_space<vmem>>, %arg11: memref<8x326xbf16, #tpu.memory_space<vmem>>) attributes {dimension_semantics = [#tpu.dimension_semantics<parallel>], iteration_bounds = array<i64: 2>, scalar_prefetch = 0 : i64, scratch_operands = 1 : i64, tpu.core_type = #tpu.core_type<tc>, window_params = [{transform_indices = @transform_0, window_bounds = array<i64: 1, 8, 64>}, {transform_indices = @transform_1, window_bounds = array<i64: 1, 4, 256>}, {pipeline_mode = #tpu.pipeline_mode<synchronous>, transform_indices = @transform_2, window_bounds = array<i64: 64, 326>}, {pipeline_mode = #tpu.pipeline_mode<synchronous>, transform_indices = @transform_3, window_bounds = array<i64: 256, 326>}, {pipeline_mode = #tpu.pipeline_mode<synchronous>, transform_indices = @transform_4, window_bounds = array<i64: 288, 256>}, {pipeline_mode = #tpu.pipeline_mode<synchronous>, transform_indices = @transform_5, window_bounds = array<i64: 4, 72>}, {pipeline_mode = #tpu.pipeline_mode<synchronous>, transform_indices = @transform_6, window_bounds = array<i64: 4, 72>}, {pipeline_mode = #tpu.pipeline_mode<synchronous>, transform_indices = @transform_7, window_bounds = array<i64: 4, 36>}, {pipeline_mode = #tpu.pipeline_mode<synchronous>, transform_indices = @transform_8, window_bounds = array<i64: 3, 4, 1>}, {transform_indices = @transform_9, window_bounds = array<i64: 1, 4, 256>}]} {
    %0 = tpu.iota {dimensions = array<i32: 1>} : vector<1x288xi32>
    %c18_i32 = arith.constant 18 : i32
    %c0_i32 = arith.constant 0 : i32
    %1 = arith.cmpi eq, %c18_i32, %c0_i32 : i32
    %c1_i32 = arith.constant 1 : i32
    %2 = arith.select %1, %c1_i32, %c18_i32 : i32
    %3 = vector.broadcast %2 : i32 to vector<1x288xi32>
    %4 = arith.remsi %0, %3 : vector<1x288xi32>
    %c0_i32_0 = arith.constant 0 : i32
    %5 = vector.broadcast %c0_i32_0 : i32 to vector<1x288xi32>
    %6 = arith.cmpi ne, %4, %5 : vector<1x288xi32>
    %c0_i32_1 = arith.constant 0 : i32
    %7 = vector.broadcast %c0_i32_1 : i32 to vector<1x288xi32>
    %8 = arith.cmpi slt, %4, %7 : vector<1x288xi32>
    %c0_i32_2 = arith.constant 0 : i32
    %9 = arith.cmpi slt, %2, %c0_i32_2 : i32
    %10 = vector.broadcast %9 : i1 to vector<1x288xi1>
    %11 = vector.broadcast %10 : vector<1x288xi1> to vector<1x288xi1>
    %12 = arith.xori %8, %11 : vector<1x288xi1>
    %13 = arith.andi %12, %6 : vector<1x288xi1>
    %14 = vector.broadcast %2 : i32 to vector<1x288xi32>
    %15 = arith.addi %4, %14 : vector<1x288xi32>
    %16 = arith.select %13, %15, %4 : vector<1x288xi1>, vector<1x288xi32>
    %c16_i32 = arith.constant 16 : i32
    %17 = vector.broadcast %c16_i32 : i32 to vector<1x288xi32>
    %18 = arith.cmpi slt, %16, %17 : vector<1x288xi32>
    %c0 = arith.constant 0 : index
    %c0_3 = arith.constant 0 : index
    %c0_4 = arith.constant 0 : index
    %19 = vector.load %arg1[%c0, %c0_3, %c0_4] : memref<1x8x64xbf16, #tpu.memory_space<vmem>>, vector<1x8x64xbf16>
    %20 = vector.shape_cast %19 : vector<1x8x64xbf16> to vector<8x64xbf16>
    %c0_5 = arith.constant 0 : index
    %c0_6 = arith.constant 0 : index
    %21 = vector.load %arg3[%c0_5, %c0_6] : memref<64x326xbf16, #tpu.memory_space<vmem>>, vector<64x326xbf16>
    %cst = arith.constant dense<0.000000e+00> : vector<8x326xf32>
    %22 = tpu.matmul %20, %21, %cst {dimension_numbers = #tpu.dot_dimension_numbers<[1], [0], [0], [1], [0, 0, 1, 1], [], []>} : vector<8x64xbf16>, vector<64x326xbf16>, vector<8x326xf32> -> vector<8x326xf32>
    %23 = arith.truncf %22 : vector<8x326xf32> to vector<8x326xbf16>
    %c0_7 = arith.constant 0 : index
    %c0_8 = arith.constant 0 : index
    %c0_9 = arith.constant 0 : index
    %24 = vector.load %arg2[%c0_7, %c0_8, %c0_9] : memref<1x4x256xbf16, #tpu.memory_space<vmem>>, vector<1x4x256xbf16>
    %25 = vector.shape_cast %24 : vector<1x4x256xbf16> to vector<4x256xbf16>
    %c0_10 = arith.constant 0 : index
    %c0_11 = arith.constant 0 : index
    %26 = vector.load %arg4[%c0_10, %c0_11] : memref<256x326xbf16, #tpu.memory_space<vmem>>, vector<256x326xbf16>
    %cst_12 = arith.constant dense<0.000000e+00> : vector<4x326xf32>
    %27 = tpu.matmul %25, %26, %cst_12 {dimension_numbers = #tpu.dot_dimension_numbers<[1], [0], [0], [1], [0, 0, 1, 1], [], []>} : vector<4x256xbf16>, vector<256x326xbf16>, vector<4x326xf32> -> vector<4x326xf32>
    %28 = arith.truncf %27 : vector<4x326xf32> to vector<4x326xbf16>
    %c4 = arith.constant 4 : index
    %c0_13 = arith.constant 0 : index
    %29 = vector.load %arg11[%c4, %c0_13] : memref<8x326xbf16, #tpu.memory_space<vmem>>, vector<4x326xbf16>
    tpu.vector_store %arg11[%c4, %c0_13], %28 {strides = array<i32>} : memref<8x326xbf16, #tpu.memory_space<vmem>>, vector<4x326xbf16>,
    %cst_14 = arith.constant 0.000000e+00 : bf16
    %30 = vector.broadcast %cst_14 : bf16 to vector<4x326xbf16>
    %c0_15 = arith.constant 0 : index
    %c0_16 = arith.constant 0 : index
    %31 = vector.load %arg11[%c0_15, %c0_16] : memref<8x326xbf16, #tpu.memory_space<vmem>>, vector<4x326xbf16>
    tpu.vector_store %arg11[%c0_15, %c0_16], %30 {strides = array<i32>} : memref<8x326xbf16, #tpu.memory_space<vmem>>, vector<4x326xbf16>,
    %c0_17 = arith.constant 0 : index
    %c0_18 = arith.constant 0 : index
    %c0_19 = arith.constant 0 : index
    %32 = vector.load %arg9[%c0_17, %c0_18, %c0_19] : memref<3x4x1xf32, #tpu.memory_space<vmem>>, vector<1x4x1xf32>
    %33 = vector.shape_cast %32 : vector<1x4x1xf32> to vector<4x1xf32>
    %c0_20 = arith.constant 0 : index
    %c0_21 = arith.constant 0 : index
    %34 = vector.load %arg6[%c0_20, %c0_21] : memref<4x72xbf16, #tpu.memory_space<vmem>>, vector<4x72xbf16>
    %35 = vector.extract_strided_slice %23 {offsets = [0, 0], sizes = [8, 288], strides = [1, 1]} : vector<8x326xbf16> to vector<8x288xbf16>
    %36 = vector.extract_strided_slice %34 {offsets = [0, 0], sizes = [4, 8], strides = [1, 1]} : vector<4x72xbf16> to vector<4x8xbf16>
    %cst_22 = arith.constant dense<0.000000e+00> : vector<4x288xf32>
    %37 = tpu.matmul %36, %35, %cst_22 {dimension_numbers = #tpu.dot_dimension_numbers<[1], [0], [0], [1], [0, 0, 1, 1], [], []>} : vector<4x8xbf16>, vector<8x288xbf16>, vector<4x288xf32> -> vector<4x288xf32>
    %38 = vector.extract_strided_slice %23 {offsets = [0, 1], sizes = [8, 288], strides = [1, 1]} : vector<8x326xbf16> to vector<8x288xbf16>
    %39 = vector.extract_strided_slice %34 {offsets = [0, 8], sizes = [4, 8], strides = [1, 1]} : vector<4x72xbf16> to vector<4x8xbf16>
    %cst_23 = arith.constant dense<0.000000e+00> : vector<4x288xf32>
    %40 = tpu.matmul %39, %38, %cst_23 {dimension_numbers = #tpu.dot_dimension_numbers<[1], [0], [0], [1], [0, 0, 1, 1], [], []>} : vector<4x8xbf16>, vector<8x288xbf16>, vector<4x288xf32> -> vector<4x288xf32>
    %41 = arith.addf %37, %40 : vector<4x288xf32>
    %42 = vector.extract_strided_slice %23 {offsets = [0, 2], sizes = [8, 288], strides = [1, 1]} : vector<8x326xbf16> to vector<8x288xbf16>
    %43 = vector.extract_strided_slice %34 {offsets = [0, 16], sizes = [4, 8], strides = [1, 1]} : vector<4x72xbf16> to vector<4x8xbf16>
    %cst_24 = arith.constant dense<0.000000e+00> : vector<4x288xf32>
    %44 = tpu.matmul %43, %42, %cst_24 {dimension_numbers = #tpu.dot_dimension_numbers<[1], [0], [0], [1], [0, 0, 1, 1], [], []>} : vector<4x8xbf16>, vector<8x288xbf16>, vector<4x288xf32> -> vector<4x288xf32>
    %45 = arith.addf %41, %44 : vector<4x288xf32>
    %46 = vector.extract_strided_slice %23 {offsets = [0, 18], sizes = [8, 288], strides = [1, 1]} : vector<8x326xbf16> to vector<8x288xbf16>
    %47 = vector.extract_strided_slice %34 {offsets = [0, 24], sizes = [4, 8], strides = [1, 1]} : vector<4x72xbf16> to vector<4x8xbf16>
    %cst_25 = arith.constant dense<0.000000e+00> : vector<4x288xf32>
    %48 = tpu.matmul %47, %46, %cst_25 {dimension_numbers = #tpu.dot_dimension_numbers<[1], [0], [0], [1], [0, 0, 1, 1], [], []>} : vector<4x8xbf16>, vector<8x288xbf16>, vector<4x288xf32> -> vector<4x288xf32>
    %49 = arith.addf %45, %48 : vector<4x288xf32>
    %50 = vector.extract_strided_slice %23 {offsets = [0, 19], sizes = [8, 288], strides = [1, 1]} : vector<8x326xbf16> to vector<8x288xbf16>
    %51 = vector.extract_strided_slice %34 {offsets = [0, 32], sizes = [4, 8], strides = [1, 1]} : vector<4x72xbf16> to vector<4x8xbf16>
    %cst_26 = arith.constant dense<0.000000e+00> : vector<4x288xf32>
    %52 = tpu.matmul %51, %50, %cst_26 {dimension_numbers = #tpu.dot_dimension_numbers<[1], [0], [0], [1], [0, 0, 1, 1], [], []>} : vector<4x8xbf16>, vector<8x288xbf16>, vector<4x288xf32> -> vector<4x288xf32>
    %53 = arith.addf %49, %52 : vector<4x288xf32>
    %54 = vector.extract_strided_slice %23 {offsets = [0, 20], sizes = [8, 288], strides = [1, 1]} : vector<8x326xbf16> to vector<8x288xbf16>
    %55 = vector.extract_strided_slice %34 {offsets = [0, 40], sizes = [4, 8], strides = [1, 1]} : vector<4x72xbf16> to vector<4x8xbf16>
    %cst_27 = arith.constant dense<0.000000e+00> : vector<4x288xf32>
    %56 = tpu.matmul %55, %54, %cst_27 {dimension_numbers = #tpu.dot_dimension_numbers<[1], [0], [0], [1], [0, 0, 1, 1], [], []>} : vector<4x8xbf16>, vector<8x288xbf16>, vector<4x288xf32> -> vector<4x288xf32>
    %57 = arith.addf %53, %56 : vector<4x288xf32>
    %58 = vector.extract_strided_slice %23 {offsets = [0, 36], sizes = [8, 288], strides = [1, 1]} : vector<8x326xbf16> to vector<8x288xbf16>
    %59 = vector.extract_strided_slice %34 {offsets = [0, 48], sizes = [4, 8], strides = [1, 1]} : vector<4x72xbf16> to vector<4x8xbf16>
    %cst_28 = arith.constant dense<0.000000e+00> : vector<4x288xf32>
    %60 = tpu.matmul %59, %58, %cst_28 {dimension_numbers = #tpu.dot_dimension_numbers<[1], [0], [0], [1], [0, 0, 1, 1], [], []>} : vector<4x8xbf16>, vector<8x288xbf16>, vector<4x288xf32> -> vector<4x288xf32>
    %61 = arith.addf %57, %60 : vector<4x288xf32>
    %62 = vector.extract_strided_slice %23 {offsets = [0, 37], sizes = [8, 288], strides = [1, 1]} : vector<8x326xbf16> to vector<8x288xbf16>
    %63 = vector.extract_strided_slice %34 {offsets = [0, 56], sizes = [4, 8], strides = [1, 1]} : vector<4x72xbf16> to vector<4x8xbf16>
    %cst_29 = arith.constant dense<0.000000e+00> : vector<4x288xf32>
    %64 = tpu.matmul %63, %62, %cst_29 {dimension_numbers = #tpu.dot_dimension_numbers<[1], [0], [0], [1], [0, 0, 1, 1], [], []>} : vector<4x8xbf16>, vector<8x288xbf16>, vector<4x288xf32> -> vector<4x288xf32>
    %65 = arith.addf %61, %64 : vector<4x288xf32>
    %66 = vector.extract_strided_slice %23 {offsets = [0, 38], sizes = [8, 288], strides = [1, 1]} : vector<8x326xbf16> to vector<8x288xbf16>
    %67 = vector.extract_strided_slice %34 {offsets = [0, 64], sizes = [4, 8], strides = [1, 1]} : vector<4x72xbf16> to vector<4x8xbf16>
    %cst_30 = arith.constant dense<0.000000e+00> : vector<4x288xf32>
    %68 = tpu.matmul %67, %66, %cst_30 {dimension_numbers = #tpu.dot_dimension_numbers<[1], [0], [0], [1], [0, 0, 1, 1], [], []>} : vector<4x8xbf16>, vector<8x288xbf16>, vector<4x288xf32> -> vector<4x288xf32>
    %69 = arith.addf %65, %68 : vector<4x288xf32>
    %70 = vector.broadcast %33 : vector<4x1xf32> to vector<4x288xf32>
    %71 = arith.addf %69, %70 : vector<4x288xf32>
    %cst_31 = arith.constant 0.000000e+00 : f32
    %72 = vector.broadcast %cst_31 : f32 to vector<4x288xf32>
    %73 = arith.maximumf %71, %72 : vector<4x288xf32>
    %cst_32 = arith.constant 0.000000e+00 : f32
    %74 = vector.shape_cast %18 : vector<1x288xi1> to vector<1x288xi1>
    %75 = vector.broadcast %74 : vector<1x288xi1> to vector<4x288xi1>
    %76 = vector.broadcast %cst_32 : f32 to vector<4x288xf32>
    %77 = arith.select %75, %73, %76 : vector<4x288xi1>, vector<4x288xf32>
    %78 = arith.truncf %77 : vector<4x288xf32> to vector<4x288xbf16>
    %c0_33 = arith.constant 0 : index
    %c19 = arith.constant 19 : index
    %79 = vector.load %arg11[%c0_33, %c19] : memref<8x326xbf16, #tpu.memory_space<vmem>>, vector<4x288xbf16>
    tpu.vector_store %arg11[%c0_33, %c19], %78 {strides = array<i32>} : memref<8x326xbf16, #tpu.memory_space<vmem>>, vector<4x288xbf16>,
    %c0_34 = arith.constant 0 : index
    %c0_35 = arith.constant 0 : index
    %80 = vector.load %arg11[%c0_34, %c0_35] : memref<8x326xbf16, #tpu.memory_space<vmem>>, vector<8x326xbf16>
    %c1 = arith.constant 1 : index
    %c0_36 = arith.constant 0 : index
    %c0_37 = arith.constant 0 : index
    %81 = vector.load %arg9[%c1, %c0_36, %c0_37] : memref<3x4x1xf32, #tpu.memory_space<vmem>>, vector<1x4x1xf32>
    %82 = vector.shape_cast %81 : vector<1x4x1xf32> to vector<4x1xf32>
    %c0_38 = arith.constant 0 : index
    %c0_39 = arith.constant 0 : index
    %83 = vector.load %arg7[%c0_38, %c0_39] : memref<4x72xbf16, #tpu.memory_space<vmem>>, vector<4x72xbf16>
    %84 = vector.extract_strided_slice %80 {offsets = [0, 0], sizes = [8, 288], strides = [1, 1]} : vector<8x326xbf16> to vector<8x288xbf16>
    %85 = vector.extract_strided_slice %83 {offsets = [0, 0], sizes = [4, 8], strides = [1, 1]} : vector<4x72xbf16> to vector<4x8xbf16>
    %cst_40 = arith.constant dense<0.000000e+00> : vector<4x288xf32>
    %86 = tpu.matmul %85, %84, %cst_40 {dimension_numbers = #tpu.dot_dimension_numbers<[1], [0], [0], [1], [0, 0, 1, 1], [], []>} : vector<4x8xbf16>, vector<8x288xbf16>, vector<4x288xf32> -> vector<4x288xf32>
    %87 = vector.extract_strided_slice %80 {offsets = [0, 1], sizes = [8, 288], strides = [1, 1]} : vector<8x326xbf16> to vector<8x288xbf16>
    %88 = vector.extract_strided_slice %83 {offsets = [0, 8], sizes = [4, 8], strides = [1, 1]} : vector<4x72xbf16> to vector<4x8xbf16>
    %cst_41 = arith.constant dense<0.000000e+00> : vector<4x288xf32>
    %89 = tpu.matmul %88, %87, %cst_41 {dimension_numbers = #tpu.dot_dimension_numbers<[1], [0], [0], [1], [0, 0, 1, 1], [], []>} : vector<4x8xbf16>, vector<8x288xbf16>, vector<4x288xf32> -> vector<4x288xf32>
    %90 = arith.addf %86, %89 : vector<4x288xf32>
    %91 = vector.extract_strided_slice %80 {offsets = [0, 2], sizes = [8, 288], strides = [1, 1]} : vector<8x326xbf16> to vector<8x288xbf16>
    %92 = vector.extract_strided_slice %83 {offsets = [0, 16], sizes = [4, 8], strides = [1, 1]} : vector<4x72xbf16> to vector<4x8xbf16>
    %cst_42 = arith.constant dense<0.000000e+00> : vector<4x288xf32>
    %93 = tpu.matmul %92, %91, %cst_42 {dimension_numbers = #tpu.dot_dimension_numbers<[1], [0], [0], [1], [0, 0, 1, 1], [], []>} : vector<4x8xbf16>, vector<8x288xbf16>, vector<4x288xf32> -> vector<4x288xf32>
    %94 = arith.addf %90, %93 : vector<4x288xf32>
    %95 = vector.extract_strided_slice %80 {offsets = [0, 18], sizes = [8, 288], strides = [1, 1]} : vector<8x326xbf16> to vector<8x288xbf16>
    %96 = vector.extract_strided_slice %83 {offsets = [0, 24], sizes = [4, 8], strides = [1, 1]} : vector<4x72xbf16> to vector<4x8xbf16>
    %cst_43 = arith.constant dense<0.000000e+00> : vector<4x288xf32>
    %97 = tpu.matmul %96, %95, %cst_43 {dimension_numbers = #tpu.dot_dimension_numbers<[1], [0], [0], [1], [0, 0, 1, 1], [], []>} : vector<4x8xbf16>, vector<8x288xbf16>, vector<4x288xf32> -> vector<4x288xf32>
    %98 = arith.addf %94, %97 : vector<4x288xf32>
    %99 = vector.extract_strided_slice %80 {offsets = [0, 19], sizes = [8, 288], strides = [1, 1]} : vector<8x326xbf16> to vector<8x288xbf16>
    %100 = vector.extract_strided_slice %83 {offsets = [0, 32], sizes = [4, 8], strides = [1, 1]} : vector<4x72xbf16> to vector<4x8xbf16>
    %cst_44 = arith.constant dense<0.000000e+00> : vector<4x288xf32>
    %101 = tpu.matmul %100, %99, %cst_44 {dimension_numbers = #tpu.dot_dimension_numbers<[1], [0], [0], [1], [0, 0, 1, 1], [], []>} : vector<4x8xbf16>, vector<8x288xbf16>, vector<4x288xf32> -> vector<4x288xf32>
    %102 = arith.addf %98, %101 : vector<4x288xf32>
    %103 = vector.extract_strided_slice %80 {offsets = [0, 20], sizes = [8, 288], strides = [1, 1]} : vector<8x326xbf16> to vector<8x288xbf16>
    %104 = vector.extract_strided_slice %83 {offsets = [0, 40], sizes = [4, 8], strides = [1, 1]} : vector<4x72xbf16> to vector<4x8xbf16>
    %cst_45 = arith.constant dense<0.000000e+00> : vector<4x288xf32>
    %105 = tpu.matmul %104, %103, %cst_45 {dimension_numbers = #tpu.dot_dimension_numbers<[1], [0], [0], [1], [0, 0, 1, 1], [], []>} : vector<4x8xbf16>, vector<8x288xbf16>, vector<4x288xf32> -> vector<4x288xf32>
    %106 = arith.addf %102, %105 : vector<4x288xf32>
    %107 = vector.extract_strided_slice %80 {offsets = [0, 36], sizes = [8, 288], strides = [1, 1]} : vector<8x326xbf16> to vector<8x288xbf16>
    %108 = vector.extract_strided_slice %83 {offsets = [0, 48], sizes = [4, 8], strides = [1, 1]} : vector<4x72xbf16> to vector<4x8xbf16>
    %cst_46 = arith.constant dense<0.000000e+00> : vector<4x288xf32>
    %109 = tpu.matmul %108, %107, %cst_46 {dimension_numbers = #tpu.dot_dimension_numbers<[1], [0], [0], [1], [0, 0, 1, 1], [], []>} : vector<4x8xbf16>, vector<8x288xbf16>, vector<4x288xf32> -> vector<4x288xf32>
    %110 = arith.addf %106, %109 : vector<4x288xf32>
    %111 = vector.extract_strided_slice %80 {offsets = [0, 37], sizes = [8, 288], strides = [1, 1]} : vector<8x326xbf16> to vector<8x288xbf16>
    %112 = vector.extract_strided_slice %83 {offsets = [0, 56], sizes = [4, 8], strides = [1, 1]} : vector<4x72xbf16> to vector<4x8xbf16>
    %cst_47 = arith.constant dense<0.000000e+00> : vector<4x288xf32>
    %113 = tpu.matmul %112, %111, %cst_47 {dimension_numbers = #tpu.dot_dimension_numbers<[1], [0], [0], [1], [0, 0, 1, 1], [], []>} : vector<4x8xbf16>, vector<8x288xbf16>, vector<4x288xf32> -> vector<4x288xf32>
    %114 = arith.addf %110, %113 : vector<4x288xf32>
    %115 = vector.extract_strided_slice %80 {offsets = [0, 38], sizes = [8, 288], strides = [1, 1]} : vector<8x326xbf16> to vector<8x288xbf16>
    %116 = vector.extract_strided_slice %83 {offsets = [0, 64], sizes = [4, 8], strides = [1, 1]} : vector<4x72xbf16> to vector<4x8xbf16>
    %cst_48 = arith.constant dense<0.000000e+00> : vector<4x288xf32>
    %117 = tpu.matmul %116, %115, %cst_48 {dimension_numbers = #tpu.dot_dimension_numbers<[1], [0], [0], [1], [0, 0, 1, 1], [], []>} : vector<4x8xbf16>, vector<8x288xbf16>, vector<4x288xf32> -> vector<4x288xf32>
    %118 = arith.addf %114, %117 : vector<4x288xf32>
    %119 = vector.broadcast %82 : vector<4x1xf32> to vector<4x288xf32>
    %120 = arith.addf %118, %119 : vector<4x288xf32>
    %cst_49 = arith.constant 0.000000e+00 : f32
    %121 = vector.broadcast %cst_49 : f32 to vector<4x288xf32>
    %122 = arith.maximumf %120, %121 : vector<4x288xf32>
    %cst_50 = arith.constant 0.000000e+00 : f32
    %123 = vector.shape_cast %18 : vector<1x288xi1> to vector<1x288xi1>
    %124 = vector.broadcast %123 : vector<1x288xi1> to vector<4x288xi1>
    %125 = vector.broadcast %cst_50 : f32 to vector<4x288xf32>
    %126 = arith.select %124, %122, %125 : vector<4x288xi1>, vector<4x288xf32>
    %127 = arith.truncf %126 : vector<4x288xf32> to vector<4x288xbf16>
    %c0_51 = arith.constant 0 : index
    %c19_52 = arith.constant 19 : index
    %128 = vector.load %arg11[%c0_51, %c19_52] : memref<8x326xbf16, #tpu.memory_space<vmem>>, vector<4x288xbf16>
    tpu.vector_store %arg11[%c0_51, %c19_52], %127 {strides = array<i32>} : memref<8x326xbf16, #tpu.memory_space<vmem>>, vector<4x288xbf16>,
    %c0_53 = arith.constant 0 : index
    %c0_54 = arith.constant 0 : index
    %129 = vector.load %arg11[%c0_53, %c0_54] : memref<8x326xbf16, #tpu.memory_space<vmem>>, vector<4x326xbf16>
    %c2 = arith.constant 2 : index
    %c0_55 = arith.constant 0 : index
    %c0_56 = arith.constant 0 : index
    %130 = vector.load %arg9[%c2, %c0_55, %c0_56] : memref<3x4x1xf32, #tpu.memory_space<vmem>>, vector<1x4x1xf32>
    %131 = vector.shape_cast %130 : vector<1x4x1xf32> to vector<4x1xf32>
    %c0_57 = arith.constant 0 : index
    %c0_58 = arith.constant 0 : index
    %132 = vector.load %arg8[%c0_57, %c0_58] : memref<4x36xbf16, #tpu.memory_space<vmem>>, vector<4x36xbf16>
    %133 = vector.extract_strided_slice %129 {offsets = [0, 0], sizes = [4, 288], strides = [1, 1]} : vector<4x326xbf16> to vector<4x288xbf16>
    %134 = vector.extract_strided_slice %132 {offsets = [0, 0], sizes = [4, 4], strides = [1, 1]} : vector<4x36xbf16> to vector<4x4xbf16>
    %cst_59 = arith.constant dense<0.000000e+00> : vector<4x288xf32>
    %135 = tpu.matmul %134, %133, %cst_59 {dimension_numbers = #tpu.dot_dimension_numbers<[1], [0], [0], [1], [0, 0, 1, 1], [], []>} : vector<4x4xbf16>, vector<4x288xbf16>, vector<4x288xf32> -> vector<4x288xf32>
    %136 = vector.extract_strided_slice %129 {offsets = [0, 1], sizes = [4, 288], strides = [1, 1]} : vector<4x326xbf16> to vector<4x288xbf16>
    %137 = vector.extract_strided_slice %132 {offsets = [0, 4], sizes = [4, 4], strides = [1, 1]} : vector<4x36xbf16> to vector<4x4xbf16>
    %cst_60 = arith.constant dense<0.000000e+00> : vector<4x288xf32>
    %138 = tpu.matmul %137, %136, %cst_60 {dimension_numbers = #tpu.dot_dimension_numbers<[1], [0], [0], [1], [0, 0, 1, 1], [], []>} : vector<4x4xbf16>, vector<4x288xbf16>, vector<4x288xf32> -> vector<4x288xf32>
    %139 = arith.addf %135, %138 : vector<4x288xf32>
    %140 = vector.extract_strided_slice %129 {offsets = [0, 2], sizes = [4, 288], strides = [1, 1]} : vector<4x326xbf16> to vector<4x288xbf16>
    %141 = vector.extract_strided_slice %132 {offsets = [0, 8], sizes = [4, 4], strides = [1, 1]} : vector<4x36xbf16> to vector<4x4xbf16>
    %cst_61 = arith.constant dense<0.000000e+00> : vector<4x288xf32>
    %142 = tpu.matmul %141, %140, %cst_61 {dimension_numbers = #tpu.dot_dimension_numbers<[1], [0], [0], [1], [0, 0, 1, 1], [], []>} : vector<4x4xbf16>, vector<4x288xbf16>, vector<4x288xf32> -> vector<4x288xf32>
    %143 = arith.addf %139, %142 : vector<4x288xf32>
    %144 = vector.extract_strided_slice %129 {offsets = [0, 18], sizes = [4, 288], strides = [1, 1]} : vector<4x326xbf16> to vector<4x288xbf16>
    %145 = vector.extract_strided_slice %132 {offsets = [0, 12], sizes = [4, 4], strides = [1, 1]} : vector<4x36xbf16> to vector<4x4xbf16>
    %cst_62 = arith.constant dense<0.000000e+00> : vector<4x288xf32>
    %146 = tpu.matmul %145, %144, %cst_62 {dimension_numbers = #tpu.dot_dimension_numbers<[1], [0], [0], [1], [0, 0, 1, 1], [], []>} : vector<4x4xbf16>, vector<4x288xbf16>, vector<4x288xf32> -> vector<4x288xf32>
    %147 = arith.addf %143, %146 : vector<4x288xf32>
    %148 = vector.extract_strided_slice %129 {offsets = [0, 19], sizes = [4, 288], strides = [1, 1]} : vector<4x326xbf16> to vector<4x288xbf16>
    %149 = vector.extract_strided_slice %132 {offsets = [0, 16], sizes = [4, 4], strides = [1, 1]} : vector<4x36xbf16> to vector<4x4xbf16>
    %cst_63 = arith.constant dense<0.000000e+00> : vector<4x288xf32>
    %150 = tpu.matmul %149, %148, %cst_63 {dimension_numbers = #tpu.dot_dimension_numbers<[1], [0], [0], [1], [0, 0, 1, 1], [], []>} : vector<4x4xbf16>, vector<4x288xbf16>, vector<4x288xf32> -> vector<4x288xf32>
    %151 = arith.addf %147, %150 : vector<4x288xf32>
    %152 = vector.extract_strided_slice %129 {offsets = [0, 20], sizes = [4, 288], strides = [1, 1]} : vector<4x326xbf16> to vector<4x288xbf16>
    %153 = vector.extract_strided_slice %132 {offsets = [0, 20], sizes = [4, 4], strides = [1, 1]} : vector<4x36xbf16> to vector<4x4xbf16>
    %cst_64 = arith.constant dense<0.000000e+00> : vector<4x288xf32>
    %154 = tpu.matmul %153, %152, %cst_64 {dimension_numbers = #tpu.dot_dimension_numbers<[1], [0], [0], [1], [0, 0, 1, 1], [], []>} : vector<4x4xbf16>, vector<4x288xbf16>, vector<4x288xf32> -> vector<4x288xf32>
    %155 = arith.addf %151, %154 : vector<4x288xf32>
    %156 = vector.extract_strided_slice %129 {offsets = [0, 36], sizes = [4, 288], strides = [1, 1]} : vector<4x326xbf16> to vector<4x288xbf16>
    %157 = vector.extract_strided_slice %132 {offsets = [0, 24], sizes = [4, 4], strides = [1, 1]} : vector<4x36xbf16> to vector<4x4xbf16>
    %cst_65 = arith.constant dense<0.000000e+00> : vector<4x288xf32>
    %158 = tpu.matmul %157, %156, %cst_65 {dimension_numbers = #tpu.dot_dimension_numbers<[1], [0], [0], [1], [0, 0, 1, 1], [], []>} : vector<4x4xbf16>, vector<4x288xbf16>, vector<4x288xf32> -> vector<4x288xf32>
    %159 = arith.addf %155, %158 : vector<4x288xf32>
    %160 = vector.extract_strided_slice %129 {offsets = [0, 37], sizes = [4, 288], strides = [1, 1]} : vector<4x326xbf16> to vector<4x288xbf16>
    %161 = vector.extract_strided_slice %132 {offsets = [0, 28], sizes = [4, 4], strides = [1, 1]} : vector<4x36xbf16> to vector<4x4xbf16>
    %cst_66 = arith.constant dense<0.000000e+00> : vector<4x288xf32>
    %162 = tpu.matmul %161, %160, %cst_66 {dimension_numbers = #tpu.dot_dimension_numbers<[1], [0], [0], [1], [0, 0, 1, 1], [], []>} : vector<4x4xbf16>, vector<4x288xbf16>, vector<4x288xf32> -> vector<4x288xf32>
    %163 = arith.addf %159, %162 : vector<4x288xf32>
    %164 = vector.extract_strided_slice %129 {offsets = [0, 38], sizes = [4, 288], strides = [1, 1]} : vector<4x326xbf16> to vector<4x288xbf16>
    %165 = vector.extract_strided_slice %132 {offsets = [0, 32], sizes = [4, 4], strides = [1, 1]} : vector<4x36xbf16> to vector<4x4xbf16>
    %cst_67 = arith.constant dense<0.000000e+00> : vector<4x288xf32>
    %166 = tpu.matmul %165, %164, %cst_67 {dimension_numbers = #tpu.dot_dimension_numbers<[1], [0], [0], [1], [0, 0, 1, 1], [], []>} : vector<4x4xbf16>, vector<4x288xbf16>, vector<4x288xf32> -> vector<4x288xf32>
    %167 = arith.addf %163, %166 : vector<4x288xf32>
    %168 = vector.broadcast %131 : vector<4x1xf32> to vector<4x288xf32>
    %169 = arith.addf %167, %168 : vector<4x288xf32>
    %cst_68 = arith.constant 0.000000e+00 : f32
    %170 = vector.broadcast %cst_68 : f32 to vector<4x288xf32>
    %171 = arith.maximumf %169, %170 : vector<4x288xf32>
    %172 = arith.truncf %171 : vector<4x288xf32> to vector<4x288xbf16>
    %c0_69 = arith.constant 0 : index
    %c0_70 = arith.constant 0 : index
    %173 = vector.load %arg5[%c0_69, %c0_70] : memref<288x256xbf16, #tpu.memory_space<vmem>>, vector<288x256xbf16>
    %cst_71 = arith.constant dense<0.000000e+00> : vector<4x256xf32>
    %174 = tpu.matmul %172, %173, %cst_71 {dimension_numbers = #tpu.dot_dimension_numbers<[1], [0], [0], [1], [0, 0, 1, 1], [], []>} : vector<4x288xbf16>, vector<288x256xbf16>, vector<4x256xf32> -> vector<4x256xf32>
    %c0_72 = arith.constant 0 : index
    %c0_73 = arith.constant 0 : index
    %c0_74 = arith.constant 0 : index
    %175 = vector.load %arg10[%c0_72, %c0_73, %c0_74] : memref<1x4x256xf32, #tpu.memory_space<vmem>>, vector<1x4x256xf32>
    %176 = vector.shape_cast %175 : vector<1x4x256xf32> to vector<4x256xf32>
    %177 = vector.shape_cast %174 : vector<4x256xf32> to vector<1x4x256xf32>
    tpu.vector_store %arg10[%c0_72, %c0_73, %c0_74], %177 {strides = array<i32>} : memref<1x4x256xf32, #tpu.memory_space<vmem>>, vector<1x4x256xf32>,
    return
  }
  func.func @transform_0(%arg0: i32) -> (i32, i32, i32) {
    %c0_i32 = arith.constant 0 : i32
    %c0_i32_0 = arith.constant 0 : i32
    %c0_i32_1 = arith.constant 0 : i32
    return %arg0, %c0_i32, %c0_i32_0 : i32, i32, i32
  }
  func.func @transform_1(%arg0: i32) -> (i32, i32, i32) {
    %c0_i32 = arith.constant 0 : i32
    %c0_i32_0 = arith.constant 0 : i32
    %c0_i32_1 = arith.constant 0 : i32
    return %arg0, %c0_i32, %c0_i32_0 : i32, i32, i32
  }
  func.func @transform_2(%arg0: i32) -> (i32, i32) {
    %c0_i32 = arith.constant 0 : i32
    %c0_i32_0 = arith.constant 0 : i32
    %c0_i32_1 = arith.constant 0 : i32
    return %c0_i32, %c0_i32_0 : i32, i32
  }
  func.func @transform_3(%arg0: i32) -> (i32, i32) {
    %c0_i32 = arith.constant 0 : i32
    %c0_i32_0 = arith.constant 0 : i32
    %c0_i32_1 = arith.constant 0 : i32
    return %c0_i32, %c0_i32_0 : i32, i32
  }
  func.func @transform_4(%arg0: i32) -> (i32, i32) {
    %c0_i32 = arith.constant 0 : i32
    %c0_i32_0 = arith.constant 0 : i32
    %c0_i32_1 = arith.constant 0 : i32
    return %c0_i32, %c0_i32_0 : i32, i32
  }
  func.func @transform_5(%arg0: i32) -> (i32, i32) {
    %c0_i32 = arith.constant 0 : i32
    %c0_i32_0 = arith.constant 0 : i32
    %c0_i32_1 = arith.constant 0 : i32
    return %c0_i32, %c0_i32_0 : i32, i32
  }
  func.func @transform_6(%arg0: i32) -> (i32, i32) {
    %c0_i32 = arith.constant 0 : i32
    %c0_i32_0 = arith.constant 0 : i32
    %c0_i32_1 = arith.constant 0 : i32
    return %c0_i32, %c0_i32_0 : i32, i32
  }
  func.func @transform_7(%arg0: i32) -> (i32, i32) {
    %c0_i32 = arith.constant 0 : i32
    %c0_i32_0 = arith.constant 0 : i32
    %c0_i32_1 = arith.constant 0 : i32
    return %c0_i32, %c0_i32_0 : i32, i32
  }
  func.func @transform_8(%arg0: i32) -> (i32, i32, i32) {
    %c0_i32 = arith.constant 0 : i32
    %c0_i32_0 = arith.constant 0 : i32
    %c0_i32_1 = arith.constant 0 : i32
    %c0_i32_2 = arith.constant 0 : i32
    return %c0_i32, %c0_i32_0, %c0_i32_1 : i32, i32, i32
  }
  func.func @transform_9(%arg0: i32) -> (i32, i32, i32) {
    %c0_i32 = arith.constant 0 : i32
    %c0_i32_0 = arith.constant 0 : i32
    %c0_i32_1 = arith.constant 0 : i32
    return %arg0, %c0_i32, %c0_i32_0 : i32, i32, i32
  }
}

</mosaic_0001>

<llo_original>
// kernel: decoder_block_forward.1
$region0: #{decoder_block_forward.1}
  #allocation0 [shape = 'u32[]', space=smem, size = 0x4, offset = 0x4, fixed_abs, tag = 'smem constant byte address 0x4 - core index']
  #allocation1 [shape = 'u32[72,128]{1,0:T(1,128)}', space=vmem, size = 0x9000, scoped, tag = 'internal scratch']
  #allocation2 [shape = 'bf16[8,326]{1,0:T(8,128)(2,1)}', space=vmem, size = 0x1800, scoped, tag = 'scratch operand']
  %s0 = inlined_call_operand.vmem [shape: bf16[2,8,64], index: 0, kind: input, shape index: {}]
  %s1 = inlined_call_operand.vmem [shape: bf16[2,4,256], index: 1, kind: input, shape index: {}]
  %s2 = inlined_call_operand.hbm [shape: bf16[64,326], index: 2, kind: input, shape index: {}]
  %s3 = inlined_call_operand.vmem [shape: bf16[256,326], index: 3, kind: input, shape index: {}]
  %s4 = inlined_call_operand.hbm [shape: bf16[288,256], index: 4, kind: input, shape index: {}]
  %s5 = inlined_call_operand.vmem [shape: bf16[4,72], index: 5, kind: input, shape index: {}]
  %s6 = inlined_call_operand.vmem [shape: bf16[4,72], index: 6, kind: input, shape index: {}]
  %s7 = inlined_call_operand.vmem [shape: bf16[4,36], index: 7, kind: input, shape index: {}]
  %s8 = inlined_call_operand.vmem [shape: f32[3,4,1], index: 8, kind: input, shape index: {}]
  %s9 = inlined_call_operand.vmem [shape: f32[2,4,256], index: 9, kind: output, shape index: {}]
  %s10 = sld [smem:[#allocation0]]
  $region77: #{decoder_block_forward.1} parent=0
    _
  %s12 = ssub.s32 1, %s10
  %s13 = scalar_select 0, %s12, %s10
  $region1: #{decoder_block_forward.1} parent=0
    #allocation3 [shape = 'u8[49152]{0}', space=vmem, size = 0xc000, scoped, tag = 'input window, operand 2, single buffered']
    #allocation4 [shape = 's32[2]{0}', space=sflag, size = 0x8, scoped, tag = 'scoped memory for decoder_block_forward.1']
    #allocation5 [shape = 'u8[147456]{0}', space=vmem, size = 0x24000, scoped, tag = 'input window, operand 4, single buffered']
    #allocation6 [shape = 's32[1]{0}', space=sflag, size = 0x4, scoped, tag = 'scoped memory for decoder_block_forward.1']
    %14 = vsyncpa [#allocation4], 0
    %15 = vsyncpa [#allocation6], 0
    loop: start=0, step=1, limit=4
    $region2: #{decoder_block_forward.1} parent=1 // loop_pre_header
      _
    $region3: #{decoder_block_forward.1} parent=1 // loop_header
      %s17 = sphi 0, %s21
      %p18 = scmp.ge.s32.totalorder %s17, 4
      %s27 = sphi 0, %s29
      %s30 = sphi 0, %s27
      %s31 = sphi 0, %s30
      %s47 = sphi 0, %s31
      %s53 = sphi 0, %s55
      %s56 = sphi 0, %s53
      %s57 = sphi 0, %s56
      %s73 = sphi 0, %s57
      %s77 = sphi 0, %s77
      %s79 = sphi 0, %s77
      %s80 = sphi 0, %s79
      %s94 = sphi 0, %s80
      %s98 = sphi 0, %s98
      %s100 = sphi 0, %s98
      %s101 = sphi 0, %s100
      %s115 = sphi 0, %s101
      %s119 = sphi 0, %s119
      %s121 = sphi 0, %s119
      %s122 = sphi 0, %s121
      %s136 = sphi 0, %s122
      %s140 = sphi 0, %s140
      %s142 = sphi 0, %s140
      %s143 = sphi 0, %s142
      %s157 = sphi 0, %s143
      %s161 = sphi 0, %s161
      %s163 = sphi 0, %s161
      %s164 = sphi 0, %s163
      %s178 = sphi 0, %s164
      %s182 = sphi 0, %s182
      %s184 = sphi 0, %s182
      %s185 = sphi 0, %s184
      %s199 = sphi 0, %s185
      %s203 = sphi 0, %s203
      %s205 = sphi 0, %s203
      %s206 = sphi 0, %s205
      %s220 = sphi 0, %s206
      %s226 = sphi 0, %s228
      %s229 = sphi 0, %s226
      %s230 = sphi 0, %s229
      %s246 = sphi 0, %s230
    $region4: #{decoder_block_forward.1} parent=1 // loop_header_branch
      %20 = sbr.rel (%p18) target = $region8
    $region5: #{decoder_block_forward.1} parent=1 // loop_body
      %s22 = ssub.s32 %s17, 1
      %s23 = ssub.s32 %s17, 2
      %s24 = sadd.s32 %s17, 1
      %s25 = ssub.s32 %s17, %s24
      %p26 = scmp.eq.s32.totalorder %s25, 0
      %s28 = sadd.s32 %s27, 1
      %s29 = scalar_select %p26, %s27, %s28
      %p32 = pneg %p26
      %p33 = scmp.eq.s32.totalorder %s17, 1
      %p34 = por %p32, %p33
      %p35 = scmp.ne.s32.totalorder %s27, %s30
      %p36 = scmp.eq.s32.totalorder %s17, 0
      %p37 = por %p35, %p36
      %p38 = scmp.ne.s32.totalorder %s27, %s30
      %p39 = scmp.eq.s32.totalorder %s22, 1
      %p40 = por %p38, %p39
      %p41 = scmp.ne.s32.totalorder %s30, %s31
      %p42 = scmp.eq.s32.totalorder %s22, 0
      %p43 = por %p41, %p42
      %p44 = scmp.ne.s32.totalorder %s30, %s31
      %p45 = scmp.eq.s32.totalorder %s23, 1
      %p46 = por %p44, %p45
      %p48 = scmp.ne.s32.totalorder %s31, %s47
      %p49 = scmp.eq.s32.totalorder %s23, 0
      %p50 = por %p48, %p49
      %s51 = ssub.s32 %s17, %s24
      %p52 = scmp.eq.s32.totalorder %s51, 0
      %s54 = sadd.s32 %s53, 1
      %s55 = scalar_select %p52, %s53, %s54
      %p58 = pneg %p52
      %p59 = scmp.eq.s32.totalorder %s17, 1
      %p60 = por %p58, %p59
      %p61 = scmp.ne.s32.totalorder %s53, %s56
      %p62 = scmp.eq.s32.totalorder %s17, 0
      %p63 = por %p61, %p62
      %p64 = scmp.ne.s32.totalorder %s53, %s56
      %p65 = scmp.eq.s32.totalorder %s22, 1
      %p66 = por %p64, %p65
      %p67 = scmp.ne.s32.totalorder %s56, %s57
      %p68 = scmp.eq.s32.totalorder %s22, 0
      %p69 = por %p67, %p68
      %p70 = scmp.ne.s32.totalorder %s56, %s57
      %p71 = scmp.eq.s32.totalorder %s23, 1
      %p72 = por %p70, %p71
      %p74 = scmp.ne.s32.totalorder %s57, %s73
      %p75 = scmp.eq.s32.totalorder %s23, 0
      %p76 = por %p74, %p75
      %s78 = sadd.s32 %s77, 1
      %p81 = scmp.eq.s32.totalorder %s17, 1
      %p82 = scmp.ne.s32.totalorder %s77, %s79
      %p83 = scmp.eq.s32.totalorder %s17, 0
      %p84 = por %p82, %p83
      %p85 = scmp.ne.s32.totalorder %s77, %s79
      %p86 = scmp.eq.s32.totalorder %s22, 1
      %p87 = por %p85, %p86
      %p88 = scmp.ne.s32.totalorder %s79, %s80
      %p89 = scmp.eq.s32.totalorder %s22, 0
      %p90 = por %p88, %p89
      %p91 = scmp.ne.s32.totalorder %s79, %s80
      %p92 = scmp.eq.s32.totalorder %s23, 1
      %p93 = por %p91, %p92
      %p95 = scmp.ne.s32.totalorder %s80, %s94
      %p96 = scmp.eq.s32.totalorder %s23, 0
      %p97 = por %p95, %p96
      %s99 = sadd.s32 %s98, 1
      %p102 = scmp.eq.s32.totalorder %s17, 1
      %p103 = scmp.ne.s32.totalorder %s98, %s100
      %p104 = scmp.eq.s32.totalorder %s17, 0
      %p105 = por %p103, %p104
      %p106 = scmp.ne.s32.totalorder %s98, %s100
      %p107 = scmp.eq.s32.totalorder %s22, 1
      %p108 = por %p106, %p107
      %p109 = scmp.ne.s32.totalorder %s100, %s101
      %p110 = scmp.eq.s32.totalorder %s22, 0
      %p111 = por %p109, %p110
      %p112 = scmp.ne.s32.totalorder %s100, %s101
      %p113 = scmp.eq.s32.totalorder %s23, 1
      %p114 = por %p112, %p113
      %p116 = scmp.ne.s32.totalorder %s101, %s115
      %p117 = scmp.eq.s32.totalorder %s23, 0
      %p118 = por %p116, %p117
      %s120 = sadd.s32 %s119, 1
      %p123 = scmp.eq.s32.totalorder %s17, 1
      %p124 = scmp.ne.s32.totalorder %s119, %s121
      %p125 = scmp.eq.s32.totalorder %s17, 0
      %p126 = por %p124, %p125
      %p127 = scmp.ne.s32.totalorder %s119, %s121
      %p128 = scmp.eq.s32.totalorder %s22, 1
      %p129 = por %p127, %p128
      %p130 = scmp.ne.s32.totalorder %s121, %s122
      %p131 = scmp.eq.s32.totalorder %s22, 0
      %p132 = por %p130, %p131
      %p133 = scmp.ne.s32.totalorder %s121, %s122
      %p134 = scmp.eq.s32.totalorder %s23, 1
      %p135 = por %p133, %p134
      %p137 = scmp.ne.s32.totalorder %s122, %s136
      %p138 = scmp.eq.s32.totalorder %s23, 0
      %p139 = por %p137, %p138
      %s141 = sadd.s32 %s140, 1
      %p144 = scmp.eq.s32.totalorder %s17, 1
      %p145 = scmp.ne.s32.totalorder %s140, %s142
      %p146 = scmp.eq.s32.totalorder %s17, 0
      %p147 = por %p145, %p146
      %p148 = scmp.ne.s32.totalorder %s140, %s142
      %p149 = scmp.eq.s32.totalorder %s22, 1
      %p150 = por %p148, %p149
      %p151 = scmp.ne.s32.totalorder %s142, %s143
      %p152 = scmp.eq.s32.totalorder %s22, 0
      %p153 = por %p151, %p152
      %p154 = scmp.ne.s32.totalorder %s142, %s143
      %p155 = scmp.eq.s32.totalorder %s23, 1
      %p156 = por %p154, %p155
      %p158 = scmp.ne.s32.totalorder %s143, %s157
      %p159 = scmp.eq.s32.totalorder %s23, 0
      %p160 = por %p158, %p159
      %s162 = sadd.s32 %s161, 1
      %p165 = scmp.eq.s32.totalorder %s17, 1
      %p166 = scmp.ne.s32.totalorder %s161, %s163
      %p167 = scmp.eq.s32.totalorder %s17, 0
      %p168 = por %p166, %p167
      %p169 = scmp.ne.s32.totalorder %s161, %s163
      %p170 = scmp.eq.s32.totalorder %s22, 1
      %p171 = por %p169, %p170
      %p172 = scmp.ne.s32.totalorder %s163, %s164
      %p173 = scmp.eq.s32.totalorder %s22, 0
      %p174 = por %p172, %p173
      %p175 = scmp.ne.s32.totalorder %s163, %s164
      %p176 = scmp.eq.s32.totalorder %s23, 1
      %p177 = por %p175, %p176
      %p179 = scmp.ne.s32.totalorder %s164, %s178
      %p180 = scmp.eq.s32.totalorder %s23, 0
      %p181 = por %p179, %p180
      %s183 = sadd.s32 %s182, 1
      %p186 = scmp.eq.s32.totalorder %s17, 1
      %p187 = scmp.ne.s32.totalorder %s182, %s184
      %p188 = scmp.eq.s32.totalorder %s17, 0
      %p189 = por %p187, %p188
      %p190 = scmp.ne.s32.totalorder %s182, %s184
      %p191 = scmp.eq.s32.totalorder %s22, 1
      %p192 = por %p190, %p191
      %p193 = scmp.ne.s32.totalorder %s184, %s185
      %p194 = scmp.eq.s32.totalorder %s22, 0
      %p195 = por %p193, %p194
      %p196 = scmp.ne.s32.totalorder %s184, %s185
      %p197 = scmp.eq.s32.totalorder %s23, 1
      %p198 = por %p196, %p197
      %p200 = scmp.ne.s32.totalorder %s185, %s199
      %p201 = scmp.eq.s32.totalorder %s23, 0
      %p202 = por %p200, %p201
      %s204 = sadd.s32 %s203, 1
      %p207 = scmp.eq.s32.totalorder %s17, 1
      %p208 = scmp.ne.s32.totalorder %s203, %s205
      %p209 = scmp.eq.s32.totalorder %s17, 0
      %p210 = por %p208, %p209
      %p211 = scmp.ne.s32.totalorder %s203, %s205
      %p212 = scmp.eq.s32.totalorder %s22, 1
      %p213 = por %p211, %p212
      %p214 = scmp.ne.s32.totalorder %s205, %s206
      %p215 = scmp.eq.s32.totalorder %s22, 0
      %p216 = por %p214, %p215
      %p217 = scmp.ne.s32.totalorder %s205, %s206
      %p218 = scmp.eq.s32.totalorder %s23, 1
      %p219 = por %p217, %p218
      %p221 = scmp.ne.s32.totalorder %s206, %s220
      %p222 = scmp.eq.s32.totalorder %s23, 0
      %p223 = por %p221, %p222
      %s224 = ssub.s32 %s17, %s24
      %p225 = scmp.eq.s32.totalorder %s224, 0
      %s227 = sadd.s32 %s226, 1
      %s228 = scalar_select %p225, %s226, %s227
      %p231 = pneg %p225
      %p232 = scmp.eq.s32.totalorder %s17, 1
      %p233 = por %p231, %p232
      %p234 = scmp.ne.s32.totalorder %s226, %s229
      %p235 = scmp.eq.s32.totalorder %s17, 0
      %p236 = por %p234, %p235
      %p237 = scmp.ne.s32.totalorder %s226, %s229
      %p238 = scmp.eq.s32.totalorder %s22, 1
      %p239 = por %p237, %p238
      %p240 = scmp.ne.s32.totalorder %s229, %s230
      %p241 = scmp.eq.s32.totalorder %s22, 0
      %p242 = por %p240, %p241
      %p243 = scmp.ne.s32.totalorder %s229, %s230
      %p244 = scmp.eq.s32.totalorder %s23, 1
      %p245 = por %p243, %p244
      %p247 = scmp.ne.s32.totalorder %s230, %s246
      %p248 = scmp.eq.s32.totalorder %s23, 0
      %p249 = por %p247, %p248
      %p250 = scmp.le.s32.totalorder 1, %s17
      %p251 = scmp.lt.s32.totalorder %s17, 3
      %p252 = pnand %p250, %p251
      %p253 = pneg %p252
      // Predicated region
      $region9: #{decoder_block_forward.1} parent=5 // pred_check
        _
      $region10: #{decoder_block_forward.1} parent=5 // pred_check_branch
        %255 = sbr.rel (%p252) target = $region12
      $region11: #{decoder_block_forward.1} parent=5 // pred_region
        %s256 = ssub.s32 %s17, 1
        // Predicated region
        $region13: #{decoder_block_forward.1} parent=11 // pred_check
          %p257 = pneg %p90
        $region14: #{decoder_block_forward.1} parent=11 // pred_check_branch
          %259 = sbr.rel (%p257) target = $region16
        $region15: #{decoder_block_forward.1} parent=11 // pred_region
          %261 = vsyncadd [#allocation4], 0
          %s262 = sshll.u32 %s2, 4
          %s263 = int_to_ptr.hbm [resolvable:$true] %s262
          %s264 = sshll.u32 [#allocation3], 4
          %s265 = int_to_ptr.vmem [resolvable:$true] %s264
          %270 = dma.hbm_to_vmem [thread:$0]  %s263, 1536, %s265, [#allocation4], 192, 192, 12
        $region16: #{decoder_block_forward.1} parent=11 // pred_fallthru
          _
        // Predicated region
        $region17: #{decoder_block_forward.1} parent=11 // pred_check
          %p271 = pneg %p111
        $region18: #{decoder_block_forward.1} parent=11 // pred_check_branch
          %273 = sbr.rel (%p271) target = $region20
        $region19: #{decoder_block_forward.1} parent=11 // pred_region
          _
        $region20: #{decoder_block_forward.1} parent=11 // pred_fallthru
          _
        // Predicated region
        $region21: #{decoder_block_forward.1} parent=11 // pred_check
          %p274 = pneg %p132
        $region22: #{decoder_block_forward.1} parent=11 // pred_check_branch
          %276 = sbr.rel (%p274) target = $region24
        $region23: #{decoder_block_forward.1} parent=11 // pred_region
          %278 = vsyncadd [#allocation6], 0
          %s279 = sshll.u32 %s4, 4
          %s280 = int_to_ptr.hbm [resolvable:$true] %s279
          %s281 = sshll.u32 [#allocation5], 4
          %s282 = int_to_ptr.vmem [resolvable:$true] %s281
          %287 = dma.hbm_to_vmem [thread:$0]  %s280, 4608, %s282, [#allocation6], 128, 128, 8
        $region24: #{decoder_block_forward.1} parent=11 // pred_fallthru
          _
        // Predicated region
        $region25: #{decoder_block_forward.1} parent=11 // pred_check
          %p288 = pneg %p153
        $region26: #{decoder_block_forward.1} parent=11 // pred_check_branch
          %290 = sbr.rel (%p288) target = $region28
        $region27: #{decoder_block_forward.1} parent=11 // pred_region
          _
        $region28: #{decoder_block_forward.1} parent=11 // pred_fallthru
          _
        // Predicated region
        $region29: #{decoder_block_forward.1} parent=11 // pred_check
          %p291 = pneg %p174
        $region30: #{decoder_block_forward.1} parent=11 // pred_check_branch
          %293 = sbr.rel (%p291) target = $region32
        $region31: #{decoder_block_forward.1} parent=11 // pred_region
          _
        $region32: #{decoder_block_forward.1} parent=11 // pred_fallthru
          _
        // Predicated region
        $region33: #{decoder_block_forward.1} parent=11 // pred_check
          %p294 = pneg %p195
        $region34: #{decoder_block_forward.1} parent=11 // pred_check_branch
          %296 = sbr.rel (%p294) target = $region36
        $region35: #{decoder_block_forward.1} parent=11 // pred_region
          _
        $region36: #{decoder_block_forward.1} parent=11 // pred_fallthru
          _
        // Predicated region
        $region37: #{decoder_block_forward.1} parent=11 // pred_check
          %p297 = pneg %p216
        $region38: #{decoder_block_forward.1} parent=11 // pred_check_branch
          %299 = sbr.rel (%p297) target = $region40
        $region39: #{decoder_block_forward.1} parent=11 // pred_region
          _
        $region40: #{decoder_block_forward.1} parent=11 // pred_fallthru
          _
      $region12: #{decoder_block_forward.1} parent=5 // pred_fallthru
        _
      %p300 = scmp.lt.s32.totalorder %s17, 2
      // Predicated region
      $region41: #{decoder_block_forward.1} parent=5 // pred_check
        %p301 = pneg %p300
      $region42: #{decoder_block_forward.1} parent=5 // pred_check_branch
        %303 = sbr.rel (%p301) target = $region44
      $region43: #{decoder_block_forward.1} parent=5 // pred_region
        // Predicated region
        $region45: #{decoder_block_forward.1} parent=43 // pred_check
          %p304 = pneg %p37
        $region46: #{decoder_block_forward.1} parent=43 // pred_check_branch
          %306 = sbr.rel (%p304) target = $region48
        $region47: #{decoder_block_forward.1} parent=43 // pred_region
          %p307 = scmp.lt.s32.totalorder %s17, 1
          %s308 = scalar_select %p307, %s17, 1
          %s309 = smul.addr %s308, 4
          %s310 = scalar_lea.vmem %s0, %s309
        $region48: #{decoder_block_forward.1} parent=43 // pred_fallthru
          _
        // Predicated region
        $region49: #{decoder_block_forward.1} parent=43 // pred_check
          %p311 = pneg %p63
        $region50: #{decoder_block_forward.1} parent=43 // pred_check_branch
          %313 = sbr.rel (%p311) target = $region52
        $region51: #{decoder_block_forward.1} parent=43 // pred_region
          %p314 = scmp.lt.s32.totalorder %s17, 1
          %s315 = scalar_select %p314, %s17, 1
          %s316 = smul.addr %s315, 2
          %s317 = smul.addr %s316, 2
          %s318 = scalar_lea.vmem %s1, %s317
        $region52: #{decoder_block_forward.1} parent=43 // pred_fallthru
          _
      $region44: #{decoder_block_forward.1} parent=5 // pred_fallthru
        _
      %p319 = scmp.le.s32.totalorder 1, %s17
      %p320 = scmp.lt.s32.totalorder %s17, 3
      %p321 = pnand %p319, %p320
      %p322 = pneg %p321
      // Predicated region
      $region53: #{decoder_block_forward.1} parent=5 // pred_check
        _
      $region54: #{decoder_block_forward.1} parent=5 // pred_check_branch
        %324 = sbr.rel (%p321) target = $region56
      $region55: #{decoder_block_forward.1} parent=5 // pred_region
        %s325 = ssub.s32 %s17, 1
        // Predicated region
        $region57: #{decoder_block_forward.1} parent=55 // pred_check
          %p326 = pneg %p90
        $region58: #{decoder_block_forward.1} parent=55 // pred_check_branch
          %328 = sbr.rel (%p326) target = $region60
        $region59: #{decoder_block_forward.1} parent=55 // pred_region
          %330 = dma.done [#allocation4], 1536
        $region60: #{decoder_block_forward.1} parent=55 // pred_fallthru
          _
        // Predicated region
        $region61: #{decoder_block_forward.1} parent=55 // pred_check
          %p331 = pneg %p132
        $region62: #{decoder_block_forward.1} parent=55 // pred_check_branch
          %333 = sbr.rel (%p331) target = $region64
        $region63: #{decoder_block_forward.1} parent=55 // pred_region
          %335 = dma.done [#allocation6], 4608
        $region64: #{decoder_block_forward.1} parent=55 // pred_fallthru
          _
        %p336 = scmp.lt.s32.totalorder %s22, 1
        %s337 = scalar_select %p336, %s22, 1
        %s338 = smul.addr %s337, 4
        %s339 = scalar_lea.vmem %s0, %s338
        %p340 = pneg %p43
        %p341 = pneg %p40
        %p342 = scmp.lt.s32.totalorder %s22, 1
        %s343 = scalar_select %p342, %s22, 1
        %s344 = smul.addr %s343, 2
        %s345 = smul.addr %s344, 2
        %s346 = scalar_lea.vmem %s1, %s345
        %p347 = pneg %p69
        %p348 = pneg %p66
        %p349 = pneg %p90
        %p350 = pneg %p87
        %p351 = pneg %p111
        %p352 = pneg %p108
        %p353 = pneg %p132
        %p354 = pneg %p129
        %p355 = pneg %p153
        %p356 = pneg %p150
        %p357 = pneg %p174
        %p358 = pneg %p171
        %p359 = pneg %p195
        %p360 = pneg %p192
        %p361 = pneg %p216
        %p362 = pneg %p213
        %p363 = pneg %p242
        %p364 = pneg %p239
        %p365 = scmp.lt.s32.totalorder %s22, 1
        %s366 = scalar_select %p365, %s22, 1
        %s367 = smul.addr %s366, 2
        %s368 = smul.addr %s367, 4
        %s369 = scalar_lea.vmem %s9, %s368
        %p370 = scmp.lt.s32.totalorder %s22, 1
        %s371 = scalar_select %p370, %s22, 1
        %s372 = smul.addr %s371, 4
        %s373 = scalar_lea.vmem %s0, %s372
        %p374 = scmp.lt.s32.totalorder %s22, 1
        %s375 = scalar_select %p374, %s22, 1
        %s376 = smul.addr %s375, 2
        %s377 = smul.addr %s376, 2
        %s378 = scalar_lea.vmem %s1, %s377
        %p379 = scmp.lt.s32.totalorder %s22, 1
        %s380 = scalar_select %p379, %s22, 1
        %s381 = smul.addr %s380, 2
        %s382 = smul.addr %s381, 4
        %s383 = scalar_lea.vmem %s9, %s382
        %v385 = vlaneseq
        %v386 = vand.u32 %v385, 127
        %v387 = vadd.s32 %v386, 128
        %v388 = vadd.s32 %v386, 256
        %vm389 = vcmp.lt.s32.totalorder %v386, 0
        %v390 = vsub.s32 0, %v386
        %v391 = vsel %vm389, %v390, %v386
        %v392 = vand.u32 %v391, 65535
        %v393 = vshrl.u32 %v391, 16
        %v395 = vmul.u32 %v392, 14564
        %v396 = vmul.u32 %v392, 58254
        %v397 = vmul.u32 %v393, 14564
        %v398 = vmul.u32 %v393, 58254
        %v399 = vshll.u32 %v396, 16
        %v400 = vshrl.u32 %v396, 16
        %v401 = vshll.u32 %v397, 16
        %v402 = vshrl.u32 %v397, 16
        %vm403 = vc.u32 %v395, %v399
        %v404 = vsel %vm403, 1, 0
        %v405 = vadd.s32 %v395, %v399
        %v406 = vadd.s32 %v398, %v404
        %vm407 = vc.u32 %v405, %v401
        %v408 = vsel %vm407, 1, 0
        %v409 = vadd.s32 %v405, %v401
        %v410 = vadd.s32 %v406, %v408
        %v411 = vadd.s32 %v410, %v400
        %v412 = vadd.s32 %v411, %v402
        %v413 = vshrl.u32 %v412, 4
        %v414 = vmul.u32 %v413, 18
        %v415 = vsub.s32 %v391, %v414
        %v416 = vsub.s32 0, %v415
        %v417 = vsel %vm389, %v416, %v415
        %vm418 = vcmp.lt.s32.totalorder %v387, 0
        %v419 = vsub.s32 0, %v387
        %v420 = vsel %vm418, %v419, %v387
        %v421 = vand.u32 %v420, 65535
        %v422 = vshrl.u32 %v420, 16
        %v424 = vmul.u32 %v421, 14564
        %v425 = vmul.u32 %v421, 58254
        %v426 = vmul.u32 %v422, 14564
        %v427 = vmul.u32 %v422, 58254
        %v428 = vshll.u32 %v425, 16
        %v429 = vshrl.u32 %v425, 16
        %v430 = vshll.u32 %v426, 16
        %v431 = vshrl.u32 %v426, 16
        %vm432 = vc.u32 %v424, %v428
        %v433 = vsel %vm432, 1, 0
        %v434 = vadd.s32 %v424, %v428
        %v435 = vadd.s32 %v427, %v433
        %vm436 = vc.u32 %v434, %v430
        %v437 = vsel %vm436, 1, 0
        %v438 = vadd.s32 %v434, %v430
        %v439 = vadd.s32 %v435, %v437
        %v440 = vadd.s32 %v439, %v429
        %v441 = vadd.s32 %v440, %v431
        %v442 = vshrl.u32 %v441, 4
        %v443 = vmul.u32 %v442, 18
        %v444 = vsub.s32 %v420, %v443
        %v445 = vsub.s32 0, %v444
        %v446 = vsel %vm418, %v445, %v444
        %vm447 = vcmp.lt.s32.totalorder %v388, 0
        %v448 = vsub.s32 0, %v388
        %v449 = vsel %vm447, %v448, %v388
        %v450 = vand.u32 %v449, 65535
        %v451 = vshrl.u32 %v449, 16
        %v453 = vmul.u32 %v450, 14564
        %v454 = vmul.u32 %v450, 58254
        %v455 = vmul.u32 %v451, 14564
        %v456 = vmul.u32 %v451, 58254
        %v457 = vshll.u32 %v454, 16
        %v458 = vshrl.u32 %v454, 16
        %v459 = vshll.u32 %v455, 16
        %v460 = vshrl.u32 %v455, 16
        %vm461 = vc.u32 %v453, %v457
        %v462 = vsel %vm461, 1, 0
        %v463 = vadd.s32 %v453, %v457
        %v464 = vadd.s32 %v456, %v462
        %vm465 = vc.u32 %v463, %v459
        %v466 = vsel %vm465, 1, 0
        %v467 = vadd.s32 %v463, %v459
        %v468 = vadd.s32 %v464, %v466
        %v469 = vadd.s32 %v468, %v458
        %v470 = vadd.s32 %v469, %v460
        %v471 = vshrl.u32 %v470, 4
        %v472 = vmul.u32 %v471, 18
        %v473 = vsub.s32 %v449, %v472
        %v474 = vsub.s32 0, %v473
        %v475 = vsel %vm447, %v474, %v473
        %vm476 = vcmp.ne.s32.totalorder %v417, 0
        %vm477 = vcmp.ne.s32.totalorder %v446, 0
        %vm478 = vcmp.ne.s32.totalorder %v475, 0
        %vm479 = vcmp.lt.s32.totalorder %v417, 0
        %vm480 = vcmp.lt.s32.totalorder %v446, 0
        %vm481 = vcmp.lt.s32.totalorder %v475, 0
        %vm482 = vmand %vm479, %vm476
        %vm483 = vmand %vm480, %vm477
        %vm484 = vmand %vm481, %vm478
        %v485 = vadd.s32 %v417, 18
        %v486 = vadd.s32 %v446, 18
        %v487 = vadd.s32 %v475, 18
        %v488 = vsel %vm482, %v485, %v417
        %v489 = vsel %vm483, %v486, %v446
        %v490 = vsel %vm484, %v487, %v475
        %vm491 = vcmp.lt.s32.totalorder %v488, 16
        %vm492 = vcmp.lt.s32.totalorder %v489, 16
        %vm493 = vcmp.lt.s32.totalorder %v490, 16
        %v494 = vld [vmem:[%s373] sm:$0xf]
        %v495 = vld [vmem:[#allocation3] sm:$0xff]
        %v496 = vld [vmem:[#allocation3 + $0x8] sm:$0xf]
        %v497 = vld [vmem:[#allocation3 + $0xc] sm:$0xff]
        %v498 = vld [vmem:[#allocation3 + $0x14] sm:$0xf]
        %v499 = vld [vmem:[#allocation3 + $0x18] sm:$0xff]
        %v500 = vld [vmem:[#allocation3 + $0x20] sm:$0xf]
        %v501 = vld [vmem:[#allocation3 + $0x24] sm:$0xff]
        %v502 = vld [vmem:[#allocation3 + $0x2c] sm:$0xf]
        %v503 = vld [vmem:[#allocation3 + $0x30] sm:$0xff]
        %v504 = vld [vmem:[#allocation3 + $0x38] sm:$0xf]
        %v505 = vld [vmem:[#allocation3 + $0x3c] sm:$0xff]
        %v506 = vld [vmem:[#allocation3 + $0x44] sm:$0xf]
        %v507 = vld [vmem:[#allocation3 + $0x48] sm:$0xff]
        %v508 = vld [vmem:[#allocation3 + $0x50] sm:$0xf]
        %v509 = vld [vmem:[#allocation3 + $0x54] sm:$0xff]
        %v510 = vld [vmem:[#allocation3 + $0x5c] sm:$0xf]
        %v527 = vunpack.c.l.b16 %v495
        %v528 = vunpack.c.h.b16 %v495
        %v529 = vunpack.c.l.b16 %v496
        %v530 = vunpack.c.l.b16 %v497
        %v531 = vunpack.c.h.b16 %v497
        %v532 = vunpack.c.l.b16 %v498
        %v533 = vunpack.c.l.b16 %v499
        %v534 = vunpack.c.h.b16 %v499
        %v535 = vunpack.c.l.b16 %v500
        %v536 = vunpack.c.l.b16 %v501
        %v537 = vunpack.c.h.b16 %v501
        %v538 = vunpack.c.l.b16 %v502
        %v539 = vunpack.c.l.b16 %v503
        %v540 = vunpack.c.h.b16 %v503
        %v541 = vunpack.c.l.b16 %v504
        %v542 = vunpack.c.l.b16 %v505
        %v543 = vunpack.c.h.b16 %v505
        %v544 = vunpack.c.l.b16 %v506
        %v545 = vunpack.c.l.b16 %v507
        %v546 = vunpack.c.h.b16 %v507
        %v547 = vunpack.c.l.b16 %v508
        %v548 = vunpack.c.l.b16 %v509
        %v549 = vunpack.c.h.b16 %v509
        %v550 = vunpack.c.l.b16 %v510
        %v551 = vpack.c.b16 %v530, %v527
        %v552 = vpack.c.b16 %v531, %v528
        %v553 = vpack.c.b16 %v532, %v529
        %v554 = vpack.c.b16 %v536, %v533
        %v555 = vpack.c.b16 %v537, %v534
        %v556 = vpack.c.b16 %v538, %v535
        %v557 = vpack.c.b16 %v542, %v539
        %v558 = vpack.c.b16 %v543, %v540
        %v559 = vpack.c.b16 %v544, %v541
        %v560 = vpack.c.b16 %v548, %v545
        %v561 = vpack.c.b16 %v549, %v546
        %v562 = vpack.c.b16 %v550, %v547
        %vm575 = vcmask 523264
        %v577 = vsel %vm575, %v494, 0
        %579 = vmatpush.bf16.msra.mxu0 0
        %580 = vmatpush.bf16.msra.mxu0 0
        %581 = vmatpush.bf16.msra.mxu0 0
        %582 = vmatpush.bf16.msra.mxu0 0
        %583 = vmatpush.bf16.msra.mxu0 %v560
        %584 = vmatpush.bf16.msra.mxu0 %v557
        %585 = vmatpush.bf16.msra.mxu0 %v554
        %586 = vmatpush.bf16.msra.mxu0 %v551
        %587 = vmatmul.bf16.gmra.mxu0 %v577
        %v588 = vpop.f32.mrf.mxu0
        %v589 = vadd.f32 0.0, %v588
        %v590 = vpop.f32.mrf.mxu0
        %591 = vdwg.mxu0
        %592 = vmatpush.bf16.msra.mxu0 0
        %593 = vmatpush.bf16.msra.mxu0 0
        %594 = vmatpush.bf16.msra.mxu0 0
        %595 = vmatpush.bf16.msra.mxu0 0
        %596 = vmatpush.bf16.msra.mxu0 %v561
        %597 = vmatpush.bf16.msra.mxu0 %v558
        %598 = vmatpush.bf16.msra.mxu0 %v555
        %599 = vmatpush.bf16.msra.mxu0 %v552
        %600 = vmatmul.bf16.gmra.mxu0 %v577
        %v601 = vpop.f32.mrf.mxu0
        %v602 = vadd.f32 0.0, %v601
        %v603 = vpop.f32.mrf.mxu0
        %604 = vdwg.mxu0
        %605 = vmatpush.bf16.msra.mxu0 0
        %606 = vmatpush.bf16.msra.mxu0 0
        %607 = vmatpush.bf16.msra.mxu0 0
        %608 = vmatpush.bf16.msra.mxu0 0
        %609 = vmatpush.bf16.msra.mxu0 %v562
        %610 = vmatpush.bf16.msra.mxu0 %v559
        %611 = vmatpush.bf16.msra.mxu0 %v556
        %612 = vmatpush.bf16.msra.mxu0 %v553
        %613 = vmatmul.bf16.gmra.mxu0 %v577
        %v614 = vpop.f32.mrf.mxu0
        %v615 = vadd.f32 0.0, %v614
        %v616 = vpop.f32.mrf.mxu0
        %617 = vdwg.mxu0
        %v618 = vpack.c.bf16 %v602, %v589
        %v619 = vpack.c.bf16 %v615, %v615
        %v620 = vld [vmem:[%s378] sm:$0xf]
        %v621 = vld [vmem:[%s3] sm:$0xff]
        %v622 = vld [vmem:[%s3 + $0x8] sm:$0xf]
        %v623 = vld [vmem:[%s3 + $0xc] sm:$0xff]
        %v624 = vld [vmem:[%s3 + $0x14] sm:$0xf]
        %v625 = vld [vmem:[%s3 + $0x18] sm:$0xff]
        %v626 = vld [vmem:[%s3 + $0x20] sm:$0xf]
        %v627 = vld [vmem:[%s3 + $0x24] sm:$0xff]
        %v628 = vld [vmem:[%s3 + $0x2c] sm:$0xf]
        %v629 = vld [vmem:[%s3 + $0x30] sm:$0xff]
        %v630 = vld [vmem:[%s3 + $0x38] sm:$0xf]
        %v631 = vld [vmem:[%s3 + $0x3c] sm:$0xff]
        %v632 = vld [vmem:[%s3 + $0x44] sm:$0xf]
        %v633 = vld [vmem:[%s3 + $0x48] sm:$0xff]
        %v634 = vld [vmem:[%s3 + $0x50] sm:$0xf]
        %v635 = vld [vmem:[%s3 + $0x54] sm:$0xff]
        %v636 = vld [vmem:[%s3 + $0x5c] sm:$0xf]
        %v637 = vld [vmem:[%s3 + $0x60] sm:$0xff]
        %v638 = vld [vmem:[%s3 + $0x68] sm:$0xf]
        %v639 = vld [vmem:[%s3 + $0x6c] sm:$0xff]
        %v640 = vld [vmem:[%s3 + $0x74] sm:$0xf]
        %v641 = vld [vmem:[%s3 + $0x78] sm:$0xff]
        %v642 = vld [vmem:[%s3 + $0x80] sm:$0xf]
        %v643 = vld [vmem:[%s3 + $0x84] sm:$0xff]
        %v644 = vld [vmem:[%s3 + $0x8c] sm:$0xf]
        %v645 = vld [vmem:[%s3 + $0x90] sm:$0xff]
        %v646 = vld [vmem:[%s3 + $0x98] sm:$0xf]
        %v647 = vld [vmem:[%s3 + $0x9c] sm:$0xff]
        %v648 = vld [vmem:[%s3 + $0xa4] sm:$0xf]
        %v649 = vld [vmem:[%s3 + $0xa8] sm:$0xff]
        %v650 = vld [vmem:[%s3 + $0xb0] sm:$0xf]
        %v651 = vld [vmem:[%s3 + $0xb4] sm:$0xff]
        %v652 = vld [vmem:[%s3 + $0xbc] sm:$0xf]
        %v653 = vld [vmem:[%s3 + $0xc0] sm:$0xff]
        %v654 = vld [vmem:[%s3 + $0xc8] sm:$0xf]
        %v655 = vld [vmem:[%s3 + $0xcc] sm:$0xff]
        %v656 = vld [vmem:[%s3 + $0xd4] sm:$0xf]
        %v657 = vld [vmem:[%s3 + $0xd8] sm:$0xff]
        %v658 = vld [vmem:[%s3 + $0xe0] sm:$0xf]
        %v659 = vld [vmem:[%s3 + $0xe4] sm:$0xff]
        %v660 = vld [vmem:[%s3 + $0xec] sm:$0xf]
        %v661 = vld [vmem:[%s3 + $0xf0] sm:$0xff]
        %v662 = vld [vmem:[%s3 + $0xf8] sm:$0xf]
        %v663 = vld [vmem:[%s3 + $0xfc] sm:$0xff]
        %v664 = vld [vmem:[%s3 + $0x104] sm:$0xf]
        %v665 = vld [vmem:[%s3 + $0x108] sm:$0xff]
        %v666 = vld [vmem:[%s3 + $0x110] sm:$0xf]
        %v667 = vld [vmem:[%s3 + $0x114] sm:$0xff]
        %v668 = vld [vmem:[%s3 + $0x11c] sm:$0xf]
        %v669 = vld [vmem:[%s3 + $0x120] sm:$0xff]
        %v670 = vld [vmem:[%s3 + $0x128] sm:$0xf]
        %v671 = vld [vmem:[%s3 + $0x12c] sm:$0xff]
        %v672 = vld [vmem:[%s3 + $0x134] sm:$0xf]
        %v673 = vld [vmem:[%s3 + $0x138] sm:$0xff]
        %v674 = vld [vmem:[%s3 + $0x140] sm:$0xf]
        %v675 = vld [vmem:[%s3 + $0x144] sm:$0xff]
        %v676 = vld [vmem:[%s3 + $0x14c] sm:$0xf]
        %v677 = vld [vmem:[%s3 + $0x150] sm:$0xff]
        %v678 = vld [vmem:[%s3 + $0x158] sm:$0xf]
        %v679 = vld [vmem:[%s3 + $0x15c] sm:$0xff]
        %v680 = vld [vmem:[%s3 + $0x164] sm:$0xf]
        %v681 = vld [vmem:[%s3 + $0x168] sm:$0xff]
        %v682 = vld [vmem:[%s3 + $0x170] sm:$0xf]
        %v683 = vld [vmem:[%s3 + $0x174] sm:$0xff]
        %v684 = vld [vmem:[%s3 + $0x17c] sm:$0xf]
        %686 = vst [vmem:[#allocation1] ss:$4 sm:$0xff] %v620
        %v687 = vld.sshfl [vmem:[#allocation1] sm:$0xff pattern:$0x73625140]
        %v688 = vld.sshfl [vmem:[#allocation1 + $0x8] sm:$0xff pattern:$0x73625140]
        %v755 = vunpack.c.l.b16 %v621
        %v756 = vunpack.c.h.b16 %v621
        %v757 = vunpack.c.l.b16 %v622
        %v758 = vunpack.c.l.b16 %v623
        %v759 = vunpack.c.h.b16 %v623
        %v760 = vunpack.c.l.b16 %v624
        %v761 = vunpack.c.l.b16 %v625
        %v762 = vunpack.c.h.b16 %v625
        %v763 = vunpack.c.l.b16 %v626
        %v764 = vunpack.c.l.b16 %v627
        %v765 = vunpack.c.h.b16 %v627
        %v766 = vunpack.c.l.b16 %v628
        %v767 = vunpack.c.l.b16 %v629
        %v768 = vunpack.c.h.b16 %v629
        %v769 = vunpack.c.l.b16 %v630
        %v770 = vunpack.c.l.b16 %v631
        %v771 = vunpack.c.h.b16 %v631
        %v772 = vunpack.c.l.b16 %v632
        %v773 = vunpack.c.l.b16 %v633
        %v774 = vunpack.c.h.b16 %v633
        %v775 = vunpack.c.l.b16 %v634
        %v776 = vunpack.c.l.b16 %v635
        %v777 = vunpack.c.h.b16 %v635
        %v778 = vunpack.c.l.b16 %v636
        %v779 = vunpack.c.l.b16 %v637
        %v780 = vunpack.c.h.b16 %v637
        %v781 = vunpack.c.l.b16 %v638
        %v782 = vunpack.c.l.b16 %v639
        %v783 = vunpack.c.h.b16 %v639
        %v784 = vunpack.c.l.b16 %v640
        %v785 = vunpack.c.l.b16 %v641
        %v786 = vunpack.c.h.b16 %v641
        %v787 = vunpack.c.l.b16 %v642
        %v788 = vunpack.c.l.b16 %v643
        %v789 = vunpack.c.h.b16 %v643
        %v790 = vunpack.c.l.b16 %v644
        %v791 = vunpack.c.l.b16 %v645
        %v792 = vunpack.c.h.b16 %v645
        %v793 = vunpack.c.l.b16 %v646
        %v794 = vunpack.c.l.b16 %v647
        %v795 = vunpack.c.h.b16 %v647
        %v796 = vunpack.c.l.b16 %v648
        %v797 = vunpack.c.l.b16 %v649
        %v798 = vunpack.c.h.b16 %v649
        %v799 = vunpack.c.l.b16 %v650
        %v800 = vunpack.c.l.b16 %v651
        %v801 = vunpack.c.h.b16 %v651
        %v802 = vunpack.c.l.b16 %v652
        %v803 = vunpack.c.l.b16 %v653
        %v804 = vunpack.c.h.b16 %v653
        %v805 = vunpack.c.l.b16 %v654
        %v806 = vunpack.c.l.b16 %v655
        %v807 = vunpack.c.h.b16 %v655
        %v808 = vunpack.c.l.b16 %v656
        %v809 = vunpack.c.l.b16 %v657
        %v810 = vunpack.c.h.b16 %v657
        %v811 = vunpack.c.l.b16 %v658
        %v812 = vunpack.c.l.b16 %v659
        %v813 = vunpack.c.h.b16 %v659
        %v814 = vunpack.c.l.b16 %v660
        %v815 = vunpack.c.l.b16 %v661
        %v816 = vunpack.c.h.b16 %v661
        %v817 = vunpack.c.l.b16 %v662
        %v818 = vunpack.c.l.b16 %v663
        %v819 = vunpack.c.h.b16 %v663
        %v820 = vunpack.c.l.b16 %v664
        %v821 = vunpack.c.l.b16 %v665
        %v822 = vunpack.c.h.b16 %v665
        %v823 = vunpack.c.l.b16 %v666
        %v824 = vunpack.c.l.b16 %v667
        %v825 = vunpack.c.h.b16 %v667
        %v826 = vunpack.c.l.b16 %v668
        %v827 = vunpack.c.l.b16 %v669
        %v828 = vunpack.c.h.b16 %v669
        %v829 = vunpack.c.l.b16 %v670
        %v830 = vunpack.c.l.b16 %v671
        %v831 = vunpack.c.h.b16 %v671
        %v832 = vunpack.c.l.b16 %v672
        %v833 = vunpack.c.l.b16 %v673
        %v834 = vunpack.c.h.b16 %v673
        %v835 = vunpack.c.l.b16 %v674
        %v836 = vunpack.c.l.b16 %v675
        %v837 = vunpack.c.h.b16 %v675
        %v838 = vunpack.c.l.b16 %v676
        %v839 = vunpack.c.l.b16 %v677
        %v840 = vunpack.c.h.b16 %v677
        %v841 = vunpack.c.l.b16 %v678
        %v842 = vunpack.c.l.b16 %v679
        %v843 = vunpack.c.h.b16 %v679
        %v844 = vunpack.c.l.b16 %v680
        %v845 = vunpack.c.l.b16 %v681
        %v846 = vunpack.c.h.b16 %v681
        %v847 = vunpack.c.l.b16 %v682
        %v848 = vunpack.c.l.b16 %v683
        %v849 = vunpack.c.h.b16 %v683
        %v850 = vunpack.c.l.b16 %v684
        %v851 = vpack.c.b16 %v758, %v755
        %v852 = vpack.c.b16 %v759, %v756
        %v853 = vpack.c.b16 %v760, %v757
        %v854 = vpack.c.b16 %v764, %v761
        %v855 = vpack.c.b16 %v765, %v762
        %v856 = vpack.c.b16 %v766, %v763
        %v857 = vpack.c.b16 %v770, %v767
        %v858 = vpack.c.b16 %v771, %v768
        %v859 = vpack.c.b16 %v772, %v769
        %v860 = vpack.c.b16 %v776, %v773
        %v861 = vpack.c.b16 %v777, %v774
        %v862 = vpack.c.b16 %v778, %v775
        %v863 = vpack.c.b16 %v782, %v779
        %v864 = vpack.c.b16 %v783, %v780
        %v865 = vpack.c.b16 %v784, %v781
        %v866 = vpack.c.b16 %v788, %v785
        %v867 = vpack.c.b16 %v789, %v786
        %v868 = vpack.c.b16 %v790, %v787
        %v869 = vpack.c.b16 %v794, %v791
        %v870 = vpack.c.b16 %v795, %v792
        %v871 = vpack.c.b16 %v796, %v793
        %v872 = vpack.c.b16 %v800, %v797
        %v873 = vpack.c.b16 %v801, %v798
        %v874 = vpack.c.b16 %v802, %v799
        %v875 = vpack.c.b16 %v806, %v803
        %v876 = vpack.c.b16 %v807, %v804
        %v877 = vpack.c.b16 %v808, %v805
        %v878 = vpack.c.b16 %v812, %v809
        %v879 = vpack.c.b16 %v813, %v810
        %v880 = vpack.c.b16 %v814, %v811
        %v881 = vpack.c.b16 %v818, %v815
        %v882 = vpack.c.b16 %v819, %v816
        %v883 = vpack.c.b16 %v820, %v817
        %v884 = vpack.c.b16 %v824, %v821
        %v885 = vpack.c.b16 %v825, %v822
        %v886 = vpack.c.b16 %v826, %v823
        %v887 = vpack.c.b16 %v830, %v827
        %v888 = vpack.c.b16 %v831, %v828
        %v889 = vpack.c.b16 %v832, %v829
        %v890 = vpack.c.b16 %v836, %v833
        %v891 = vpack.c.b16 %v837, %v834
        %v892 = vpack.c.b16 %v838, %v835
        %v893 = vpack.c.b16 %v842, %v839
        %v894 = vpack.c.b16 %v843, %v840
        %v895 = vpack.c.b16 %v844, %v841
        %v896 = vpack.c.b16 %v848, %v845
        %v897 = vpack.c.b16 %v849, %v846
        %v898 = vpack.c.b16 %v850, %v847
        %947 = vmatpush.bf16.msra.mxu0 %v872
        %948 = vmatpush.bf16.msra.mxu0 %v869
        %949 = vmatpush.bf16.msra.mxu0 %v866
        %950 = vmatpush.bf16.msra.mxu0 %v863
        %951 = vmatpush.bf16.msra.mxu0 %v860
        %952 = vmatpush.bf16.msra.mxu0 %v857
        %953 = vmatpush.bf16.msra.mxu0 %v854
        %954 = vmatpush.bf16.msra.mxu0 %v851
        %955 = vmatmul.bf16.gmra.mxu0 %v687
        %v956 = vpop.f32.mrf.mxu0
        %v957 = vadd.f32 0.0, %v956
        %v958 = vpop.f32.mrf.mxu0
        %959 = vdwg.mxu0
        %960 = vmatpush.bf16.msra.mxu0 %v896
        %961 = vmatpush.bf16.msra.mxu0 %v893
        %962 = vmatpush.bf16.msra.mxu0 %v890
        %963 = vmatpush.bf16.msra.mxu0 %v887
        %964 = vmatpush.bf16.msra.mxu0 %v884
        %965 = vmatpush.bf16.msra.mxu0 %v881
        %966 = vmatpush.bf16.msra.mxu0 %v878
        %967 = vmatpush.bf16.msra.mxu0 %v875
        %968 = vmatmul.bf16.gmra.mxu0 %v688
        %v969 = vpop.f32.mrf.mxu0
        %v970 = vadd.f32 %v957, %v969
        %v971 = vpop.f32.mrf.mxu0
        %972 = vdwg.mxu0
        %973 = vmatpush.bf16.msra.mxu0 %v873
        %974 = vmatpush.bf16.msra.mxu0 %v870
        %975 = vmatpush.bf16.msra.mxu0 %v867
        %976 = vmatpush.bf16.msra.mxu0 %v864
        %977 = vmatpush.bf16.msra.mxu0 %v861
        %978 = vmatpush.bf16.msra.mxu0 %v858
        %979 = vmatpush.bf16.msra.mxu0 %v855
        %980 = vmatpush.bf16.msra.mxu0 %v852
        %981 = vmatmul.bf16.gmra.mxu0 %v687
        %v982 = vpop.f32.mrf.mxu0
        %v983 = vadd.f32 0.0, %v982
        %v984 = vpop.f32.mrf.mxu0
        %985 = vdwg.mxu0
        %986 = vmatpush.bf16.msra.mxu0 %v897
        %987 = vmatpush.bf16.msra.mxu0 %v894
        %988 = vmatpush.bf16.msra.mxu0 %v891
        %989 = vmatpush.bf16.msra.mxu0 %v888
        %990 = vmatpush.bf16.msra.mxu0 %v885
        %991 = vmatpush.bf16.msra.mxu0 %v882
        %992 = vmatpush.bf16.msra.mxu0 %v879
        %993 = vmatpush.bf16.msra.mxu0 %v876
        %994 = vmatmul.bf16.gmra.mxu0 %v688
        %v995 = vpop.f32.mrf.mxu0
        %v996 = vadd.f32 %v983, %v995
        %v997 = vpop.f32.mrf.mxu0
        %998 = vdwg.mxu0
        %999 = vmatpush.bf16.msra.mxu0 %v874
        %1000 = vmatpush.bf16.msra.mxu0 %v871
        %1001 = vmatpush.bf16.msra.mxu0 %v868
        %1002 = vmatpush.bf16.msra.mxu0 %v865
        %1003 = vmatpush.bf16.msra.mxu0 %v862
        %1004 = vmatpush.bf16.msra.mxu0 %v859
        %1005 = vmatpush.bf16.msra.mxu0 %v856
        %1006 = vmatpush.bf16.msra.mxu0 %v853
        %1007 = vmatmul.bf16.gmra.mxu0 %v687
        %v1008 = vpop.f32.mrf.mxu0
        %v1009 = vadd.f32 0.0, %v1008
        %v1010 = vpop.f32.mrf.mxu0
        %1011 = vdwg.mxu0
        %1012 = vmatpush.bf16.msra.mxu0 %v898
        %1013 = vmatpush.bf16.msra.mxu0 %v895
        %1014 = vmatpush.bf16.msra.mxu0 %v892
        %1015 = vmatpush.bf16.msra.mxu0 %v889
        %1016 = vmatpush.bf16.msra.mxu0 %v886
        %1017 = vmatpush.bf16.msra.mxu0 %v883
        %1018 = vmatpush.bf16.msra.mxu0 %v880
        %1019 = vmatpush.bf16.msra.mxu0 %v877
        %1020 = vmatmul.bf16.gmra.mxu0 %v688
        %v1021 = vpop.f32.mrf.mxu0
        %v1022 = vadd.f32 %v1009, %v1021
        %v1023 = vpop.f32.mrf.mxu0
        %1024 = vdwg.mxu0
        %v1025 = vpack.c.bf16 %v996, %v970
        %v1026 = vpack.c.bf16 %v1022, %v1022
        %v1029 = vrot.slane %v1025, 6
        %v1030 = vrot.slane %v1026, 6
        %1033 = vst [vmem:[#allocation2] sm:$0xcc] %v1029
        %vm1034 = vcmask 568322
        %1035 = vst.msk [vmem:[#allocation2 + $0x8] sm:$0xc] %vm1034, %v1030
        %1036 = vst [vmem:[#allocation2] sm:$0x33] 0
        %vm1037 = vcmask 566272
        %1038 = vst.msk [vmem:[#allocation2 + $0x8] sm:$0x3] %vm1037, 0
        %v1039 = vld [vmem:[%s8] sm:$0xf]
        %v1040 = vld [vmem:[%s5] sm:$0x3]
        %1042 = vst [vmem:[#allocation1] ss:$4 sm:$0xff] %v1040
        %v1043 = vld.sshfl [vmem:[#allocation1] sm:$0xff pattern:$0x73625140]
        %1045 = vrot.lane.b32.xlu0 %v1043, 120
        %v1046 = vpop.permute.xlu0 %1045
        %v1049 = vunpack.c.l.b16 %v618
        %v1050 = vunpack.c.h.b16 %v618
        %v1051 = vunpack.c.l.b16 %v619
        %v1052 = vpack.c.b16 %v1049, %v1049
        %v1053 = vpack.c.b16 %v1050, %v1050
        %v1054 = vpack.c.b16 %v1051, %v1051
        %1055 = vrot.lane.b32.xlu0 %v1052, 127
        %v1056 = vpop.permute.xlu0 %1055
        %1057 = vrot.lane.b32.xlu0 %v1053, 127
        %v1058 = vpop.permute.xlu0 %1057
        %1059 = vrot.lane.b32.xlu0 %v1054, 127
        %v1060 = vpop.permute.xlu0 %1059
        %vm1061 = vcmask 1039360
        %v1062 = vsel %vm1061, %v1056, %v1058
        %v1063 = vsel %vm1061, %v1058, %v1060
        %vm1064 = vcmask 64512
        %v1066 = vsel %vm1064, %v1046, 0
        %vm1068 = vcmask 1043456
        %v1070 = vsel %vm1068, %v1062, 0
        %v1073 = vsel %vm1068, %v1063, 0
        %v1076 = vsel %vm1068, %v1060, 0
        %1078 = vmatpush.bf16.msra.mxu0 0
        %1079 = vmatpush.bf16.msra.mxu0 0
        %1080 = vmatpush.bf16.msra.mxu0 0
        %1081 = vmatpush.bf16.msra.mxu0 0
        %1082 = vmatpush.bf16.msra.mxu0 0
        %1083 = vmatpush.bf16.msra.mxu0 0
        %1084 = vmatpush.bf16.msra.mxu0 0
        %1085 = vmatpush.bf16.msra.mxu0 %v1070
        %1086 = vmatmul.bf16.gmra.mxu0 %v1066
        %v1087 = vpop.f32.mrf.mxu0
        %v1088 = vadd.f32 0.0, %v1087
        %v1089 = vpop.f32.mrf.mxu0
        %1090 = vdwg.mxu0
        %1091 = vmatpush.bf16.msra.mxu0 0
        %1092 = vmatpush.bf16.msra.mxu0 0
        %1093 = vmatpush.bf16.msra.mxu0 0
        %1094 = vmatpush.bf16.msra.mxu0 0
        %1095 = vmatpush.bf16.msra.mxu0 0
        %1096 = vmatpush.bf16.msra.mxu0 0
        %1097 = vmatpush.bf16.msra.mxu0 0
        %1098 = vmatpush.bf16.msra.mxu0 %v1073
        %1099 = vmatmul.bf16.gmra.mxu0 %v1066
        %v1100 = vpop.f32.mrf.mxu0
        %v1101 = vadd.f32 0.0, %v1100
        %v1102 = vpop.f32.mrf.mxu0
        %1103 = vdwg.mxu0
        %1104 = vmatpush.bf16.msra.mxu0 0
        %1105 = vmatpush.bf16.msra.mxu0 0
        %1106 = vmatpush.bf16.msra.mxu0 0
        %1107 = vmatpush.bf16.msra.mxu0 0
        %1108 = vmatpush.bf16.msra.mxu0 0
        %1109 = vmatpush.bf16.msra.mxu0 0
        %1110 = vmatpush.bf16.msra.mxu0 0
        %1111 = vmatpush.bf16.msra.mxu0 %v1076
        %1112 = vmatmul.bf16.gmra.mxu0 %v1066
        %v1113 = vpop.f32.mrf.mxu0
        %v1114 = vadd.f32 0.0, %v1113
        %v1115 = vpop.f32.mrf.mxu0
        %1116 = vdwg.mxu0
        %v1117 = vsel %vm1064, %v1040, 0
        %v1120 = vsel %vm1068, %v1052, 0
        %v1123 = vsel %vm1068, %v1053, 0
        %v1126 = vsel %vm1068, %v1054, 0
        %1128 = vmatpush.bf16.msra.mxu0 0
        %1129 = vmatpush.bf16.msra.mxu0 0
        %1130 = vmatpush.bf16.msra.mxu0 0
        %1131 = vmatpush.bf16.msra.mxu0 0
        %1132 = vmatpush.bf16.msra.mxu0 0
        %1133 = vmatpush.bf16.msra.mxu0 0
        %1134 = vmatpush.bf16.msra.mxu0 0
        %1135 = vmatpush.bf16.msra.mxu0 %v1120
        %1136 = vmatmul.bf16.gmra.mxu0 %v1117
        %v1137 = vpop.f32.mrf.mxu0
        %v1138 = vadd.f32 %v1088, %v1137
        %v1139 = vpop.f32.mrf.mxu0
        %1140 = vdwg.mxu0
        %1141 = vmatpush.bf16.msra.mxu0 0
        %1142 = vmatpush.bf16.msra.mxu0 0
        %1143 = vmatpush.bf16.msra.mxu0 0
        %1144 = vmatpush.bf16.msra.mxu0 0
        %1145 = vmatpush.bf16.msra.mxu0 0
        %1146 = vmatpush.bf16.msra.mxu0 0
        %1147 = vmatpush.bf16.msra.mxu0 0
        %1148 = vmatpush.bf16.msra.mxu0 %v1123
        %1149 = vmatmul.bf16.gmra.mxu0 %v1117
        %v1150 = vpop.f32.mrf.mxu0
        %v1151 = vadd.f32 %v1101, %v1150
        %v1152 = vpop.f32.mrf.mxu0
        %1153 = vdwg.mxu0
        %1154 = vmatpush.bf16.msra.mxu0 0
        %1155 = vmatpush.bf16.msra.mxu0 0
        %1156 = vmatpush.bf16.msra.mxu0 0
        %1157 = vmatpush.bf16.msra.mxu0 0
        %1158 = vmatpush.bf16.msra.mxu0 0
        %1159 = vmatpush.bf16.msra.mxu0 0
        %1160 = vmatpush.bf16.msra.mxu0 0
        %1161 = vmatpush.bf16.msra.mxu0 %v1126
        %1162 = vmatmul.bf16.gmra.mxu0 %v1117
        %v1163 = vpop.f32.mrf.mxu0
        %v1164 = vadd.f32 %v1114, %v1163
        %v1165 = vpop.f32.mrf.mxu0
        %1166 = vdwg.mxu0
        %1167 = vst [vmem:[#allocation1] ss:$4 sm:$0xff] %v1040
        %v1168 = vld.sshfl [vmem:[#allocation1] sm:$0xff pattern:$0x73625140]
        %1170 = vrot.lane.b32.xlu0 %v1168, 112
        %v1171 = vpop.permute.xlu0 %1170
        %1172 = vrot.lane.b32.xlu0 %v1052, 126
        %v1173 = vpop.permute.xlu0 %1172
        %1174 = vrot.lane.b32.xlu0 %v1053, 126
        %v1175 = vpop.permute.xlu0 %1174
        %1176 = vrot.lane.b32.xlu0 %v1054, 126
        %v1177 = vpop.permute.xlu0 %1176
        %vm1178 = vcmask 1031168
        %v1179 = vsel %vm1178, %v1173, %v1175
        %v1180 = vsel %vm1178, %v1175, %v1177
        %v1182 = vsel %vm1064, %v1171, 0
        %v1185 = vsel %vm1068, %v1179, 0
        %v1188 = vsel %vm1068, %v1180, 0
        %v1191 = vsel %vm1068, %v1177, 0
        %1193 = vmatpush.bf16.msra.mxu0 0
        %1194 = vmatpush.bf16.msra.mxu0 0
        %1195 = vmatpush.bf16.msra.mxu0 0
        %1196 = vmatpush.bf16.msra.mxu0 0
        %1197 = vmatpush.bf16.msra.mxu0 0
        %1198 = vmatpush.bf16.msra.mxu0 0
        %1199 = vmatpush.bf16.msra.mxu0 0
        %1200 = vmatpush.bf16.msra.mxu0 %v1185
        %1201 = vmatmul.bf16.gmra.mxu0 %v1182
        %v1202 = vpop.f32.mrf.mxu0
        %v1203 = vadd.f32 0.0, %v1202
        %v1204 = vpop.f32.mrf.mxu0
        %1205 = vdwg.mxu0
        %1206 = vmatpush.bf16.msra.mxu0 0
        %1207 = vmatpush.bf16.msra.mxu0 0
        %1208 = vmatpush.bf16.msra.mxu0 0
        %1209 = vmatpush.bf16.msra.mxu0 0
        %1210 = vmatpush.bf16.msra.mxu0 0
        %1211 = vmatpush.bf16.msra.mxu0 0
        %1212 = vmatpush.bf16.msra.mxu0 0
        %1213 = vmatpush.bf16.msra.mxu0 %v1188
        %1214 = vmatmul.bf16.gmra.mxu0 %v1182
        %v1215 = vpop.f32.mrf.mxu0
        %v1216 = vadd.f32 0.0, %v1215
        %v1217 = vpop.f32.mrf.mxu0
        %1218 = vdwg.mxu0
        %1219 = vmatpush.bf16.msra.mxu0 0
        %1220 = vmatpush.bf16.msra.mxu0 0
        %1221 = vmatpush.bf16.msra.mxu0 0
        %1222 = vmatpush.bf16.msra.mxu0 0
        %1223 = vmatpush.bf16.msra.mxu0 0
        %1224 = vmatpush.bf16.msra.mxu0 0
        %1225 = vmatpush.bf16.msra.mxu0 0
        %1226 = vmatpush.bf16.msra.mxu0 %v1191
        %1227 = vmatmul.bf16.gmra.mxu0 %v1182
        %v1228 = vpop.f32.mrf.mxu0
        %v1229 = vadd.f32 0.0, %v1228
        %v1230 = vpop.f32.mrf.mxu0
        %1231 = vdwg.mxu0
        %v1232 = vadd.f32 %v1138, %v1203
        %v1233 = vadd.f32 %v1151, %v1216
        %v1234 = vadd.f32 %v1164, %v1229
        %1235 = vst [vmem:[#allocation1] ss:$4 sm:$0xff] %v1040
        %v1236 = vld.sshfl [vmem:[#allocation1] sm:$0xff pattern:$0x73625140]
        %1238 = vrot.lane.b32.xlu0 %v1236, 104
        %v1239 = vpop.permute.xlu0 %1238
        %1240 = vrot.lane.b32.xlu0 %v1052, 110
        %v1241 = vpop.permute.xlu0 %1240
        %1242 = vrot.lane.b32.xlu0 %v1053, 110
        %v1243 = vpop.permute.xlu0 %1242
        %1244 = vrot.lane.b32.xlu0 %v1054, 110
        %v1245 = vpop.permute.xlu0 %1244
        %vm1246 = vcmask 900096
        %v1247 = vsel %vm1246, %v1241, %v1243
        %v1248 = vsel %vm1246, %v1243, %v1245
        %v1250 = vsel %vm1064, %v1239, 0
        %v1253 = vsel %vm1068, %v1247, 0
        %v1256 = vsel %vm1068, %v1248, 0
        %v1259 = vsel %vm1068, %v1245, 0
        %1261 = vmatpush.bf16.msra.mxu0 0
        %1262 = vmatpush.bf16.msra.mxu0 0
        %1263 = vmatpush.bf16.msra.mxu0 0
        %1264 = vmatpush.bf16.msra.mxu0 0
        %1265 = vmatpush.bf16.msra.mxu0 0
        %1266 = vmatpush.bf16.msra.mxu0 0
        %1267 = vmatpush.bf16.msra.mxu0 0
        %1268 = vmatpush.bf16.msra.mxu0 %v1253
        %1269 = vmatmul.bf16.gmra.mxu0 %v1250
        %v1270 = vpop.f32.mrf.mxu0
        %v1271 = vadd.f32 0.0, %v1270
        %v1272 = vpop.f32.mrf.mxu0
        %1273 = vdwg.mxu0
        %1274 = vmatpush.bf16.msra.mxu0 0
        %1275 = vmatpush.bf16.msra.mxu0 0
        %1276 = vmatpush.bf16.msra.mxu0 0
        %1277 = vmatpush.bf16.msra.mxu0 0
        %1278 = vmatpush.bf16.msra.mxu0 0
        %1279 = vmatpush.bf16.msra.mxu0 0
        %1280 = vmatpush.bf16.msra.mxu0 0
        %1281 = vmatpush.bf16.msra.mxu0 %v1256
        %1282 = vmatmul.bf16.gmra.mxu0 %v1250
        %v1283 = vpop.f32.mrf.mxu0
        %v1284 = vadd.f32 0.0, %v1283
        %v1285 = vpop.f32.mrf.mxu0
        %1286 = vdwg.mxu0
        %1287 = vmatpush.bf16.msra.mxu0 0
        %1288 = vmatpush.bf16.msra.mxu0 0
        %1289 = vmatpush.bf16.msra.mxu0 0
        %1290 = vmatpush.bf16.msra.mxu0 0
        %1291 = vmatpush.bf16.msra.mxu0 0
        %1292 = vmatpush.bf16.msra.mxu0 0
        %1293 = vmatpush.bf16.msra.mxu0 0
        %1294 = vmatpush.bf16.msra.mxu0 %v1259
        %1295 = vmatmul.bf16.gmra.mxu0 %v1250
        %v1296 = vpop.f32.mrf.mxu0
        %v1297 = vadd.f32 0.0, %v1296
        %v1298 = vpop.f32.mrf.mxu0
        %1299 = vdwg.mxu0
        %v1300 = vadd.f32 %v1232, %v1271
        %v1301 = vadd.f32 %v1233, %v1284
        %v1302 = vadd.f32 %v1234, %v1297
        %1303 = vst [vmem:[#allocation1] ss:$4 sm:$0xff] %v1040
        %v1304 = vld.sshfl [vmem:[#allocation1] sm:$0xff pattern:$0x73625140]
        %1306 = vrot.lane.b32.xlu0 %v1304, 96
        %v1307 = vpop.permute.xlu0 %1306
        %1308 = vrot.lane.b32.xlu0 %v1052, 109
        %v1309 = vpop.permute.xlu0 %1308
        %1310 = vrot.lane.b32.xlu0 %v1053, 109
        %v1311 = vpop.permute.xlu0 %1310
        %1312 = vrot.lane.b32.xlu0 %v1054, 109
        %v1313 = vpop.permute.xlu0 %1312
        %vm1314 = vcmask 891904
        %v1315 = vsel %vm1314, %v1309, %v1311
        %v1316 = vsel %vm1314, %v1311, %v1313
        %v1318 = vsel %vm1064, %v1307, 0
        %v1321 = vsel %vm1068, %v1315, 0
        %v1324 = vsel %vm1068, %v1316, 0
        %v1327 = vsel %vm1068, %v1313, 0
        %1329 = vmatpush.bf16.msra.mxu0 0
        %1330 = vmatpush.bf16.msra.mxu0 0
        %1331 = vmatpush.bf16.msra.mxu0 0
        %1332 = vmatpush.bf16.msra.mxu0 0
        %1333 = vmatpush.bf16.msra.mxu0 0
        %1334 = vmatpush.bf16.msra.mxu0 0
        %1335 = vmatpush.bf16.msra.mxu0 0
        %1336 = vmatpush.bf16.msra.mxu0 %v1321
        %1337 = vmatmul.bf16.gmra.mxu0 %v1318
        %v1338 = vpop.f32.mrf.mxu0
        %v1339 = vadd.f32 0.0, %v1338
        %v1340 = vpop.f32.mrf.mxu0
        %1341 = vdwg.mxu0
        %1342 = vmatpush.bf16.msra.mxu0 0
        %1343 = vmatpush.bf16.msra.mxu0 0
        %1344 = vmatpush.bf16.msra.mxu0 0
        %1345 = vmatpush.bf16.msra.mxu0 0
        %1346 = vmatpush.bf16.msra.mxu0 0
        %1347 = vmatpush.bf16.msra.mxu0 0
        %1348 = vmatpush.bf16.msra.mxu0 0
        %1349 = vmatpush.bf16.msra.mxu0 %v1324
        %1350 = vmatmul.bf16.gmra.mxu0 %v1318
        %v1351 = vpop.f32.mrf.mxu0
        %v1352 = vadd.f32 0.0, %v1351
        %v1353 = vpop.f32.mrf.mxu0
        %1354 = vdwg.mxu0
        %1355 = vmatpush.bf16.msra.mxu0 0
        %1356 = vmatpush.bf16.msra.mxu0 0
        %1357 = vmatpush.bf16.msra.mxu0 0
        %1358 = vmatpush.bf16.msra.mxu0 0
        %1359 = vmatpush.bf16.msra.mxu0 0
        %1360 = vmatpush.bf16.msra.mxu0 0
        %1361 = vmatpush.bf16.msra.mxu0 0
        %1362 = vmatpush.bf16.msra.mxu0 %v1327
        %1363 = vmatmul.bf16.gmra.mxu0 %v1318
        %v1364 = vpop.f32.mrf.mxu0
        %v1365 = vadd.f32 0.0, %v1364
        %v1366 = vpop.f32.mrf.mxu0
        %1367 = vdwg.mxu0
        %v1368 = vadd.f32 %v1300, %v1339
        %v1369 = vadd.f32 %v1301, %v1352
        %v1370 = vadd.f32 %v1302, %v1365
        %1371 = vst [vmem:[#allocation1] ss:$4 sm:$0xff] %v1040
        %v1372 = vld.sshfl [vmem:[#allocation1] sm:$0xff pattern:$0x73625140]
        %1374 = vrot.lane.b32.xlu0 %v1372, 88
        %v1375 = vpop.permute.xlu0 %1374
        %1376 = vrot.lane.b32.xlu0 %v1052, 108
        %v1377 = vpop.permute.xlu0 %1376
        %1378 = vrot.lane.b32.xlu0 %v1053, 108
        %v1379 = vpop.permute.xlu0 %1378
        %1380 = vrot.lane.b32.xlu0 %v1054, 108
        %v1381 = vpop.permute.xlu0 %1380
        %vm1382 = vcmask 883712
        %v1383 = vsel %vm1382, %v1377, %v1379
        %v1384 = vsel %vm1382, %v1379, %v1381
        %v1386 = vsel %vm1064, %v1375, 0
        %v1389 = vsel %vm1068, %v1383, 0
        %v1392 = vsel %vm1068, %v1384, 0
        %v1395 = vsel %vm1068, %v1381, 0
        %1397 = vmatpush.bf16.msra.mxu0 0
        %1398 = vmatpush.bf16.msra.mxu0 0
        %1399 = vmatpush.bf16.msra.mxu0 0
        %1400 = vmatpush.bf16.msra.mxu0 0
        %1401 = vmatpush.bf16.msra.mxu0 0
        %1402 = vmatpush.bf16.msra.mxu0 0
        %1403 = vmatpush.bf16.msra.mxu0 0
        %1404 = vmatpush.bf16.msra.mxu0 %v1389
        %1405 = vmatmul.bf16.gmra.mxu0 %v1386
        %v1406 = vpop.f32.mrf.mxu0
        %v1407 = vadd.f32 0.0, %v1406
        %v1408 = vpop.f32.mrf.mxu0
        %1409 = vdwg.mxu0
        %1410 = vmatpush.bf16.msra.mxu0 0
        %1411 = vmatpush.bf16.msra.mxu0 0
        %1412 = vmatpush.bf16.msra.mxu0 0
        %1413 = vmatpush.bf16.msra.mxu0 0
        %1414 = vmatpush.bf16.msra.mxu0 0
        %1415 = vmatpush.bf16.msra.mxu0 0
        %1416 = vmatpush.bf16.msra.mxu0 0
        %1417 = vmatpush.bf16.msra.mxu0 %v1392
        %1418 = vmatmul.bf16.gmra.mxu0 %v1386
        %v1419 = vpop.f32.mrf.mxu0
        %v1420 = vadd.f32 0.0, %v1419
        %v1421 = vpop.f32.mrf.mxu0
        %1422 = vdwg.mxu0
        %1423 = vmatpush.bf16.msra.mxu0 0
        %1424 = vmatpush.bf16.msra.mxu0 0
        %1425 = vmatpush.bf16.msra.mxu0 0
        %1426 = vmatpush.bf16.msra.mxu0 0
        %1427 = vmatpush.bf16.msra.mxu0 0
        %1428 = vmatpush.bf16.msra.mxu0 0
        %1429 = vmatpush.bf16.msra.mxu0 0
        %1430 = vmatpush.bf16.msra.mxu0 %v1395
        %1431 = vmatmul.bf16.gmra.mxu0 %v1386
        %v1432 = vpop.f32.mrf.mxu0
        %v1433 = vadd.f32 0.0, %v1432
        %v1434 = vpop.f32.mrf.mxu0
        %1435 = vdwg.mxu0
        %v1436 = vadd.f32 %v1368, %v1407
        %v1437 = vadd.f32 %v1369, %v1420
        %v1438 = vadd.f32 %v1370, %v1433
        %1439 = vst [vmem:[#allocation1] ss:$4 sm:$0xff] %v1040
        %v1440 = vld.sshfl [vmem:[#allocation1] sm:$0xff pattern:$0x73625140]
        %1442 = vrot.lane.b32.xlu0 %v1440, 80
        %v1443 = vpop.permute.xlu0 %1442
        %1444 = vrot.lane.b32.xlu0 %v1052, 92
        %v1445 = vpop.permute.xlu0 %1444
        %1446 = vrot.lane.b32.xlu0 %v1053, 92
        %v1447 = vpop.permute.xlu0 %1446
        %1448 = vrot.lane.b32.xlu0 %v1054, 92
        %v1449 = vpop.permute.xlu0 %1448
        %vm1450 = vcmask 752640
        %v1451 = vsel %vm1450, %v1445, %v1447
        %v1452 = vsel %vm1450, %v1447, %v1449
        %v1454 = vsel %vm1064, %v1443, 0
        %v1457 = vsel %vm1068, %v1451, 0
        %v1460 = vsel %vm1068, %v1452, 0
        %v1463 = vsel %vm1068, %v1449, 0
        %1465 = vmatpush.bf16.msra.mxu0 0
        %1466 = vmatpush.bf16.msra.mxu0 0
        %1467 = vmatpush.bf16.msra.mxu0 0
        %1468 = vmatpush.bf16.msra.mxu0 0
        %1469 = vmatpush.bf16.msra.mxu0 0
        %1470 = vmatpush.bf16.msra.mxu0 0
        %1471 = vmatpush.bf16.msra.mxu0 0
        %1472 = vmatpush.bf16.msra.mxu0 %v1457
        %1473 = vmatmul.bf16.gmra.mxu0 %v1454
        %v1474 = vpop.f32.mrf.mxu0
        %v1475 = vadd.f32 0.0, %v1474
        %v1476 = vpop.f32.mrf.mxu0
        %1477 = vdwg.mxu0
        %1478 = vmatpush.bf16.msra.mxu0 0
        %1479 = vmatpush.bf16.msra.mxu0 0
        %1480 = vmatpush.bf16.msra.mxu0 0
        %1481 = vmatpush.bf16.msra.mxu0 0
        %1482 = vmatpush.bf16.msra.mxu0 0
        %1483 = vmatpush.bf16.msra.mxu0 0
        %1484 = vmatpush.bf16.msra.mxu0 0
        %1485 = vmatpush.bf16.msra.mxu0 %v1460
        %1486 = vmatmul.bf16.gmra.mxu0 %v1454
        %v1487 = vpop.f32.mrf.mxu0
        %v1488 = vadd.f32 0.0, %v1487
        %v1489 = vpop.f32.mrf.mxu0
        %1490 = vdwg.mxu0
        %1491 = vmatpush.bf16.msra.mxu0 0
        %1492 = vmatpush.bf16.msra.mxu0 0
        %1493 = vmatpush.bf16.msra.mxu0 0
        %1494 = vmatpush.bf16.msra.mxu0 0
        %1495 = vmatpush.bf16.msra.mxu0 0
        %1496 = vmatpush.bf16.msra.mxu0 0
        %1497 = vmatpush.bf16.msra.mxu0 0
        %1498 = vmatpush.bf16.msra.mxu0 %v1463
        %1499 = vmatmul.bf16.gmra.mxu0 %v1454
        %v1500 = vpop.f32.mrf.mxu0
        %v1501 = vadd.f32 0.0, %v1500
        %v1502 = vpop.f32.mrf.mxu0
        %1503 = vdwg.mxu0
        %v1504 = vadd.f32 %v1436, %v1475
        %v1505 = vadd.f32 %v1437, %v1488
        %v1506 = vadd.f32 %v1438, %v1501
        %1507 = vst [vmem:[#allocation1] ss:$4 sm:$0xff] %v1040
        %v1508 = vld.sshfl [vmem:[#allocation1] sm:$0xff pattern:$0x73625140]
        %1510 = vrot.lane.b32.xlu0 %v1508, 72
        %v1511 = vpop.permute.xlu0 %1510
        %1512 = vrot.lane.b32.xlu0 %v1052, 91
        %v1513 = vpop.permute.xlu0 %1512
        %1514 = vrot.lane.b32.xlu0 %v1053, 91
        %v1515 = vpop.permute.xlu0 %1514
        %1516 = vrot.lane.b32.xlu0 %v1054, 91
        %v1517 = vpop.permute.xlu0 %1516
        %vm1518 = vcmask 744448
        %v1519 = vsel %vm1518, %v1513, %v1515
        %v1520 = vsel %vm1518, %v1515, %v1517
        %v1522 = vsel %vm1064, %v1511, 0
        %v1525 = vsel %vm1068, %v1519, 0
        %v1528 = vsel %vm1068, %v1520, 0
        %v1531 = vsel %vm1068, %v1517, 0
        %1533 = vmatpush.bf16.msra.mxu0 0
        %1534 = vmatpush.bf16.msra.mxu0 0
        %1535 = vmatpush.bf16.msra.mxu0 0
        %1536 = vmatpush.bf16.msra.mxu0 0
        %1537 = vmatpush.bf16.msra.mxu0 0
        %1538 = vmatpush.bf16.msra.mxu0 0
        %1539 = vmatpush.bf16.msra.mxu0 0
        %1540 = vmatpush.bf16.msra.mxu0 %v1525
        %1541 = vmatmul.bf16.gmra.mxu0 %v1522
        %v1542 = vpop.f32.mrf.mxu0
        %v1543 = vadd.f32 0.0, %v1542
        %v1544 = vpop.f32.mrf.mxu0
        %1545 = vdwg.mxu0
        %1546 = vmatpush.bf16.msra.mxu0 0
        %1547 = vmatpush.bf16.msra.mxu0 0
        %1548 = vmatpush.bf16.msra.mxu0 0
        %1549 = vmatpush.bf16.msra.mxu0 0
        %1550 = vmatpush.bf16.msra.mxu0 0
        %1551 = vmatpush.bf16.msra.mxu0 0
        %1552 = vmatpush.bf16.msra.mxu0 0
        %1553 = vmatpush.bf16.msra.mxu0 %v1528
        %1554 = vmatmul.bf16.gmra.mxu0 %v1522
        %v1555 = vpop.f32.mrf.mxu0
        %v1556 = vadd.f32 0.0, %v1555
        %v1557 = vpop.f32.mrf.mxu0
        %1558 = vdwg.mxu0
        %1559 = vmatpush.bf16.msra.mxu0 0
        %1560 = vmatpush.bf16.msra.mxu0 0
        %1561 = vmatpush.bf16.msra.mxu0 0
        %1562 = vmatpush.bf16.msra.mxu0 0
        %1563 = vmatpush.bf16.msra.mxu0 0
        %1564 = vmatpush.bf16.msra.mxu0 0
        %1565 = vmatpush.bf16.msra.mxu0 0
        %1566 = vmatpush.bf16.msra.mxu0 %v1531
        %1567 = vmatmul.bf16.gmra.mxu0 %v1522
        %v1568 = vpop.f32.mrf.mxu0
        %v1569 = vadd.f32 0.0, %v1568
        %v1570 = vpop.f32.mrf.mxu0
        %1571 = vdwg.mxu0
        %v1572 = vadd.f32 %v1504, %v1543
        %v1573 = vadd.f32 %v1505, %v1556
        %v1574 = vadd.f32 %v1506, %v1569
        %1575 = vst [vmem:[#allocation1] ss:$4 sm:$0xff] %v1040
        %v1576 = vld.sshfl [vmem:[#allocation1] sm:$0xff pattern:$0x73625140]
        %1578 = vrot.lane.b32.xlu0 %v1576, 64
        %v1579 = vpop.permute.xlu0 %1578
        %1580 = vrot.lane.b32.xlu0 %v1052, 90
        %v1581 = vpop.permute.xlu0 %1580
        %1582 = vrot.lane.b32.xlu0 %v1053, 90
        %v1583 = vpop.permute.xlu0 %1582
        %1584 = vrot.lane.b32.xlu0 %v1054, 90
        %v1585 = vpop.permute.xlu0 %1584
        %vm1586 = vcmask 736256
        %v1587 = vsel %vm1586, %v1581, %v1583
        %v1588 = vsel %vm1586, %v1583, %v1585
        %v1590 = vsel %vm1064, %v1579, 0
        %v1593 = vsel %vm1068, %v1587, 0
        %v1596 = vsel %vm1068, %v1588, 0
        %v1599 = vsel %vm1068, %v1585, 0
        %1601 = vmatpush.bf16.msra.mxu0 0
        %1602 = vmatpush.bf16.msra.mxu0 0
        %1603 = vmatpush.bf16.msra.mxu0 0
        %1604 = vmatpush.bf16.msra.mxu0 0
        %1605 = vmatpush.bf16.msra.mxu0 0
        %1606 = vmatpush.bf16.msra.mxu0 0
        %1607 = vmatpush.bf16.msra.mxu0 0
        %1608 = vmatpush.bf16.msra.mxu0 %v1593
        %1609 = vmatmul.bf16.gmra.mxu0 %v1590
        %v1610 = vpop.f32.mrf.mxu0
        %v1611 = vadd.f32 0.0, %v1610
        %v1612 = vpop.f32.mrf.mxu0
        %1613 = vdwg.mxu0
        %1614 = vmatpush.bf16.msra.mxu0 0
        %1615 = vmatpush.bf16.msra.mxu0 0
        %1616 = vmatpush.bf16.msra.mxu0 0
        %1617 = vmatpush.bf16.msra.mxu0 0
        %1618 = vmatpush.bf16.msra.mxu0 0
        %1619 = vmatpush.bf16.msra.mxu0 0
        %1620 = vmatpush.bf16.msra.mxu0 0
        %1621 = vmatpush.bf16.msra.mxu0 %v1596
        %1622 = vmatmul.bf16.gmra.mxu0 %v1590
        %v1623 = vpop.f32.mrf.mxu0
        %v1624 = vadd.f32 0.0, %v1623
        %v1625 = vpop.f32.mrf.mxu0
        %1626 = vdwg.mxu0
        %1627 = vmatpush.bf16.msra.mxu0 0
        %1628 = vmatpush.bf16.msra.mxu0 0
        %1629 = vmatpush.bf16.msra.mxu0 0
        %1630 = vmatpush.bf16.msra.mxu0 0
        %1631 = vmatpush.bf16.msra.mxu0 0
        %1632 = vmatpush.bf16.msra.mxu0 0
        %1633 = vmatpush.bf16.msra.mxu0 0
        %1634 = vmatpush.bf16.msra.mxu0 %v1599
        %1635 = vmatmul.bf16.gmra.mxu0 %v1590
        %v1636 = vpop.f32.mrf.mxu0
        %v1637 = vadd.f32 0.0, %v1636
        %v1638 = vpop.f32.mrf.mxu0
        %1639 = vdwg.mxu0
        %v1640 = vadd.f32 %v1572, %v1611
        %v1641 = vadd.f32 %v1573, %v1624
        %v1642 = vadd.f32 %v1574, %v1637
        %1644 = vset.pattern.permute.xlu0 0
        %1645 = vperm.xlu0 %1644, %v1039
        %v1646 = vpop.permute.xlu0 %1645
        %v1648 = vadd.f32 %v1640, %v1646
        %v1649 = vadd.f32 %v1641, %v1646
        %v1650 = vadd.f32 %v1642, %v1646
        %v1651 = vmax.f32 %v1648, 0.0
        %v1652 = vmax.f32 %v1649, 0.0
        %v1653 = vmax.f32 %v1650, 0.0
        %v1654 = vsel %vm491, 1, 0
        %v1655 = vsel %vm492, 1, 0
        %v1656 = vsel %vm493, 1, 0
        %vm1657 = vcmp.eq.s32.totalorder %v1654, 1
        %vm1658 = vcmp.eq.s32.totalorder %v1655, 1
        %vm1659 = vcmp.eq.s32.totalorder %v1656, 1
        %v1660 = vsel %vm1657, %v1651, 0.0
        %v1661 = vsel %vm1658, %v1652, 0.0
        %v1662 = vsel %vm1659, %v1653, 0.0
        %v1663 = vpack.c.bf16 %v1661, %v1660
        %v1664 = vpack.c.bf16 %v1662, %v1662
        %1667 = vrot.lane.b32.xlu0 %v1663, 19
        %v1668 = vpop.permute.xlu0 %1667
        %1669 = vrot.lane.b32.xlu0 %v1664, 19
        %v1670 = vpop.permute.xlu0 %1669
        %v1671 = vrot.slane %v1668, 4
        %vm1672 = vcmask 154624
        %v1673 = vsel %vm1672, %v1671, %v1668
        %v1674 = vsel %vm1672, %v1671, %v1670
        %vm1677 = vcmask 1041560
        %vm1678 = vcmask 1045508
        %vm1679 = vmor %vm1678, %vm1677
        %1680 = vst.msk [vmem:[#allocation2] sm:$0x33] %vm1679, %v1673
        %vm1681 = vcmask 410624
        %1682 = vst.msk [vmem:[#allocation2 + $0x8] sm:$0x3] %vm1681, %v1674
        %v1683 = vld [vmem:[#allocation2] sm:$0xff]
        %v1684 = vld [vmem:[#allocation2 + $0x8] sm:$0xf]
        %s1685 = scalar_lea.vmem %s8, 4
        %v1686 = vld [vmem:[%s1685] sm:$0xf]
        %v1687 = vld [vmem:[%s6] sm:$0x3]
        %1689 = vst [vmem:[#allocation1] ss:$4 sm:$0xff] %v1687
        %v1690 = vld.sshfl [vmem:[#allocation1] sm:$0xff pattern:$0x73625140]
        %1692 = vrot.lane.b32.xlu0 %v1690, 120
        %v1693 = vpop.permute.xlu0 %1692
        %v1696 = vunpack.c.l.b16 %v1683
        %v1697 = vunpack.c.h.b16 %v1683
        %v1698 = vunpack.c.l.b16 %v1684
        %v1699 = vpack.c.b16 %v1696, %v1696
        %v1700 = vpack.c.b16 %v1697, %v1697
        %v1701 = vpack.c.b16 %v1698, %v1698
        %1702 = vrot.lane.b32.xlu0 %v1699, 127
        %v1703 = vpop.permute.xlu0 %1702
        %1704 = vrot.lane.b32.xlu0 %v1700, 127
        %v1705 = vpop.permute.xlu0 %1704
        %1706 = vrot.lane.b32.xlu0 %v1701, 127
        %v1707 = vpop.permute.xlu0 %1706
        %v1708 = vsel %vm1061, %v1703, %v1705
        %v1709 = vsel %vm1061, %v1705, %v1707
        %v1711 = vsel %vm1064, %v1693, 0
        %v1714 = vsel %vm1068, %v1708, 0
        %v1717 = vsel %vm1068, %v1709, 0
        %v1720 = vsel %vm1068, %v1707, 0
        %1722 = vmatpush.bf16.msra.mxu0 0
        %1723 = vmatpush.bf16.msra.mxu0 0
        %1724 = vmatpush.bf16.msra.mxu0 0
        %1725 = vmatpush.bf16.msra.mxu0 0
        %1726 = vmatpush.bf16.msra.mxu0 0
        %1727 = vmatpush.bf16.msra.mxu0 0
        %1728 = vmatpush.bf16.msra.mxu0 0
        %1729 = vmatpush.bf16.msra.mxu0 %v1714
        %1730 = vmatmul.bf16.gmra.mxu0 %v1711
        %v1731 = vpop.f32.mrf.mxu0
        %v1732 = vadd.f32 0.0, %v1731
        %v1733 = vpop.f32.mrf.mxu0
        %1734 = vdwg.mxu0
        %1735 = vmatpush.bf16.msra.mxu0 0
        %1736 = vmatpush.bf16.msra.mxu0 0
        %1737 = vmatpush.bf16.msra.mxu0 0
        %1738 = vmatpush.bf16.msra.mxu0 0
        %1739 = vmatpush.bf16.msra.mxu0 0
        %1740 = vmatpush.bf16.msra.mxu0 0
        %1741 = vmatpush.bf16.msra.mxu0 0
        %1742 = vmatpush.bf16.msra.mxu0 %v1717
        %1743 = vmatmul.bf16.gmra.mxu0 %v1711
        %v1744 = vpop.f32.mrf.mxu0
        %v1745 = vadd.f32 0.0, %v1744
        %v1746 = vpop.f32.mrf.mxu0
        %1747 = vdwg.mxu0
        %1748 = vmatpush.bf16.msra.mxu0 0
        %1749 = vmatpush.bf16.msra.mxu0 0
        %1750 = vmatpush.bf16.msra.mxu0 0
        %1751 = vmatpush.bf16.msra.mxu0 0
        %1752 = vmatpush.bf16.msra.mxu0 0
        %1753 = vmatpush.bf16.msra.mxu0 0
        %1754 = vmatpush.bf16.msra.mxu0 0
        %1755 = vmatpush.bf16.msra.mxu0 %v1720
        %1756 = vmatmul.bf16.gmra.mxu0 %v1711
        %v1757 = vpop.f32.mrf.mxu0
        %v1758 = vadd.f32 0.0, %v1757
        %v1759 = vpop.f32.mrf.mxu0
        %1760 = vdwg.mxu0
        %v1761 = vsel %vm1064, %v1687, 0
        %v1764 = vsel %vm1068, %v1699, 0
        %v1767 = vsel %vm1068, %v1700, 0
        %v1770 = vsel %vm1068, %v1701, 0
        %1772 = vmatpush.bf16.msra.mxu0 0
        %1773 = vmatpush.bf16.msra.mxu0 0
        %1774 = vmatpush.bf16.msra.mxu0 0
        %1775 = vmatpush.bf16.msra.mxu0 0
        %1776 = vmatpush.bf16.msra.mxu0 0
        %1777 = vmatpush.bf16.msra.mxu0 0
        %1778 = vmatpush.bf16.msra.mxu0 0
        %1779 = vmatpush.bf16.msra.mxu0 %v1764
        %1780 = vmatmul.bf16.gmra.mxu0 %v1761
        %v1781 = vpop.f32.mrf.mxu0
        %v1782 = vadd.f32 %v1732, %v1781
        %v1783 = vpop.f32.mrf.mxu0
        %1784 = vdwg.mxu0
        %1785 = vmatpush.bf16.msra.mxu0 0
        %1786 = vmatpush.bf16.msra.mxu0 0
        %1787 = vmatpush.bf16.msra.mxu0 0
        %1788 = vmatpush.bf16.msra.mxu0 0
        %1789 = vmatpush.bf16.msra.mxu0 0
        %1790 = vmatpush.bf16.msra.mxu0 0
        %1791 = vmatpush.bf16.msra.mxu0 0
        %1792 = vmatpush.bf16.msra.mxu0 %v1767
        %1793 = vmatmul.bf16.gmra.mxu0 %v1761
        %v1794 = vpop.f32.mrf.mxu0
        %v1795 = vadd.f32 %v1745, %v1794
        %v1796 = vpop.f32.mrf.mxu0
        %1797 = vdwg.mxu0
        %1798 = vmatpush.bf16.msra.mxu0 0
        %1799 = vmatpush.bf16.msra.mxu0 0
        %1800 = vmatpush.bf16.msra.mxu0 0
        %1801 = vmatpush.bf16.msra.mxu0 0
        %1802 = vmatpush.bf16.msra.mxu0 0
        %1803 = vmatpush.bf16.msra.mxu0 0
        %1804 = vmatpush.bf16.msra.mxu0 0
        %1805 = vmatpush.bf16.msra.mxu0 %v1770
        %1806 = vmatmul.bf16.gmra.mxu0 %v1761
        %v1807 = vpop.f32.mrf.mxu0
        %v1808 = vadd.f32 %v1758, %v1807
        %v1809 = vpop.f32.mrf.mxu0
        %1810 = vdwg.mxu0
        %1811 = vst [vmem:[#allocation1] ss:$4 sm:$0xff] %v1687
        %v1812 = vld.sshfl [vmem:[#allocation1] sm:$0xff pattern:$0x73625140]
        %1814 = vrot.lane.b32.xlu0 %v1812, 112
        %v1815 = vpop.permute.xlu0 %1814
        %1816 = vrot.lane.b32.xlu0 %v1699, 126
        %v1817 = vpop.permute.xlu0 %1816
        %1818 = vrot.lane.b32.xlu0 %v1700, 126
        %v1819 = vpop.permute.xlu0 %1818
        %1820 = vrot.lane.b32.xlu0 %v1701, 126
        %v1821 = vpop.permute.xlu0 %1820
        %v1822 = vsel %vm1178, %v1817, %v1819
        %v1823 = vsel %vm1178, %v1819, %v1821
        %v1825 = vsel %vm1064, %v1815, 0
        %v1828 = vsel %vm1068, %v1822, 0
        %v1831 = vsel %vm1068, %v1823, 0
        %v1834 = vsel %vm1068, %v1821, 0
        %1836 = vmatpush.bf16.msra.mxu0 0
        %1837 = vmatpush.bf16.msra.mxu0 0
        %1838 = vmatpush.bf16.msra.mxu0 0
        %1839 = vmatpush.bf16.msra.mxu0 0
        %1840 = vmatpush.bf16.msra.mxu0 0
        %1841 = vmatpush.bf16.msra.mxu0 0
        %1842 = vmatpush.bf16.msra.mxu0 0
        %1843 = vmatpush.bf16.msra.mxu0 %v1828
        %1844 = vmatmul.bf16.gmra.mxu0 %v1825
        %v1845 = vpop.f32.mrf.mxu0
        %v1846 = vadd.f32 0.0, %v1845
        %v1847 = vpop.f32.mrf.mxu0
        %1848 = vdwg.mxu0
        %1849 = vmatpush.bf16.msra.mxu0 0
        %1850 = vmatpush.bf16.msra.mxu0 0
        %1851 = vmatpush.bf16.msra.mxu0 0
        %1852 = vmatpush.bf16.msra.mxu0 0
        %1853 = vmatpush.bf16.msra.mxu0 0
        %1854 = vmatpush.bf16.msra.mxu0 0
        %1855 = vmatpush.bf16.msra.mxu0 0
        %1856 = vmatpush.bf16.msra.mxu0 %v1831
        %1857 = vmatmul.bf16.gmra.mxu0 %v1825
        %v1858 = vpop.f32.mrf.mxu0
        %v1859 = vadd.f32 0.0, %v1858
        %v1860 = vpop.f32.mrf.mxu0
        %1861 = vdwg.mxu0
        %1862 = vmatpush.bf16.msra.mxu0 0
        %1863 = vmatpush.bf16.msra.mxu0 0
        %1864 = vmatpush.bf16.msra.mxu0 0
        %1865 = vmatpush.bf16.msra.mxu0 0
        %1866 = vmatpush.bf16.msra.mxu0 0
        %1867 = vmatpush.bf16.msra.mxu0 0
        %1868 = vmatpush.bf16.msra.mxu0 0
        %1869 = vmatpush.bf16.msra.mxu0 %v1834
        %1870 = vmatmul.bf16.gmra.mxu0 %v1825
        %v1871 = vpop.f32.mrf.mxu0
        %v1872 = vadd.f32 0.0, %v1871
        %v1873 = vpop.f32.mrf.mxu0
        %1874 = vdwg.mxu0
        %v1875 = vadd.f32 %v1782, %v1846
        %v1876 = vadd.f32 %v1795, %v1859
        %v1877 = vadd.f32 %v1808, %v1872
        %1878 = vst [vmem:[#allocation1] ss:$4 sm:$0xff] %v1687
        %v1879 = vld.sshfl [vmem:[#allocation1] sm:$0xff pattern:$0x73625140]
        %1881 = vrot.lane.b32.xlu0 %v1879, 104
        %v1882 = vpop.permute.xlu0 %1881
        %1883 = vrot.lane.b32.xlu0 %v1699, 110
        %v1884 = vpop.permute.xlu0 %1883
        %1885 = vrot.lane.b32.xlu0 %v1700, 110
        %v1886 = vpop.permute.xlu0 %1885
        %1887 = vrot.lane.b32.xlu0 %v1701, 110
        %v1888 = vpop.permute.xlu0 %1887
        %v1889 = vsel %vm1246, %v1884, %v1886
        %v1890 = vsel %vm1246, %v1886, %v1888
        %v1892 = vsel %vm1064, %v1882, 0
        %v1895 = vsel %vm1068, %v1889, 0
        %v1898 = vsel %vm1068, %v1890, 0
        %v1901 = vsel %vm1068, %v1888, 0
        %1903 = vmatpush.bf16.msra.mxu0 0
        %1904 = vmatpush.bf16.msra.mxu0 0
        %1905 = vmatpush.bf16.msra.mxu0 0
        %1906 = vmatpush.bf16.msra.mxu0 0
        %1907 = vmatpush.bf16.msra.mxu0 0
        %1908 = vmatpush.bf16.msra.mxu0 0
        %1909 = vmatpush.bf16.msra.mxu0 0
        %1910 = vmatpush.bf16.msra.mxu0 %v1895
        %1911 = vmatmul.bf16.gmra.mxu0 %v1892
        %v1912 = vpop.f32.mrf.mxu0
        %v1913 = vadd.f32 0.0, %v1912
        %v1914 = vpop.f32.mrf.mxu0
        %1915 = vdwg.mxu0
        %1916 = vmatpush.bf16.msra.mxu0 0
        %1917 = vmatpush.bf16.msra.mxu0 0
        %1918 = vmatpush.bf16.msra.mxu0 0
        %1919 = vmatpush.bf16.msra.mxu0 0
        %1920 = vmatpush.bf16.msra.mxu0 0
        %1921 = vmatpush.bf16.msra.mxu0 0
        %1922 = vmatpush.bf16.msra.mxu0 0
        %1923 = vmatpush.bf16.msra.mxu0 %v1898
        %1924 = vmatmul.bf16.gmra.mxu0 %v1892
        %v1925 = vpop.f32.mrf.mxu0
        %v1926 = vadd.f32 0.0, %v1925
        %v1927 = vpop.f32.mrf.mxu0
        %1928 = vdwg.mxu0
        %1929 = vmatpush.bf16.msra.mxu0 0
        %1930 = vmatpush.bf16.msra.mxu0 0
        %1931 = vmatpush.bf16.msra.mxu0 0
        %1932 = vmatpush.bf16.msra.mxu0 0
        %1933 = vmatpush.bf16.msra.mxu0 0
        %1934 = vmatpush.bf16.msra.mxu0 0
        %1935 = vmatpush.bf16.msra.mxu0 0
        %1936 = vmatpush.bf16.msra.mxu0 %v1901
        %1937 = vmatmul.bf16.gmra.mxu0 %v1892
        %v1938 = vpop.f32.mrf.mxu0
        %v1939 = vadd.f32 0.0, %v1938
        %v1940 = vpop.f32.mrf.mxu0
        %1941 = vdwg.mxu0
        %v1942 = vadd.f32 %v1875, %v1913
        %v1943 = vadd.f32 %v1876, %v1926
        %v1944 = vadd.f32 %v1877, %v1939
        %1945 = vst [vmem:[#allocation1] ss:$4 sm:$0xff] %v1687
        %v1946 = vld.sshfl [vmem:[#allocation1] sm:$0xff pattern:$0x73625140]
        %1948 = vrot.lane.b32.xlu0 %v1946, 96
        %v1949 = vpop.permute.xlu0 %1948
        %1950 = vrot.lane.b32.xlu0 %v1699, 109
        %v1951 = vpop.permute.xlu0 %1950
        %1952 = vrot.lane.b32.xlu0 %v1700, 109
        %v1953 = vpop.permute.xlu0 %1952
        %1954 = vrot.lane.b32.xlu0 %v1701, 109
        %v1955 = vpop.permute.xlu0 %1954
        %v1956 = vsel %vm1314, %v1951, %v1953
        %v1957 = vsel %vm1314, %v1953, %v1955
        %v1959 = vsel %vm1064, %v1949, 0
        %v1962 = vsel %vm1068, %v1956, 0
        %v1965 = vsel %vm1068, %v1957, 0
        %v1968 = vsel %vm1068, %v1955, 0
        %1970 = vmatpush.bf16.msra.mxu0 0
        %1971 = vmatpush.bf16.msra.mxu0 0
        %1972 = vmatpush.bf16.msra.mxu0 0
        %1973 = vmatpush.bf16.msra.mxu0 0
        %1974 = vmatpush.bf16.msra.mxu0 0
        %1975 = vmatpush.bf16.msra.mxu0 0
        %1976 = vmatpush.bf16.msra.mxu0 0
        %1977 = vmatpush.bf16.msra.mxu0 %v1962
        %1978 = vmatmul.bf16.gmra.mxu0 %v1959
        %v1979 = vpop.f32.mrf.mxu0
        %v1980 = vadd.f32 0.0, %v1979
        %v1981 = vpop.f32.mrf.mxu0
        %1982 = vdwg.mxu0
        %1983 = vmatpush.bf16.msra.mxu0 0
        %1984 = vmatpush.bf16.msra.mxu0 0
        %1985 = vmatpush.bf16.msra.mxu0 0
        %1986 = vmatpush.bf16.msra.mxu0 0
        %1987 = vmatpush.bf16.msra.mxu0 0
        %1988 = vmatpush.bf16.msra.mxu0 0
        %1989 = vmatpush.bf16.msra.mxu0 0
        %1990 = vmatpush.bf16.msra.mxu0 %v1965
        %1991 = vmatmul.bf16.gmra.mxu0 %v1959
        %v1992 = vpop.f32.mrf.mxu0
        %v1993 = vadd.f32 0.0, %v1992
        %v1994 = vpop.f32.mrf.mxu0
        %1995 = vdwg.mxu0
        %1996 = vmatpush.bf16.msra.mxu0 0
        %1997 = vmatpush.bf16.msra.mxu0 0
        %1998 = vmatpush.bf16.msra.mxu0 0
        %1999 = vmatpush.bf16.msra.mxu0 0
        %2000 = vmatpush.bf16.msra.mxu0 0
        %2001 = vmatpush.bf16.msra.mxu0 0
        %2002 = vmatpush.bf16.msra.mxu0 0
        %2003 = vmatpush.bf16.msra.mxu0 %v1968
        %2004 = vmatmul.bf16.gmra.mxu0 %v1959
        %v2005 = vpop.f32.mrf.mxu0
        %v2006 = vadd.f32 0.0, %v2005
        %v2007 = vpop.f32.mrf.mxu0
        %2008 = vdwg.mxu0
        %v2009 = vadd.f32 %v1942, %v1980
        %v2010 = vadd.f32 %v1943, %v1993
        %v2011 = vadd.f32 %v1944, %v2006
        %2012 = vst [vmem:[#allocation1] ss:$4 sm:$0xff] %v1687
        %v2013 = vld.sshfl [vmem:[#allocation1] sm:$0xff pattern:$0x73625140]
        %2015 = vrot.lane.b32.xlu0 %v2013, 88
        %v2016 = vpop.permute.xlu0 %2015
        %2017 = vrot.lane.b32.xlu0 %v1699, 108
        %v2018 = vpop.permute.xlu0 %2017
        %2019 = vrot.lane.b32.xlu0 %v1700, 108
        %v2020 = vpop.permute.xlu0 %2019
        %2021 = vrot.lane.b32.xlu0 %v1701, 108
        %v2022 = vpop.permute.xlu0 %2021
        %v2023 = vsel %vm1382, %v2018, %v2020
        %v2024 = vsel %vm1382, %v2020, %v2022
        %v2026 = vsel %vm1064, %v2016, 0
        %v2029 = vsel %vm1068, %v2023, 0
        %v2032 = vsel %vm1068, %v2024, 0
        %v2035 = vsel %vm1068, %v2022, 0
        %2037 = vmatpush.bf16.msra.mxu0 0
        %2038 = vmatpush.bf16.msra.mxu0 0
        %2039 = vmatpush.bf16.msra.mxu0 0
        %2040 = vmatpush.bf16.msra.mxu0 0
        %2041 = vmatpush.bf16.msra.mxu0 0
        %2042 = vmatpush.bf16.msra.mxu0 0
        %2043 = vmatpush.bf16.msra.mxu0 0
        %2044 = vmatpush.bf16.msra.mxu0 %v2029
        %2045 = vmatmul.bf16.gmra.mxu0 %v2026
        %v2046 = vpop.f32.mrf.mxu0
        %v2047 = vadd.f32 0.0, %v2046
        %v2048 = vpop.f32.mrf.mxu0
        %2049 = vdwg.mxu0
        %2050 = vmatpush.bf16.msra.mxu0 0
        %2051 = vmatpush.bf16.msra.mxu0 0
        %2052 = vmatpush.bf16.msra.mxu0 0
        %2053 = vmatpush.bf16.msra.mxu0 0
        %2054 = vmatpush.bf16.msra.mxu0 0
        %2055 = vmatpush.bf16.msra.mxu0 0
        %2056 = vmatpush.bf16.msra.mxu0 0
        %2057 = vmatpush.bf16.msra.mxu0 %v2032
        %2058 = vmatmul.bf16.gmra.mxu0 %v2026
        %v2059 = vpop.f32.mrf.mxu0
        %v2060 = vadd.f32 0.0, %v2059
        %v2061 = vpop.f32.mrf.mxu0
        %2062 = vdwg.mxu0
        %2063 = vmatpush.bf16.msra.mxu0 0
        %2064 = vmatpush.bf16.msra.mxu0 0
        %2065 = vmatpush.bf16.msra.mxu0 0
        %2066 = vmatpush.bf16.msra.mxu0 0
        %2067 = vmatpush.bf16.msra.mxu0 0
        %2068 = vmatpush.bf16.msra.mxu0 0
        %2069 = vmatpush.bf16.msra.mxu0 0
        %2070 = vmatpush.bf16.msra.mxu0 %v2035
        %2071 = vmatmul.bf16.gmra.mxu0 %v2026
        %v2072 = vpop.f32.mrf.mxu0
        %v2073 = vadd.f32 0.0, %v2072
        %v2074 = vpop.f32.mrf.mxu0
        %2075 = vdwg.mxu0
        %v2076 = vadd.f32 %v2009, %v2047
        %v2077 = vadd.f32 %v2010, %v2060
        %v2078 = vadd.f32 %v2011, %v2073
        %2079 = vst [vmem:[#allocation1] ss:$4 sm:$0xff] %v1687
        %v2080 = vld.sshfl [vmem:[#allocation1] sm:$0xff pattern:$0x73625140]
        %2082 = vrot.lane.b32.xlu0 %v2080, 80
        %v2083 = vpop.permute.xlu0 %2082
        %2084 = vrot.lane.b32.xlu0 %v1699, 92
        %v2085 = vpop.permute.xlu0 %2084
        %2086 = vrot.lane.b32.xlu0 %v1700, 92
        %v2087 = vpop.permute.xlu0 %2086
        %2088 = vrot.lane.b32.xlu0 %v1701, 92
        %v2089 = vpop.permute.xlu0 %2088
        %v2090 = vsel %vm1450, %v2085, %v2087
        %v2091 = vsel %vm1450, %v2087, %v2089
        %v2093 = vsel %vm1064, %v2083, 0
        %v2096 = vsel %vm1068, %v2090, 0
        %v2099 = vsel %vm1068, %v2091, 0
        %v2102 = vsel %vm1068, %v2089, 0
        %2104 = vmatpush.bf16.msra.mxu0 0
        %2105 = vmatpush.bf16.msra.mxu0 0
        %2106 = vmatpush.bf16.msra.mxu0 0
        %2107 = vmatpush.bf16.msra.mxu0 0
        %2108 = vmatpush.bf16.msra.mxu0 0
        %2109 = vmatpush.bf16.msra.mxu0 0
        %2110 = vmatpush.bf16.msra.mxu0 0
        %2111 = vmatpush.bf16.msra.mxu0 %v2096
        %2112 = vmatmul.bf16.gmra.mxu0 %v2093
        %v2113 = vpop.f32.mrf.mxu0
        %v2114 = vadd.f32 0.0, %v2113
        %v2115 = vpop.f32.mrf.mxu0
        %2116 = vdwg.mxu0
        %2117 = vmatpush.bf16.msra.mxu0 0
        %2118 = vmatpush.bf16.msra.mxu0 0
        %2119 = vmatpush.bf16.msra.mxu0 0
        %2120 = vmatpush.bf16.msra.mxu0 0
        %2121 = vmatpush.bf16.msra.mxu0 0
        %2122 = vmatpush.bf16.msra.mxu0 0
        %2123 = vmatpush.bf16.msra.mxu0 0
        %2124 = vmatpush.bf16.msra.mxu0 %v2099
        %2125 = vmatmul.bf16.gmra.mxu0 %v2093
        %v2126 = vpop.f32.mrf.mxu0
        %v2127 = vadd.f32 0.0, %v2126
        %v2128 = vpop.f32.mrf.mxu0
        %2129 = vdwg.mxu0
        %2130 = vmatpush.bf16.msra.mxu0 0
        %2131 = vmatpush.bf16.msra.mxu0 0
        %2132 = vmatpush.bf16.msra.mxu0 0
        %2133 = vmatpush.bf16.msra.mxu0 0
        %2134 = vmatpush.bf16.msra.mxu0 0
        %2135 = vmatpush.bf16.msra.mxu0 0
        %2136 = vmatpush.bf16.msra.mxu0 0
        %2137 = vmatpush.bf16.msra.mxu0 %v2102
        %2138 = vmatmul.bf16.gmra.mxu0 %v2093
        %v2139 = vpop.f32.mrf.mxu0
        %v2140 = vadd.f32 0.0, %v2139
        %v2141 = vpop.f32.mrf.mxu0
        %2142 = vdwg.mxu0
        %v2143 = vadd.f32 %v2076, %v2114
        %v2144 = vadd.f32 %v2077, %v2127
        %v2145 = vadd.f32 %v2078, %v2140
        %2146 = vst [vmem:[#allocation1] ss:$4 sm:$0xff] %v1687
        %v2147 = vld.sshfl [vmem:[#allocation1] sm:$0xff pattern:$0x73625140]
        %2149 = vrot.lane.b32.xlu0 %v2147, 72
        %v2150 = vpop.permute.xlu0 %2149
        %2151 = vrot.lane.b32.xlu0 %v1699, 91
        %v2152 = vpop.permute.xlu0 %2151
        %2153 = vrot.lane.b32.xlu0 %v1700, 91
        %v2154 = vpop.permute.xlu0 %2153
        %2155 = vrot.lane.b32.xlu0 %v1701, 91
        %v2156 = vpop.permute.xlu0 %2155
        %v2157 = vsel %vm1518, %v2152, %v2154
        %v2158 = vsel %vm1518, %v2154, %v2156
        %v2160 = vsel %vm1064, %v2150, 0
        %v2163 = vsel %vm1068, %v2157, 0
        %v2166 = vsel %vm1068, %v2158, 0
        %v2169 = vsel %vm1068, %v2156, 0
        %2171 = vmatpush.bf16.msra.mxu0 0
        %2172 = vmatpush.bf16.msra.mxu0 0
        %2173 = vmatpush.bf16.msra.mxu0 0
        %2174 = vmatpush.bf16.msra.mxu0 0
        %2175 = vmatpush.bf16.msra.mxu0 0
        %2176 = vmatpush.bf16.msra.mxu0 0
        %2177 = vmatpush.bf16.msra.mxu0 0
        %2178 = vmatpush.bf16.msra.mxu0 %v2163
        %2179 = vmatmul.bf16.gmra.mxu0 %v2160
        %v2180 = vpop.f32.mrf.mxu0
        %v2181 = vadd.f32 0.0, %v2180
        %v2182 = vpop.f32.mrf.mxu0
        %2183 = vdwg.mxu0
        %2184 = vmatpush.bf16.msra.mxu0 0
        %2185 = vmatpush.bf16.msra.mxu0 0
        %2186 = vmatpush.bf16.msra.mxu0 0
        %2187 = vmatpush.bf16.msra.mxu0 0
        %2188 = vmatpush.bf16.msra.mxu0 0
        %2189 = vmatpush.bf16.msra.mxu0 0
        %2190 = vmatpush.bf16.msra.mxu0 0
        %2191 = vmatpush.bf16.msra.mxu0 %v2166
        %2192 = vmatmul.bf16.gmra.mxu0 %v2160
        %v2193 = vpop.f32.mrf.mxu0
        %v2194 = vadd.f32 0.0, %v2193
        %v2195 = vpop.f32.mrf.mxu0
        %2196 = vdwg.mxu0
        %2197 = vmatpush.bf16.msra.mxu0 0
        %2198 = vmatpush.bf16.msra.mxu0 0
        %2199 = vmatpush.bf16.msra.mxu0 0
        %2200 = vmatpush.bf16.msra.mxu0 0
        %2201 = vmatpush.bf16.msra.mxu0 0
        %2202 = vmatpush.bf16.msra.mxu0 0
        %2203 = vmatpush.bf16.msra.mxu0 0
        %2204 = vmatpush.bf16.msra.mxu0 %v2169
        %2205 = vmatmul.bf16.gmra.mxu0 %v2160
        %v2206 = vpop.f32.mrf.mxu0
        %v2207 = vadd.f32 0.0, %v2206
        %v2208 = vpop.f32.mrf.mxu0
        %2209 = vdwg.mxu0
        %v2210 = vadd.f32 %v2143, %v2181
        %v2211 = vadd.f32 %v2144, %v2194
        %v2212 = vadd.f32 %v2145, %v2207
        %2213 = vst [vmem:[#allocation1] ss:$4 sm:$0xff] %v1687
        %v2214 = vld.sshfl [vmem:[#allocation1] sm:$0xff pattern:$0x73625140]
        %2216 = vrot.lane.b32.xlu0 %v2214, 64
        %v2217 = vpop.permute.xlu0 %2216
        %2218 = vrot.lane.b32.xlu0 %v1699, 90
        %v2219 = vpop.permute.xlu0 %2218
        %2220 = vrot.lane.b32.xlu0 %v1700, 90
        %v2221 = vpop.permute.xlu0 %2220
        %2222 = vrot.lane.b32.xlu0 %v1701, 90
        %v2223 = vpop.permute.xlu0 %2222
        %v2224 = vsel %vm1586, %v2219, %v2221
        %v2225 = vsel %vm1586, %v2221, %v2223
        %v2227 = vsel %vm1064, %v2217, 0
        %v2230 = vsel %vm1068, %v2224, 0
        %v2233 = vsel %vm1068, %v2225, 0
        %v2236 = vsel %vm1068, %v2223, 0
        %2238 = vmatpush.bf16.msra.mxu0 0
        %2239 = vmatpush.bf16.msra.mxu0 0
        %2240 = vmatpush.bf16.msra.mxu0 0
        %2241 = vmatpush.bf16.msra.mxu0 0
        %2242 = vmatpush.bf16.msra.mxu0 0
        %2243 = vmatpush.bf16.msra.mxu0 0
        %2244 = vmatpush.bf16.msra.mxu0 0
        %2245 = vmatpush.bf16.msra.mxu0 %v2230
        %2246 = vmatmul.bf16.gmra.mxu0 %v2227
        %v2247 = vpop.f32.mrf.mxu0
        %v2248 = vadd.f32 0.0, %v2247
        %v2249 = vpop.f32.mrf.mxu0
        %2250 = vdwg.mxu0
        %2251 = vmatpush.bf16.msra.mxu0 0
        %2252 = vmatpush.bf16.msra.mxu0 0
        %2253 = vmatpush.bf16.msra.mxu0 0
        %2254 = vmatpush.bf16.msra.mxu0 0
        %2255 = vmatpush.bf16.msra.mxu0 0
        %2256 = vmatpush.bf16.msra.mxu0 0
        %2257 = vmatpush.bf16.msra.mxu0 0
        %2258 = vmatpush.bf16.msra.mxu0 %v2233
        %2259 = vmatmul.bf16.gmra.mxu0 %v2227
        %v2260 = vpop.f32.mrf.mxu0
        %v2261 = vadd.f32 0.0, %v2260
        %v2262 = vpop.f32.mrf.mxu0
        %2263 = vdwg.mxu0
        %2264 = vmatpush.bf16.msra.mxu0 0
        %2265 = vmatpush.bf16.msra.mxu0 0
        %2266 = vmatpush.bf16.msra.mxu0 0
        %2267 = vmatpush.bf16.msra.mxu0 0
        %2268 = vmatpush.bf16.msra.mxu0 0
        %2269 = vmatpush.bf16.msra.mxu0 0
        %2270 = vmatpush.bf16.msra.mxu0 0
        %2271 = vmatpush.bf16.msra.mxu0 %v2236
        %2272 = vmatmul.bf16.gmra.mxu0 %v2227
        %v2273 = vpop.f32.mrf.mxu0
        %v2274 = vadd.f32 0.0, %v2273
        %v2275 = vpop.f32.mrf.mxu0
        %2276 = vdwg.mxu0
        %v2277 = vadd.f32 %v2210, %v2248
        %v2278 = vadd.f32 %v2211, %v2261
        %v2279 = vadd.f32 %v2212, %v2274
        %2281 = vset.pattern.permute.xlu0 0
        %2282 = vperm.xlu0 %2281, %v1686
        %v2283 = vpop.permute.xlu0 %2282
        %v2285 = vadd.f32 %v2277, %v2283
        %v2286 = vadd.f32 %v2278, %v2283
        %v2287 = vadd.f32 %v2279, %v2283
        %v2288 = vmax.f32 %v2285, 0.0
        %v2289 = vmax.f32 %v2286, 0.0
        %v2290 = vmax.f32 %v2287, 0.0
        %v2291 = vsel %vm1657, %v2288, 0.0
        %v2292 = vsel %vm1658, %v2289, 0.0
        %v2293 = vsel %vm1659, %v2290, 0.0
        %v2294 = vpack.c.bf16 %v2292, %v2291
        %v2295 = vpack.c.bf16 %v2293, %v2293
        %2298 = vrot.lane.b32.xlu0 %v2294, 19
        %v2299 = vpop.permute.xlu0 %2298
        %2300 = vrot.lane.b32.xlu0 %v2295, 19
        %v2301 = vpop.permute.xlu0 %2300
        %v2302 = vrot.slane %v2299, 4
        %v2303 = vsel %vm1672, %v2302, %v2299
        %v2304 = vsel %vm1672, %v2302, %v2301
        %2307 = vst.msk [vmem:[#allocation2] sm:$0x33] %vm1679, %v2303
        %2308 = vst.msk [vmem:[#allocation2 + $0x8] sm:$0x3] %vm1681, %v2304
        %v2309 = vld [vmem:[#allocation2] sm:$0x33]
        %v2310 = vld [vmem:[#allocation2 + $0x8] sm:$0x3]
        %s2311 = scalar_lea.vmem %s8, 8
        %v2312 = vld [vmem:[%s2311] sm:$0xf]
        %v2313 = vld [vmem:[%s7] sm:$0x3]
        %2315 = vst [vmem:[#allocation1] ss:$4 sm:$0xff] %v2313
        %v2316 = vld.sshfl [vmem:[#allocation1] sm:$0xff pattern:$0x73625140]
        %2318 = vrot.lane.b32.xlu0 %v2316, 124
        %v2319 = vpop.permute.xlu0 %2318
        %v2322 = vunpack.c.l.b16 %v2309
        %v2323 = vunpack.c.h.b16 %v2309
        %v2324 = vunpack.c.l.b16 %v2310
        %v2325 = vpack.c.b16 %v2322, %v2322
        %v2326 = vpack.c.b16 %v2323, %v2323
        %v2327 = vpack.c.b16 %v2324, %v2324
        %2328 = vrot.lane.b32.xlu0 %v2325, 127
        %v2329 = vpop.permute.xlu0 %2328
        %2330 = vrot.lane.b32.xlu0 %v2326, 127
        %v2331 = vpop.permute.xlu0 %2330
        %2332 = vrot.lane.b32.xlu0 %v2327, 127
        %v2333 = vpop.permute.xlu0 %2332
        %v2334 = vsel %vm1061, %v2329, %v2331
        %v2335 = vsel %vm1061, %v2331, %v2333
        %vm2336 = vcmask 31744
        %v2338 = vsel %vm2336, %v2319, 0
        %vm2340 = vcmask 1041408
        %v2342 = vsel %vm2340, %v2334, 0
        %v2345 = vsel %vm2340, %v2335, 0
        %v2348 = vsel %vm2340, %v2333, 0
        %2350 = vmatpush.bf16.msra.mxu0 0
        %2351 = vmatpush.bf16.msra.mxu0 0
        %2352 = vmatpush.bf16.msra.mxu0 0
        %2353 = vmatpush.bf16.msra.mxu0 0
        %2354 = vmatpush.bf16.msra.mxu0 0
        %2355 = vmatpush.bf16.msra.mxu0 0
        %2356 = vmatpush.bf16.msra.mxu0 0
        %2357 = vmatpush.bf16.msra.mxu0 %v2342
        %2358 = vmatmul.bf16.gmra.mxu0 %v2338
        %v2359 = vpop.f32.mrf.mxu0
        %v2360 = vadd.f32 0.0, %v2359
        %v2361 = vpop.f32.mrf.mxu0
        %2362 = vdwg.mxu0
        %2363 = vmatpush.bf16.msra.mxu0 0
        %2364 = vmatpush.bf16.msra.mxu0 0
        %2365 = vmatpush.bf16.msra.mxu0 0
        %2366 = vmatpush.bf16.msra.mxu0 0
        %2367 = vmatpush.bf16.msra.mxu0 0
        %2368 = vmatpush.bf16.msra.mxu0 0
        %2369 = vmatpush.bf16.msra.mxu0 0
        %2370 = vmatpush.bf16.msra.mxu0 %v2345
        %2371 = vmatmul.bf16.gmra.mxu0 %v2338
        %v2372 = vpop.f32.mrf.mxu0
        %v2373 = vadd.f32 0.0, %v2372
        %v2374 = vpop.f32.mrf.mxu0
        %2375 = vdwg.mxu0
        %2376 = vmatpush.bf16.msra.mxu0 0
        %2377 = vmatpush.bf16.msra.mxu0 0
        %2378 = vmatpush.bf16.msra.mxu0 0
        %2379 = vmatpush.bf16.msra.mxu0 0
        %2380 = vmatpush.bf16.msra.mxu0 0
        %2381 = vmatpush.bf16.msra.mxu0 0
        %2382 = vmatpush.bf16.msra.mxu0 0
        %2383 = vmatpush.bf16.msra.mxu0 %v2348
        %2384 = vmatmul.bf16.gmra.mxu0 %v2338
        %v2385 = vpop.f32.mrf.mxu0
        %v2386 = vadd.f32 0.0, %v2385
        %v2387 = vpop.f32.mrf.mxu0
        %2388 = vdwg.mxu0
        %v2389 = vsel %vm2336, %v2313, 0
        %v2392 = vsel %vm2340, %v2325, 0
        %v2395 = vsel %vm2340, %v2326, 0
        %v2398 = vsel %vm2340, %v2327, 0
        %2400 = vmatpush.bf16.msra.mxu0 0
        %2401 = vmatpush.bf16.msra.mxu0 0
        %2402 = vmatpush.bf16.msra.mxu0 0
        %2403 = vmatpush.bf16.msra.mxu0 0
        %2404 = vmatpush.bf16.msra.mxu0 0
        %2405 = vmatpush.bf16.msra.mxu0 0
        %2406 = vmatpush.bf16.msra.mxu0 0
        %2407 = vmatpush.bf16.msra.mxu0 %v2392
        %2408 = vmatmul.bf16.gmra.mxu0 %v2389
        %v2409 = vpop.f32.mrf.mxu0
        %v2410 = vadd.f32 %v2360, %v2409
        %v2411 = vpop.f32.mrf.mxu0
        %2412 = vdwg.mxu0
        %2413 = vmatpush.bf16.msra.mxu0 0
        %2414 = vmatpush.bf16.msra.mxu0 0
        %2415 = vmatpush.bf16.msra.mxu0 0
        %2416 = vmatpush.bf16.msra.mxu0 0
        %2417 = vmatpush.bf16.msra.mxu0 0
        %2418 = vmatpush.bf16.msra.mxu0 0
        %2419 = vmatpush.bf16.msra.mxu0 0
        %2420 = vmatpush.bf16.msra.mxu0 %v2395
        %2421 = vmatmul.bf16.gmra.mxu0 %v2389
        %v2422 = vpop.f32.mrf.mxu0
        %v2423 = vadd.f32 %v2373, %v2422
        %v2424 = vpop.f32.mrf.mxu0
        %2425 = vdwg.mxu0
        %2426 = vmatpush.bf16.msra.mxu0 0
        %2427 = vmatpush.bf16.msra.mxu0 0
        %2428 = vmatpush.bf16.msra.mxu0 0
        %2429 = vmatpush.bf16.msra.mxu0 0
        %2430 = vmatpush.bf16.msra.mxu0 0
        %2431 = vmatpush.bf16.msra.mxu0 0
        %2432 = vmatpush.bf16.msra.mxu0 0
        %2433 = vmatpush.bf16.msra.mxu0 %v2398
        %2434 = vmatmul.bf16.gmra.mxu0 %v2389
        %v2435 = vpop.f32.mrf.mxu0
        %v2436 = vadd.f32 %v2386, %v2435
        %v2437 = vpop.f32.mrf.mxu0
        %2438 = vdwg.mxu0
        %2439 = vst [vmem:[#allocation1] ss:$4 sm:$0xff] %v2313
        %v2440 = vld.sshfl [vmem:[#allocation1] sm:$0xff pattern:$0x73625140]
        %2442 = vrot.lane.b32.xlu0 %v2440, 120
        %v2443 = vpop.permute.xlu0 %2442
        %2444 = vrot.lane.b32.xlu0 %v2325, 126
        %v2445 = vpop.permute.xlu0 %2444
        %2446 = vrot.lane.b32.xlu0 %v2326, 126
        %v2447 = vpop.permute.xlu0 %2446
        %2448 = vrot.lane.b32.xlu0 %v2327, 126
        %v2449 = vpop.permute.xlu0 %2448
        %v2450 = vsel %vm1178, %v2445, %v2447
        %v2451 = vsel %vm1178, %v2447, %v2449
        %v2453 = vsel %vm2336, %v2443, 0
        %v2456 = vsel %vm2340, %v2450, 0
        %v2459 = vsel %vm2340, %v2451, 0
        %v2462 = vsel %vm2340, %v2449, 0
        %2464 = vmatpush.bf16.msra.mxu0 0
        %2465 = vmatpush.bf16.msra.mxu0 0
        %2466 = vmatpush.bf16.msra.mxu0 0
        %2467 = vmatpush.bf16.msra.mxu0 0
        %2468 = vmatpush.bf16.msra.mxu0 0
        %2469 = vmatpush.bf16.msra.mxu0 0
        %2470 = vmatpush.bf16.msra.mxu0 0
        %2471 = vmatpush.bf16.msra.mxu0 %v2456
        %2472 = vmatmul.bf16.gmra.mxu0 %v2453
        %v2473 = vpop.f32.mrf.mxu0
        %v2474 = vadd.f32 0.0, %v2473
        %v2475 = vpop.f32.mrf.mxu0
        %2476 = vdwg.mxu0
        %2477 = vmatpush.bf16.msra.mxu0 0
        %2478 = vmatpush.bf16.msra.mxu0 0
        %2479 = vmatpush.bf16.msra.mxu0 0
        %2480 = vmatpush.bf16.msra.mxu0 0
        %2481 = vmatpush.bf16.msra.mxu0 0
        %2482 = vmatpush.bf16.msra.mxu0 0
        %2483 = vmatpush.bf16.msra.mxu0 0
        %2484 = vmatpush.bf16.msra.mxu0 %v2459
        %2485 = vmatmul.bf16.gmra.mxu0 %v2453
        %v2486 = vpop.f32.mrf.mxu0
        %v2487 = vadd.f32 0.0, %v2486
        %v2488 = vpop.f32.mrf.mxu0
        %2489 = vdwg.mxu0
        %2490 = vmatpush.bf16.msra.mxu0 0
        %2491 = vmatpush.bf16.msra.mxu0 0
        %2492 = vmatpush.bf16.msra.mxu0 0
        %2493 = vmatpush.bf16.msra.mxu0 0
        %2494 = vmatpush.bf16.msra.mxu0 0
        %2495 = vmatpush.bf16.msra.mxu0 0
        %2496 = vmatpush.bf16.msra.mxu0 0
        %2497 = vmatpush.bf16.msra.mxu0 %v2462
        %2498 = vmatmul.bf16.gmra.mxu0 %v2453
        %v2499 = vpop.f32.mrf.mxu0
        %v2500 = vadd.f32 0.0, %v2499
        %v2501 = vpop.f32.mrf.mxu0
        %2502 = vdwg.mxu0
        %v2503 = vadd.f32 %v2410, %v2474
        %v2504 = vadd.f32 %v2423, %v2487
        %v2505 = vadd.f32 %v2436, %v2500
        %2506 = vst [vmem:[#allocation1] ss:$4 sm:$0xff] %v2313
        %v2507 = vld.sshfl [vmem:[#allocation1] sm:$0xff pattern:$0x73625140]
        %2509 = vrot.lane.b32.xlu0 %v2507, 116
        %v2510 = vpop.permute.xlu0 %2509
        %2511 = vrot.lane.b32.xlu0 %v2325, 110
        %v2512 = vpop.permute.xlu0 %2511
        %2513 = vrot.lane.b32.xlu0 %v2326, 110
        %v2514 = vpop.permute.xlu0 %2513
        %2515 = vrot.lane.b32.xlu0 %v2327, 110
        %v2516 = vpop.permute.xlu0 %2515
        %v2517 = vsel %vm1246, %v2512, %v2514
        %v2518 = vsel %vm1246, %v2514, %v2516
        %v2520 = vsel %vm2336, %v2510, 0
        %v2523 = vsel %vm2340, %v2517, 0
        %v2526 = vsel %vm2340, %v2518, 0
        %v2529 = vsel %vm2340, %v2516, 0
        %2531 = vmatpush.bf16.msra.mxu0 0
        %2532 = vmatpush.bf16.msra.mxu0 0
        %2533 = vmatpush.bf16.msra.mxu0 0
        %2534 = vmatpush.bf16.msra.mxu0 0
        %2535 = vmatpush.bf16.msra.mxu0 0
        %2536 = vmatpush.bf16.msra.mxu0 0
        %2537 = vmatpush.bf16.msra.mxu0 0
        %2538 = vmatpush.bf16.msra.mxu0 %v2523
        %2539 = vmatmul.bf16.gmra.mxu0 %v2520
        %v2540 = vpop.f32.mrf.mxu0
        %v2541 = vadd.f32 0.0, %v2540
        %v2542 = vpop.f32.mrf.mxu0
        %2543 = vdwg.mxu0
        %2544 = vmatpush.bf16.msra.mxu0 0
        %2545 = vmatpush.bf16.msra.mxu0 0
        %2546 = vmatpush.bf16.msra.mxu0 0
        %2547 = vmatpush.bf16.msra.mxu0 0
        %2548 = vmatpush.bf16.msra.mxu0 0
        %2549 = vmatpush.bf16.msra.mxu0 0
        %2550 = vmatpush.bf16.msra.mxu0 0
        %2551 = vmatpush.bf16.msra.mxu0 %v2526
        %2552 = vmatmul.bf16.gmra.mxu0 %v2520
        %v2553 = vpop.f32.mrf.mxu0
        %v2554 = vadd.f32 0.0, %v2553
        %v2555 = vpop.f32.mrf.mxu0
        %2556 = vdwg.mxu0
        %2557 = vmatpush.bf16.msra.mxu0 0
        %2558 = vmatpush.bf16.msra.mxu0 0
        %2559 = vmatpush.bf16.msra.mxu0 0
        %2560 = vmatpush.bf16.msra.mxu0 0
        %2561 = vmatpush.bf16.msra.mxu0 0
        %2562 = vmatpush.bf16.msra.mxu0 0
        %2563 = vmatpush.bf16.msra.mxu0 0
        %2564 = vmatpush.bf16.msra.mxu0 %v2529
        %2565 = vmatmul.bf16.gmra.mxu0 %v2520
        %v2566 = vpop.f32.mrf.mxu0
        %v2567 = vadd.f32 0.0, %v2566
        %v2568 = vpop.f32.mrf.mxu0
        %2569 = vdwg.mxu0
        %v2570 = vadd.f32 %v2503, %v2541
        %v2571 = vadd.f32 %v2504, %v2554
        %v2572 = vadd.f32 %v2505, %v2567
        %2573 = vst [vmem:[#allocation1] ss:$4 sm:$0xff] %v2313
        %v2574 = vld.sshfl [vmem:[#allocation1] sm:$0xff pattern:$0x73625140]
        %2576 = vrot.lane.b32.xlu0 %v2574, 112
        %v2577 = vpop.permute.xlu0 %2576
        %2578 = vrot.lane.b32.xlu0 %v2325, 109
        %v2579 = vpop.permute.xlu0 %2578
        %2580 = vrot.lane.b32.xlu0 %v2326, 109
        %v2581 = vpop.permute.xlu0 %2580
        %2582 = vrot.lane.b32.xlu0 %v2327, 109
        %v2583 = vpop.permute.xlu0 %2582
        %v2584 = vsel %vm1314, %v2579, %v2581
        %v2585 = vsel %vm1314, %v2581, %v2583
        %v2587 = vsel %vm2336, %v2577, 0
        %v2590 = vsel %vm2340, %v2584, 0
        %v2593 = vsel %vm2340, %v2585, 0
        %v2596 = vsel %vm2340, %v2583, 0
        %2598 = vmatpush.bf16.msra.mxu0 0
        %2599 = vmatpush.bf16.msra.mxu0 0
        %2600 = vmatpush.bf16.msra.mxu0 0
        %2601 = vmatpush.bf16.msra.mxu0 0
        %2602 = vmatpush.bf16.msra.mxu0 0
        %2603 = vmatpush.bf16.msra.mxu0 0
        %2604 = vmatpush.bf16.msra.mxu0 0
        %2605 = vmatpush.bf16.msra.mxu0 %v2590
        %2606 = vmatmul.bf16.gmra.mxu0 %v2587
        %v2607 = vpop.f32.mrf.mxu0
        %v2608 = vadd.f32 0.0, %v2607
        %v2609 = vpop.f32.mrf.mxu0
        %2610 = vdwg.mxu0
        %2611 = vmatpush.bf16.msra.mxu0 0
        %2612 = vmatpush.bf16.msra.mxu0 0
        %2613 = vmatpush.bf16.msra.mxu0 0
        %2614 = vmatpush.bf16.msra.mxu0 0
        %2615 = vmatpush.bf16.msra.mxu0 0
        %2616 = vmatpush.bf16.msra.mxu0 0
        %2617 = vmatpush.bf16.msra.mxu0 0
        %2618 = vmatpush.bf16.msra.mxu0 %v2593
        %2619 = vmatmul.bf16.gmra.mxu0 %v2587
        %v2620 = vpop.f32.mrf.mxu0
        %v2621 = vadd.f32 0.0, %v2620
        %v2622 = vpop.f32.mrf.mxu0
        %2623 = vdwg.mxu0
        %2624 = vmatpush.bf16.msra.mxu0 0
        %2625 = vmatpush.bf16.msra.mxu0 0
        %2626 = vmatpush.bf16.msra.mxu0 0
        %2627 = vmatpush.bf16.msra.mxu0 0
        %2628 = vmatpush.bf16.msra.mxu0 0
        %2629 = vmatpush.bf16.msra.mxu0 0
        %2630 = vmatpush.bf16.msra.mxu0 0
        %2631 = vmatpush.bf16.msra.mxu0 %v2596
        %2632 = vmatmul.bf16.gmra.mxu0 %v2587
        %v2633 = vpop.f32.mrf.mxu0
        %v2634 = vadd.f32 0.0, %v2633
        %v2635 = vpop.f32.mrf.mxu0
        %2636 = vdwg.mxu0
        %v2637 = vadd.f32 %v2570, %v2608
        %v2638 = vadd.f32 %v2571, %v2621
        %v2639 = vadd.f32 %v2572, %v2634
        %2640 = vst [vmem:[#allocation1] ss:$4 sm:$0xff] %v2313
        %v2641 = vld.sshfl [vmem:[#allocation1] sm:$0xff pattern:$0x73625140]
        %2643 = vrot.lane.b32.xlu0 %v2641, 108
        %v2644 = vpop.permute.xlu0 %2643
        %2645 = vrot.lane.b32.xlu0 %v2325, 108
        %v2646 = vpop.permute.xlu0 %2645
        %2647 = vrot.lane.b32.xlu0 %v2326, 108
        %v2648 = vpop.permute.xlu0 %2647
        %2649 = vrot.lane.b32.xlu0 %v2327, 108
        %v2650 = vpop.permute.xlu0 %2649
        %v2651 = vsel %vm1382, %v2646, %v2648
        %v2652 = vsel %vm1382, %v2648, %v2650
        %v2654 = vsel %vm2336, %v2644, 0
        %v2657 = vsel %vm2340, %v2651, 0
        %v2660 = vsel %vm2340, %v2652, 0
        %v2663 = vsel %vm2340, %v2650, 0
        %2665 = vmatpush.bf16.msra.mxu0 0
        %2666 = vmatpush.bf16.msra.mxu0 0
        %2667 = vmatpush.bf16.msra.mxu0 0
        %2668 = vmatpush.bf16.msra.mxu0 0
        %2669 = vmatpush.bf16.msra.mxu0 0
        %2670 = vmatpush.bf16.msra.mxu0 0
        %2671 = vmatpush.bf16.msra.mxu0 0
        %2672 = vmatpush.bf16.msra.mxu0 %v2657
        %2673 = vmatmul.bf16.gmra.mxu0 %v2654
        %v2674 = vpop.f32.mrf.mxu0
        %v2675 = vadd.f32 0.0, %v2674
        %v2676 = vpop.f32.mrf.mxu0
        %2677 = vdwg.mxu0
        %2678 = vmatpush.bf16.msra.mxu0 0
        %2679 = vmatpush.bf16.msra.mxu0 0
        %2680 = vmatpush.bf16.msra.mxu0 0
        %2681 = vmatpush.bf16.msra.mxu0 0
        %2682 = vmatpush.bf16.msra.mxu0 0
        %2683 = vmatpush.bf16.msra.mxu0 0
        %2684 = vmatpush.bf16.msra.mxu0 0
        %2685 = vmatpush.bf16.msra.mxu0 %v2660
        %2686 = vmatmul.bf16.gmra.mxu0 %v2654
        %v2687 = vpop.f32.mrf.mxu0
        %v2688 = vadd.f32 0.0, %v2687
        %v2689 = vpop.f32.mrf.mxu0
        %2690 = vdwg.mxu0
        %2691 = vmatpush.bf16.msra.mxu0 0
        %2692 = vmatpush.bf16.msra.mxu0 0
        %2693 = vmatpush.bf16.msra.mxu0 0
        %2694 = vmatpush.bf16.msra.mxu0 0
        %2695 = vmatpush.bf16.msra.mxu0 0
        %2696 = vmatpush.bf16.msra.mxu0 0
        %2697 = vmatpush.bf16.msra.mxu0 0
        %2698 = vmatpush.bf16.msra.mxu0 %v2663
        %2699 = vmatmul.bf16.gmra.mxu0 %v2654
        %v2700 = vpop.f32.mrf.mxu0
        %v2701 = vadd.f32 0.0, %v2700
        %v2702 = vpop.f32.mrf.mxu0
        %2703 = vdwg.mxu0
        %v2704 = vadd.f32 %v2637, %v2675
        %v2705 = vadd.f32 %v2638, %v2688
        %v2706 = vadd.f32 %v2639, %v2701
        %2707 = vst [vmem:[#allocation1] ss:$4 sm:$0xff] %v2313
        %v2708 = vld.sshfl [vmem:[#allocation1] sm:$0xff pattern:$0x73625140]
        %2710 = vrot.lane.b32.xlu0 %v2708, 104
        %v2711 = vpop.permute.xlu0 %2710
        %2712 = vrot.lane.b32.xlu0 %v2325, 92
        %v2713 = vpop.permute.xlu0 %2712
        %2714 = vrot.lane.b32.xlu0 %v2326, 92
        %v2715 = vpop.permute.xlu0 %2714
        %2716 = vrot.lane.b32.xlu0 %v2327, 92
        %v2717 = vpop.permute.xlu0 %2716
        %v2718 = vsel %vm1450, %v2713, %v2715
        %v2719 = vsel %vm1450, %v2715, %v2717
        %v2721 = vsel %vm2336, %v2711, 0
        %v2724 = vsel %vm2340, %v2718, 0
        %v2727 = vsel %vm2340, %v2719, 0
        %v2730 = vsel %vm2340, %v2717, 0
        %2732 = vmatpush.bf16.msra.mxu0 0
        %2733 = vmatpush.bf16.msra.mxu0 0
        %2734 = vmatpush.bf16.msra.mxu0 0
        %2735 = vmatpush.bf16.msra.mxu0 0
        %2736 = vmatpush.bf16.msra.mxu0 0
        %2737 = vmatpush.bf16.msra.mxu0 0
        %2738 = vmatpush.bf16.msra.mxu0 0
        %2739 = vmatpush.bf16.msra.mxu0 %v2724
        %2740 = vmatmul.bf16.gmra.mxu0 %v2721
        %v2741 = vpop.f32.mrf.mxu0
        %v2742 = vadd.f32 0.0, %v2741
        %v2743 = vpop.f32.mrf.mxu0
        %2744 = vdwg.mxu0
        %2745 = vmatpush.bf16.msra.mxu0 0
        %2746 = vmatpush.bf16.msra.mxu0 0
        %2747 = vmatpush.bf16.msra.mxu0 0
        %2748 = vmatpush.bf16.msra.mxu0 0
        %2749 = vmatpush.bf16.msra.mxu0 0
        %2750 = vmatpush.bf16.msra.mxu0 0
        %2751 = vmatpush.bf16.msra.mxu0 0
        %2752 = vmatpush.bf16.msra.mxu0 %v2727
        %2753 = vmatmul.bf16.gmra.mxu0 %v2721
        %v2754 = vpop.f32.mrf.mxu0
        %v2755 = vadd.f32 0.0, %v2754
        %v2756 = vpop.f32.mrf.mxu0
        %2757 = vdwg.mxu0
        %2758 = vmatpush.bf16.msra.mxu0 0
        %2759 = vmatpush.bf16.msra.mxu0 0
        %2760 = vmatpush.bf16.msra.mxu0 0
        %2761 = vmatpush.bf16.msra.mxu0 0
        %2762 = vmatpush.bf16.msra.mxu0 0
        %2763 = vmatpush.bf16.msra.mxu0 0
        %2764 = vmatpush.bf16.msra.mxu0 0
        %2765 = vmatpush.bf16.msra.mxu0 %v2730
        %2766 = vmatmul.bf16.gmra.mxu0 %v2721
        %v2767 = vpop.f32.mrf.mxu0
        %v2768 = vadd.f32 0.0, %v2767
        %v2769 = vpop.f32.mrf.mxu0
        %2770 = vdwg.mxu0
        %v2771 = vadd.f32 %v2704, %v2742
        %v2772 = vadd.f32 %v2705, %v2755
        %v2773 = vadd.f32 %v2706, %v2768
        %2774 = vst [vmem:[#allocation1] ss:$4 sm:$0xff] %v2313
        %v2775 = vld.sshfl [vmem:[#allocation1] sm:$0xff pattern:$0x73625140]
        %2777 = vrot.lane.b32.xlu0 %v2775, 100
        %v2778 = vpop.permute.xlu0 %2777
        %2779 = vrot.lane.b32.xlu0 %v2325, 91
        %v2780 = vpop.permute.xlu0 %2779
        %2781 = vrot.lane.b32.xlu0 %v2326, 91
        %v2782 = vpop.permute.xlu0 %2781
        %2783 = vrot.lane.b32.xlu0 %v2327, 91
        %v2784 = vpop.permute.xlu0 %2783
        %v2785 = vsel %vm1518, %v2780, %v2782
        %v2786 = vsel %vm1518, %v2782, %v2784
        %v2788 = vsel %vm2336, %v2778, 0
        %v2791 = vsel %vm2340, %v2785, 0
        %v2794 = vsel %vm2340, %v2786, 0
        %v2797 = vsel %vm2340, %v2784, 0
        %2799 = vmatpush.bf16.msra.mxu0 0
        %2800 = vmatpush.bf16.msra.mxu0 0
        %2801 = vmatpush.bf16.msra.mxu0 0
        %2802 = vmatpush.bf16.msra.mxu0 0
        %2803 = vmatpush.bf16.msra.mxu0 0
        %2804 = vmatpush.bf16.msra.mxu0 0
        %2805 = vmatpush.bf16.msra.mxu0 0
        %2806 = vmatpush.bf16.msra.mxu0 %v2791
        %2807 = vmatmul.bf16.gmra.mxu0 %v2788
        %v2808 = vpop.f32.mrf.mxu0
        %v2809 = vadd.f32 0.0, %v2808
        %v2810 = vpop.f32.mrf.mxu0
        %2811 = vdwg.mxu0
        %2812 = vmatpush.bf16.msra.mxu0 0
        %2813 = vmatpush.bf16.msra.mxu0 0
        %2814 = vmatpush.bf16.msra.mxu0 0
        %2815 = vmatpush.bf16.msra.mxu0 0
        %2816 = vmatpush.bf16.msra.mxu0 0
        %2817 = vmatpush.bf16.msra.mxu0 0
        %2818 = vmatpush.bf16.msra.mxu0 0
        %2819 = vmatpush.bf16.msra.mxu0 %v2794
        %2820 = vmatmul.bf16.gmra.mxu0 %v2788
        %v2821 = vpop.f32.mrf.mxu0
        %v2822 = vadd.f32 0.0, %v2821
        %v2823 = vpop.f32.mrf.mxu0
        %2824 = vdwg.mxu0
        %2825 = vmatpush.bf16.msra.mxu0 0
        %2826 = vmatpush.bf16.msra.mxu0 0
        %2827 = vmatpush.bf16.msra.mxu0 0
        %2828 = vmatpush.bf16.msra.mxu0 0
        %2829 = vmatpush.bf16.msra.mxu0 0
        %2830 = vmatpush.bf16.msra.mxu0 0
        %2831 = vmatpush.bf16.msra.mxu0 0
        %2832 = vmatpush.bf16.msra.mxu0 %v2797
        %2833 = vmatmul.bf16.gmra.mxu0 %v2788
        %v2834 = vpop.f32.mrf.mxu0
        %v2835 = vadd.f32 0.0, %v2834
        %v2836 = vpop.f32.mrf.mxu0
        %2837 = vdwg.mxu0
        %v2838 = vadd.f32 %v2771, %v2809
        %v2839 = vadd.f32 %v2772, %v2822
        %v2840 = vadd.f32 %v2773, %v2835
        %2841 = vst [vmem:[#allocation1] ss:$4 sm:$0xff] %v2313
        %v2842 = vld.sshfl [vmem:[#allocation1] sm:$0xff pattern:$0x73625140]
        %2844 = vrot.lane.b32.xlu0 %v2842, 96
        %v2845 = vpop.permute.xlu0 %2844
        %2846 = vrot.lane.b32.xlu0 %v2325, 90
        %v2847 = vpop.permute.xlu0 %2846
        %2848 = vrot.lane.b32.xlu0 %v2326, 90
        %v2849 = vpop.permute.xlu0 %2848
        %2850 = vrot.lane.b32.xlu0 %v2327, 90
        %v2851 = vpop.permute.xlu0 %2850
        %v2852 = vsel %vm1586, %v2847, %v2849
        %v2853 = vsel %vm1586, %v2849, %v2851
        %v2855 = vsel %vm2336, %v2845, 0
        %v2858 = vsel %vm2340, %v2852, 0
        %v2861 = vsel %vm2340, %v2853, 0
        %v2864 = vsel %vm2340, %v2851, 0
        %2866 = vmatpush.bf16.msra.mxu0 0
        %2867 = vmatpush.bf16.msra.mxu0 0
        %2868 = vmatpush.bf16.msra.mxu0 0
        %2869 = vmatpush.bf16.msra.mxu0 0
        %2870 = vmatpush.bf16.msra.mxu0 0
        %2871 = vmatpush.bf16.msra.mxu0 0
        %2872 = vmatpush.bf16.msra.mxu0 0
        %2873 = vmatpush.bf16.msra.mxu0 %v2858
        %2874 = vmatmul.bf16.gmra.mxu0 %v2855
        %v2875 = vpop.f32.mrf.mxu0
        %v2876 = vadd.f32 0.0, %v2875
        %v2877 = vpop.f32.mrf.mxu0
        %2878 = vdwg.mxu0
        %2879 = vmatpush.bf16.msra.mxu0 0
        %2880 = vmatpush.bf16.msra.mxu0 0
        %2881 = vmatpush.bf16.msra.mxu0 0
        %2882 = vmatpush.bf16.msra.mxu0 0
        %2883 = vmatpush.bf16.msra.mxu0 0
        %2884 = vmatpush.bf16.msra.mxu0 0
        %2885 = vmatpush.bf16.msra.mxu0 0
        %2886 = vmatpush.bf16.msra.mxu0 %v2861
        %2887 = vmatmul.bf16.gmra.mxu0 %v2855
        %v2888 = vpop.f32.mrf.mxu0
        %v2889 = vadd.f32 0.0, %v2888
        %v2890 = vpop.f32.mrf.mxu0
        %2891 = vdwg.mxu0
        %2892 = vmatpush.bf16.msra.mxu0 0
        %2893 = vmatpush.bf16.msra.mxu0 0
        %2894 = vmatpush.bf16.msra.mxu0 0
        %2895 = vmatpush.bf16.msra.mxu0 0
        %2896 = vmatpush.bf16.msra.mxu0 0
        %2897 = vmatpush.bf16.msra.mxu0 0
        %2898 = vmatpush.bf16.msra.mxu0 0
        %2899 = vmatpush.bf16.msra.mxu0 %v2864
        %2900 = vmatmul.bf16.gmra.mxu0 %v2855
        %v2901 = vpop.f32.mrf.mxu0
        %v2902 = vadd.f32 0.0, %v2901
        %v2903 = vpop.f32.mrf.mxu0
        %2904 = vdwg.mxu0
        %v2905 = vadd.f32 %v2838, %v2876
        %v2906 = vadd.f32 %v2839, %v2889
        %v2907 = vadd.f32 %v2840, %v2902
        %2909 = vset.pattern.permute.xlu0 0
        %2910 = vperm.xlu0 %2909, %v2312
        %v2911 = vpop.permute.xlu0 %2910
        %v2913 = vadd.f32 %v2905, %v2911
        %v2914 = vadd.f32 %v2906, %v2911
        %v2915 = vadd.f32 %v2907, %v2911
        %v2916 = vmax.f32 %v2913, 0.0
        %v2917 = vmax.f32 %v2914, 0.0
        %v2918 = vmax.f32 %v2915, 0.0
        %v2919 = vpack.c.bf16 %v2916, %v2916
        %v2920 = vpack.c.bf16 %v2917, %v2917
        %v2921 = vpack.c.bf16 %v2918, %v2918
        %v2922 = vld [vmem:[#allocation5] sm:$0xff]
        %v2923 = vld [vmem:[#allocation5 + $0x8] sm:$0xff]
        %v2924 = vld [vmem:[#allocation5 + $0x10] sm:$0xff]
        %v2925 = vld [vmem:[#allocation5 + $0x18] sm:$0xff]
        %v2926 = vld [vmem:[#allocation5 + $0x20] sm:$0xff]
        %v2927 = vld [vmem:[#allocation5 + $0x28] sm:$0xff]
        %v2928 = vld [vmem:[#allocation5 + $0x30] sm:$0xff]
        %v2929 = vld [vmem:[#allocation5 + $0x38] sm:$0xff]
        %v2930 = vld [vmem:[#allocation5 + $0x40] sm:$0xff]
        %v2931 = vld [vmem:[#allocation5 + $0x48] sm:$0xff]
        %v2932 = vld [vmem:[#allocation5 + $0x50] sm:$0xff]
        %v2933 = vld [vmem:[#allocation5 + $0x58] sm:$0xff]
        %v2934 = vld [vmem:[#allocation5 + $0x60] sm:$0xff]
        %v2935 = vld [vmem:[#allocation5 + $0x68] sm:$0xff]
        %v2936 = vld [vmem:[#allocation5 + $0x70] sm:$0xff]
        %v2937 = vld [vmem:[#allocation5 + $0x78] sm:$0xff]
        %v2938 = vld [vmem:[#allocation5 + $0x80] sm:$0xff]
        %v2939 = vld [vmem:[#allocation5 + $0x88] sm:$0xff]
        %v2940 = vld [vmem:[#allocation5 + $0x90] sm:$0xff]
        %v2941 = vld [vmem:[#allocation5 + $0x98] sm:$0xff]
        %v2942 = vld [vmem:[#allocation5 + $0xa0] sm:$0xff]
        %v2943 = vld [vmem:[#allocation5 + $0xa8] sm:$0xff]
        %v2944 = vld [vmem:[#allocation5 + $0xb0] sm:$0xff]
        %v2945 = vld [vmem:[#allocation5 + $0xb8] sm:$0xff]
        %v2946 = vld [vmem:[#allocation5 + $0xc0] sm:$0xff]
        %v2947 = vld [vmem:[#allocation5 + $0xc8] sm:$0xff]
        %v2948 = vld [vmem:[#allocation5 + $0xd0] sm:$0xff]
        %v2949 = vld [vmem:[#allocation5 + $0xd8] sm:$0xff]
        %v2950 = vld [vmem:[#allocation5 + $0xe0] sm:$0xff]
        %v2951 = vld [vmem:[#allocation5 + $0xe8] sm:$0xff]
        %v2952 = vld [vmem:[#allocation5 + $0xf0] sm:$0xff]
        %v2953 = vld [vmem:[#allocation5 + $0xf8] sm:$0xff]
        %v2954 = vld [vmem:[#allocation5 + $0x100] sm:$0xff]
        %v2955 = vld [vmem:[#allocation5 + $0x108] sm:$0xff]
        %v2956 = vld [vmem:[#allocation5 + $0x110] sm:$0xff]
        %v2957 = vld [vmem:[#allocation5 + $0x118] sm:$0xff]
        %v2994 = vunpack.c.l.b16 %v2922
        %v2995 = vunpack.c.h.b16 %v2922
        %v2996 = vunpack.c.l.b16 %v2923
        %v2997 = vunpack.c.h.b16 %v2923
        %v2998 = vunpack.c.l.b16 %v2924
        %v2999 = vunpack.c.h.b16 %v2924
        %v3000 = vunpack.c.l.b16 %v2925
        %v3001 = vunpack.c.h.b16 %v2925
        %v3002 = vunpack.c.l.b16 %v2926
        %v3003 = vunpack.c.h.b16 %v2926
        %v3004 = vunpack.c.l.b16 %v2927
        %v3005 = vunpack.c.h.b16 %v2927
        %v3006 = vunpack.c.l.b16 %v2928
        %v3007 = vunpack.c.h.b16 %v2928
        %v3008 = vunpack.c.l.b16 %v2929
        %v3009 = vunpack.c.h.b16 %v2929
        %v3010 = vunpack.c.l.b16 %v2930
        %v3011 = vunpack.c.h.b16 %v2930
        %v3012 = vunpack.c.l.b16 %v2931
        %v3013 = vunpack.c.h.b16 %v2931
        %v3014 = vunpack.c.l.b16 %v2932
        %v3015 = vunpack.c.h.b16 %v2932
        %v3016 = vunpack.c.l.b16 %v2933
        %v3017 = vunpack.c.h.b16 %v2933
        %v3018 = vunpack.c.l.b16 %v2934
        %v3019 = vunpack.c.h.b16 %v2934
        %v3020 = vunpack.c.l.b16 %v2935
        %v3021 = vunpack.c.h.b16 %v2935
        %v3022 = vunpack.c.l.b16 %v2936
        %v3023 = vunpack.c.h.b16 %v2936
        %v3024 = vunpack.c.l.b16 %v2937
        %v3025 = vunpack.c.h.b16 %v2937
        %v3026 = vunpack.c.l.b16 %v2938
        %v3027 = vunpack.c.h.b16 %v2938
        %v3028 = vunpack.c.l.b16 %v2939
        %v3029 = vunpack.c.h.b16 %v2939
        %v3030 = vunpack.c.l.b16 %v2940
        %v3031 = vunpack.c.h.b16 %v2940
        %v3032 = vunpack.c.l.b16 %v2941
        %v3033 = vunpack.c.h.b16 %v2941
        %v3034 = vunpack.c.l.b16 %v2942
        %v3035 = vunpack.c.h.b16 %v2942
        %v3036 = vunpack.c.l.b16 %v2943
        %v3037 = vunpack.c.h.b16 %v2943
        %v3038 = vunpack.c.l.b16 %v2944
        %v3039 = vunpack.c.h.b16 %v2944
        %v3040 = vunpack.c.l.b16 %v2945
        %v3041 = vunpack.c.h.b16 %v2945
        %v3042 = vunpack.c.l.b16 %v2946
        %v3043 = vunpack.c.h.b16 %v2946
        %v3044 = vunpack.c.l.b16 %v2947
        %v3045 = vunpack.c.h.b16 %v2947
        %v3046 = vunpack.c.l.b16 %v2948
        %v3047 = vunpack.c.h.b16 %v2948
        %v3048 = vunpack.c.l.b16 %v2949
        %v3049 = vunpack.c.h.b16 %v2949
        %v3050 = vunpack.c.l.b16 %v2950
        %v3051 = vunpack.c.h.b16 %v2950
        %v3052 = vunpack.c.l.b16 %v2951
        %v3053 = vunpack.c.h.b16 %v2951
        %v3054 = vunpack.c.l.b16 %v2952
        %v3055 = vunpack.c.h.b16 %v2952
        %v3056 = vunpack.c.l.b16 %v2953
        %v3057 = vunpack.c.h.b16 %v2953
        %v3058 = vunpack.c.l.b16 %v2954
        %v3059 = vunpack.c.h.b16 %v2954
        %v3060 = vunpack.c.l.b16 %v2955
        %v3061 = vunpack.c.h.b16 %v2955
        %v3062 = vunpack.c.l.b16 %v2956
        %v3063 = vunpack.c.h.b16 %v2956
        %v3064 = vunpack.c.l.b16 %v2957
        %v3065 = vunpack.c.h.b16 %v2957
        %v3066 = vpack.c.b16 %v2996, %v2994
        %v3067 = vpack.c.b16 %v2997, %v2995
        %v3068 = vpack.c.b16 %v3000, %v2998
        %v3069 = vpack.c.b16 %v3001, %v2999
        %v3070 = vpack.c.b16 %v3004, %v3002
        %v3071 = vpack.c.b16 %v3005, %v3003
        %v3072 = vpack.c.b16 %v3008, %v3006
        %v3073 = vpack.c.b16 %v3009, %v3007
        %v3074 = vpack.c.b16 %v3012, %v3010
        %v3075 = vpack.c.b16 %v3013, %v3011
        %v3076 = vpack.c.b16 %v3016, %v3014
        %v3077 = vpack.c.b16 %v3017, %v3015
        %v3078 = vpack.c.b16 %v3020, %v3018
        %v3079 = vpack.c.b16 %v3021, %v3019
        %v3080 = vpack.c.b16 %v3024, %v3022
        %v3081 = vpack.c.b16 %v3025, %v3023
        %v3082 = vpack.c.b16 %v3028, %v3026
        %v3083 = vpack.c.b16 %v3029, %v3027
        %v3084 = vpack.c.b16 %v3032, %v3030
        %v3085 = vpack.c.b16 %v3033, %v3031
        %v3086 = vpack.c.b16 %v3036, %v3034
        %v3087 = vpack.c.b16 %v3037, %v3035
        %v3088 = vpack.c.b16 %v3040, %v3038
        %v3089 = vpack.c.b16 %v3041, %v3039
        %v3090 = vpack.c.b16 %v3044, %v3042
        %v3091 = vpack.c.b16 %v3045, %v3043
        %v3092 = vpack.c.b16 %v3048, %v3046
        %v3093 = vpack.c.b16 %v3049, %v3047
        %v3094 = vpack.c.b16 %v3052, %v3050
        %v3095 = vpack.c.b16 %v3053, %v3051
        %v3096 = vpack.c.b16 %v3056, %v3054
        %v3097 = vpack.c.b16 %v3057, %v3055
        %v3098 = vpack.c.b16 %v3060, %v3058
        %v3099 = vpack.c.b16 %v3061, %v3059
        %v3100 = vpack.c.b16 %v3064, %v3062
        %v3101 = vpack.c.b16 %v3065, %v3063
        %vm3138 = vcmask 261120
        %v3140 = vsel %vm3138, %v2921, 0
        %3142 = vmatpush.bf16.msra.mxu0 %v3080
        %3143 = vmatpush.bf16.msra.mxu0 %v3078
        %3144 = vmatpush.bf16.msra.mxu0 %v3076
        %3145 = vmatpush.bf16.msra.mxu0 %v3074
        %3146 = vmatpush.bf16.msra.mxu0 %v3072
        %3147 = vmatpush.bf16.msra.mxu0 %v3070
        %3148 = vmatpush.bf16.msra.mxu0 %v3068
        %3149 = vmatpush.bf16.msra.mxu0 %v3066
        %3150 = vmatmul.bf16.gmra.mxu0 %v2919
        %v3151 = vpop.f32.mrf.mxu0
        %v3152 = vadd.f32 0.0, %v3151
        %v3153 = vpop.f32.mrf.mxu0
        %3154 = vdwg.mxu0
        %3155 = vmatpush.bf16.msra.mxu0 %v3096
        %3156 = vmatpush.bf16.msra.mxu0 %v3094
        %3157 = vmatpush.bf16.msra.mxu0 %v3092
        %3158 = vmatpush.bf16.msra.mxu0 %v3090
        %3159 = vmatpush.bf16.msra.mxu0 %v3088
        %3160 = vmatpush.bf16.msra.mxu0 %v3086
        %3161 = vmatpush.bf16.msra.mxu0 %v3084
        %3162 = vmatpush.bf16.msra.mxu0 %v3082
        %3163 = vmatmul.bf16.gmra.mxu0 %v2920
        %v3164 = vpop.f32.mrf.mxu0
        %v3165 = vadd.f32 %v3152, %v3164
        %v3166 = vpop.f32.mrf.mxu0
        %3167 = vdwg.mxu0
        %3168 = vmatpush.bf16.msra.mxu0 0
        %3169 = vmatpush.bf16.msra.mxu0 0
        %3170 = vmatpush.bf16.msra.mxu0 0
        %3171 = vmatpush.bf16.msra.mxu0 0
        %3172 = vmatpush.bf16.msra.mxu0 0
        %3173 = vmatpush.bf16.msra.mxu0 0
        %3174 = vmatpush.bf16.msra.mxu0 %v3100
        %3175 = vmatpush.bf16.msra.mxu0 %v3098
        %3176 = vmatmul.bf16.gmra.mxu0 %v3140
        %v3177 = vpop.f32.mrf.mxu0
        %v3178 = vadd.f32 %v3165, %v3177
        %v3179 = vpop.f32.mrf.mxu0
        %3180 = vdwg.mxu0
        %3181 = vmatpush.bf16.msra.mxu0 %v3081
        %3182 = vmatpush.bf16.msra.mxu0 %v3079
        %3183 = vmatpush.bf16.msra.mxu0 %v3077
        %3184 = vmatpush.bf16.msra.mxu0 %v3075
        %3185 = vmatpush.bf16.msra.mxu0 %v3073
        %3186 = vmatpush.bf16.msra.mxu0 %v3071
        %3187 = vmatpush.bf16.msra.mxu0 %v3069
        %3188 = vmatpush.bf16.msra.mxu0 %v3067
        %3189 = vmatmul.bf16.gmra.mxu0 %v2919
        %v3190 = vpop.f32.mrf.mxu0
        %v3191 = vadd.f32 0.0, %v3190
        %v3192 = vpop.f32.mrf.mxu0
        %3193 = vdwg.mxu0
        %3194 = vmatpush.bf16.msra.mxu0 %v3097
        %3195 = vmatpush.bf16.msra.mxu0 %v3095
        %3196 = vmatpush.bf16.msra.mxu0 %v3093
        %3197 = vmatpush.bf16.msra.mxu0 %v3091
        %3198 = vmatpush.bf16.msra.mxu0 %v3089
        %3199 = vmatpush.bf16.msra.mxu0 %v3087
        %3200 = vmatpush.bf16.msra.mxu0 %v3085
        %3201 = vmatpush.bf16.msra.mxu0 %v3083
        %3202 = vmatmul.bf16.gmra.mxu0 %v2920
        %v3203 = vpop.f32.mrf.mxu0
        %v3204 = vadd.f32 %v3191, %v3203
        %v3205 = vpop.f32.mrf.mxu0
        %3206 = vdwg.mxu0
        %3207 = vmatpush.bf16.msra.mxu0 0
        %3208 = vmatpush.bf16.msra.mxu0 0
        %3209 = vmatpush.bf16.msra.mxu0 0
        %3210 = vmatpush.bf16.msra.mxu0 0
        %3211 = vmatpush.bf16.msra.mxu0 0
        %3212 = vmatpush.bf16.msra.mxu0 0
        %3213 = vmatpush.bf16.msra.mxu0 %v3101
        %3214 = vmatpush.bf16.msra.mxu0 %v3099
        %3215 = vmatmul.bf16.gmra.mxu0 %v3140
        %v3216 = vpop.f32.mrf.mxu0
        %v3217 = vadd.f32 %v3204, %v3216
        %v3218 = vpop.f32.mrf.mxu0
        %3219 = vdwg.mxu0
        %v3222 = vrot.slane %v3217, 4
        %v3223 = vsel %vm1068, %v3178, %v3222
        %3225 = vst [vmem:[%s383] sm:$0xff] %v3223
        %p3226 = scmp.lt.s32.totalorder %s22, 1
        %s3227 = scalar_select %p3226, %s22, 1
        %s3228 = smul.addr %s3227, 2
        %s3229 = smul.addr %s3228, 4
        %s3230 = scalar_lea.vmem %s9, %s3229
        // Predicated region
        $region65: #{decoder_block_forward.1} parent=55 // pred_check
          %p3231 = pneg %p239
        $region66: #{decoder_block_forward.1} parent=55 // pred_check_branch
          %3233 = sbr.rel (%p3231) target = $region68
        $region67: #{decoder_block_forward.1} parent=55 // pred_region
          _
        $region68: #{decoder_block_forward.1} parent=55 // pred_fallthru
          _
      $region56: #{decoder_block_forward.1} parent=5 // pred_fallthru
        _
      %p3234 = scmp.le.s32.totalorder 2, %s17
      // Predicated region
      $region69: #{decoder_block_forward.1} parent=5 // pred_check
        %p3235 = pneg %p3234
      $region70: #{decoder_block_forward.1} parent=5 // pred_check_branch
        %3237 = sbr.rel (%p3235) target = $region72
      $region71: #{decoder_block_forward.1} parent=5 // pred_region
        %s3238 = ssub.s32 %s17, 2
        // Predicated region
        $region73: #{decoder_block_forward.1} parent=71 // pred_check
          %p3239 = pneg %p245
        $region74: #{decoder_block_forward.1} parent=71 // pred_check_branch
          %3241 = sbr.rel (%p3239) target = $region76
        $region75: #{decoder_block_forward.1} parent=71 // pred_region
          %p3242 = scmp.lt.s32.totalorder %s23, 1
          %s3243 = scalar_select %p3242, %s23, 1
          %s3244 = smul.addr %s3243, 2
          %s3245 = smul.addr %s3244, 4
          %s3246 = scalar_lea.vmem %s9, %s3245
        $region76: #{decoder_block_forward.1} parent=71 // pred_fallthru
          _
      $region72: #{decoder_block_forward.1} parent=5 // pred_fallthru
        _
    $region6: #{decoder_block_forward.1} parent=1 // loop_footer
      %s21 = sadd.s32 1, %s17
    $region7: #{decoder_block_forward.1} parent=1 // loop_footer_branch
      %16 = sbr.rel target = $region3
    $region8: #{decoder_block_forward.1} parent=1 // loop_exit
      _
    %3247 = vsyncpa [#allocation4], 1
    %s3248 = scalar_lea.sflag [#allocation4], 1
    %3249 = vsyncpa %s3248, 1
    %3250 = vsyncpa [#allocation6], 1

</llo_original>
